<compile_context>
chip_gen: v6e
topology: v6e:2x2x1
jax: 0.10.0
libtpu: 0.0.40
codegen_flags: <defaults>
</compile_context>

<pallas_src>
import functools

import jax
import jax.numpy as jnp
from jax.experimental import pallas as pl
from jax.experimental.pallas import tpu as pltpu


def _layernorm(x, gamma, beta, eps=1e-6):
    # Matches torch.nn.LayerNorm(dim, eps=1e-6): stats over the last axis.
    mu = jnp.mean(x, axis=-1, keepdims=True)
    var = jnp.mean((x - mu) ** 2, axis=-1, keepdims=True)
    xn = (x - mu) * jax.lax.rsqrt(var + eps)
    return xn * gamma + beta


def encoder_block_kernel(
    x_ref,                               # (N, D)  f32 activation block (batch squeezed)
    g1_ref, be1_ref,                     # LayerNorm1: (1, D) f32
    wqkv_ref, bqkv_ref,                  # qkv:  (D, 3D) cdt, (1, 3D) f32
    wp_ref, bp_ref,                      # proj: (D, D)  cdt, (1, D)  f32
    g2_ref, be2_ref,                     # LayerNorm2: (1, D) f32
    w1_ref, bb1_ref,                     # fc1:  (D, H)  cdt, (1, H)  f32
    w2_ref, bb2_ref,                     # fc2:  (H, D)  cdt, (1, D)  f32
    o_ref,                               # (N, D) f32
    *, dim, n_heads, approx_recip,
):
    head_dim = dim // n_heads
    scale = head_dim ** (-0.5)
    cdt = wqkv_ref.dtype                 # MXU input dtype (f32 or bf16)

    x = x_ref[...]                       # (N, D) f32
    n = x.shape[0]

    # ---- norm1 (f32) ----
    xn1 = _layernorm(x, g1_ref[...], be1_ref[...])

    # ---- attention: all heads batched, no per-head slice/concat ----
    qkv = jnp.dot(xn1.astype(cdt), wqkv_ref[...],
                  preferred_element_type=jnp.float32) + bqkv_ref[...]   # (N, 3D) f32

    def split_heads(t):                  # (N, D) -> (H, N, hd)
        return jnp.swapaxes(t.reshape(n, n_heads, head_dim), 0, 1)

    # Fold the attention scale into q (touches N*hd, not N*N elements).
    q = split_heads(qkv[:, 0 * dim:1 * dim] * scale)
    k = split_heads(qkv[:, 1 * dim:2 * dim])
    v = split_heads(qkv[:, 2 * dim:3 * dim])

    s = jnp.einsum('hnd,hmd->hnm', q.astype(cdt), k.astype(cdt),
                   preferred_element_type=jnp.float32)                  # (H, N, N) f32
    s = s - jnp.max(s, axis=-1, keepdims=True)
    p = jnp.exp(s)
    denom = jnp.sum(p, axis=-1, keepdims=True)
    p = p * pl.reciprocal(denom, approx=approx_recip)                   # softmax (f32)

    ctx = jnp.einsum('hnm,hmd->hnd', p.astype(cdt), v.astype(cdt),
                     preferred_element_type=jnp.float32)                # (H, N, hd)
    weighted = jnp.swapaxes(ctx, 0, 1).reshape(n, dim)                  # (N, D)

    attn_out = jnp.dot(weighted.astype(cdt), wp_ref[...],
                       preferred_element_type=jnp.float32) + bp_ref[...]
    x1 = x + attn_out                                                   # residual 1

    # ---- norm2 + MLP ----
    xn2 = _layernorm(x1, g2_ref[...], be2_ref[...])
    h1 = jnp.dot(xn2.astype(cdt), w1_ref[...],
                 preferred_element_type=jnp.float32) + bb1_ref[...]
    # nn.RReLU(lower=0.1, upper=0.7) eval mode: leaky relu, slope (0.1+0.7)/2 = 0.4
    a1 = jnp.where(h1 >= 0, h1, 0.4 * h1)
    h2 = jnp.dot(a1.astype(cdt), w2_ref[...],
                 preferred_element_type=jnp.float32) + bb2_ref[...]

    o_ref[...] = x1 + h2                                                # residual 2


def encoder_block(x, params, *, dim, n_heads, use_bf16=False):
    B, N, D = x.shape
    assert D == dim, "embedding dim mismatch"
    assert dim % n_heads == 0, "dim must be divisible by n_heads"
    # For best perf D and hidden should be multiples of 128 and N a multiple of 8
    # (pad N outside the kernel at real ViT sizes, e.g. 197 -> 200/256).

    cdt = jnp.bfloat16 if use_bf16 else jnp.float32
    wqkv = params['wqkv'].astype(cdt)
    wp = params['wp'].astype(cdt)
    w1 = params['w_fc1'].astype(cdt)
    w2 = params['w_fc2'].astype(cdt)
    hidden = w1.shape[1]

    args = (
        x,
        params['g1'], params['b1'],
        wqkv, params['bqkv'],
        wp, params['bp'],
        params['g2'], params['b2'],
        w1, params['b_fc1'],
        w2, params['b_fc2'],
    )

    # Activation blocks: one batch element per grid step, batch dim squeezed.
    act_spec = pl.BlockSpec((pl.Squeezed(), N, D), lambda b: (b, 0, 0))
    # Weights / biases / LN params: full array, constant index map -> VMEM-resident.
    resident = lambda a: pl.BlockSpec(a.shape, lambda b: (0, 0))
    in_specs = [act_spec] + [resident(a) for a in args[1:]]

    # --- VMEM budget: resident weights + double-buffered activation blocks
    #     + in-kernel intermediates, with 2x headroom, clamped to [32, 64] MiB.
    w_itemsize = 2 if use_bf16 else 4
    resident_bytes = (wqkv.size + wp.size + w1.size + w2.size) * w_itemsize
    resident_bytes += (params['bqkv'].size + params['bp'].size +
                       params['b_fc1'].size + params['b_fc2'].size + 4 * D) * 4
    act_block_bytes = N * D * 4
    interm_bytes = (3 * N * D                      # qkv
                    + 3 * N * D                    # q, k, v head-split copies
                    + 3 * n_heads * N * N          # scores / probs temporaries
                    + 2 * N * hidden               # h1, a1
                    + 6 * N * D) * 4               # xn1, attn_out, x1, xn2, h2, weighted
    est = resident_bytes + 4 * act_block_bytes + interm_bytes
    vmem_limit = int(min(max(2 * est, 32 * 2**20), 64 * 2**20))

    return pl.pallas_call(
        functools.partial(encoder_block_kernel, dim=dim, n_heads=n_heads,
                          approx_recip=use_bf16),
        out_shape=jax.ShapeDtypeStruct((B, N, D), jnp.float32),
        grid=(B,),
        in_specs=in_specs,
        out_specs=act_spec,
        compiler_params=pltpu.CompilerParams(
            dimension_semantics=("parallel",),
            vmem_limit_bytes=vmem_limit),
    )(*args)


def encoder_block_ref(x, params, *, dim, n_heads):
    """Pure-JAX reference mirroring the PyTorch module (eval mode)."""
    head_dim = dim // n_heads
    scale = head_dim ** (-0.5)

    def ln(v, g, b):
        mu = jnp.mean(v, axis=-1, keepdims=True)
        var = jnp.mean((v - mu) ** 2, axis=-1, keepdims=True)
        return (v - mu) / jnp.sqrt(var + 1e-6) * g + b

    B, N, D = x.shape
    xn1 = ln(x, params['g1'], params['b1'])
    qkv = xn1 @ params['wqkv'] + params['bqkv']
    qkv = qkv.reshape(B, N, 3, n_heads, head_dim).transpose(2, 0, 3, 1, 4)
    q, k, v = qkv[0], qkv[1], qkv[2]                      # (B, H, N, hd)
    s = jnp.einsum('bhnd,bhmd->bhnm', q, k) * scale
    p = jax.nn.softmax(s, axis=-1)
    w = jnp.einsum('bhnm,bhmd->bhnd', p, v).transpose(0, 2, 1, 3).reshape(B, N, D)
    x1 = x + (w @ params['wp'] + params['bp'])
    xn2 = ln(x1, params['g2'], params['b2'])
    h1 = xn2 @ params['w_fc1'] + params['b_fc1']
    a1 = jnp.where(h1 >= 0, h1, 0.4 * h1)
    return x1 + (a1 @ params['w_fc2'] + params['b_fc2'])


def make_params(key, dim, n_heads, mlp_ratio=4.0):
    hidden = int(dim * mlp_ratio)
    ks = jax.random.split(key, 8)
    scale = 0.05
    # Linear weights stored as (in_features, out_features) == W.T of PyTorch layout.
    return {
        'g1': jnp.ones((1, dim), jnp.float32),
        'b1': jnp.zeros((1, dim), jnp.float32),
        'wqkv': scale * jax.random.normal(ks[0], (dim, 3 * dim), jnp.float32),
        'bqkv': scale * jax.random.normal(ks[1], (1, 3 * dim), jnp.float32),
        'wp': scale * jax.random.normal(ks[2], (dim, dim), jnp.float32),
        'bp': scale * jax.random.normal(ks[3], (1, dim), jnp.float32),
        'g2': jnp.ones((1, dim), jnp.float32),
        'b2': jnp.zeros((1, dim), jnp.float32),
        'w_fc1': scale * jax.random.normal(ks[4], (dim, hidden), jnp.float32),
        'b_fc1': scale * jax.random.normal(ks[5], (1, hidden), jnp.float32),
        'w_fc2': scale * jax.random.normal(ks[6], (hidden, dim), jnp.float32),
        'b_fc2': scale * jax.random.normal(ks[7], (1, dim), jnp.float32),
    }


if __name__ == "__main__":
    # Small but lane/sublane-friendly shapes: N multiple of 8, D multiple of 128.
    B, N, DIM, HEADS = 2, 16, 128, 4

    key = jax.random.PRNGKey(0)
    kx, kp = jax.random.split(key)
    x = jax.random.normal(kx, (B, N, DIM), jnp.float32)
    params = make_params(kp, DIM, HEADS)

    ref = encoder_block_ref(x, params, dim=DIM, n_heads=HEADS)

    # fp32 path: tight correctness check against the reference.
    out_f32 = jax.block_until_ready(
        encoder_block(x, params, dim=DIM, n_heads=HEADS, use_bf16=False))
    assert out_f32.shape == (B, N, DIM)
    assert jnp.allclose(out_f32, ref, atol=1e-4, rtol=1e-4), "fp32 kernel mismatch vs reference"

    # bf16-matmul / f32-accumulate path: performance configuration, looser tolerance.
    out_bf16 = jax.block_until_ready(
        encoder_block(x, params, dim=DIM, n_heads=HEADS, use_bf16=True))
    assert jnp.allclose(out_bf16, ref, atol=1e-1, rtol=1e-1), "bf16 kernel diverged from reference"

    print("KERNEL_OK")
</pallas_src>

<mosaic_0001>
module attributes {stable_mosaic.version = 11 : i64} {
  func.func @encoder_block_kernel(%arg0: i32, %arg1: memref<1x16x128xf32, #tpu.memory_space<vmem>>, %arg2: memref<1x128xf32, #tpu.memory_space<vmem>>, %arg3: memref<1x128xf32, #tpu.memory_space<vmem>>, %arg4: memref<128x384xf32, #tpu.memory_space<vmem>>, %arg5: memref<1x384xf32, #tpu.memory_space<vmem>>, %arg6: memref<128x128xf32, #tpu.memory_space<vmem>>, %arg7: memref<1x128xf32, #tpu.memory_space<vmem>>, %arg8: memref<1x128xf32, #tpu.memory_space<vmem>>, %arg9: memref<1x128xf32, #tpu.memory_space<vmem>>, %arg10: memref<128x512xf32, #tpu.memory_space<vmem>>, %arg11: memref<1x512xf32, #tpu.memory_space<vmem>>, %arg12: memref<512x128xf32, #tpu.memory_space<vmem>>, %arg13: memref<1x128xf32, #tpu.memory_space<vmem>>, %arg14: memref<1x16x128xf32, #tpu.memory_space<vmem>>) attributes {dimension_semantics = [#tpu.dimension_semantics<parallel>], iteration_bounds = array<i64: 2>, scalar_prefetch = 0 : i64, scratch_operands = 0 : i64, tpu.core_type = #tpu.core_type<tc>, window_params = [{transform_indices = @transform_0, window_bounds = array<i64: 1, 16, 128>}, {pipeline_mode = #tpu.pipeline_mode<synchronous>, transform_indices = @transform_1, window_bounds = array<i64: 1, 128>}, {pipeline_mode = #tpu.pipeline_mode<synchronous>, transform_indices = @transform_2, window_bounds = array<i64: 1, 128>}, {pipeline_mode = #tpu.pipeline_mode<synchronous>, transform_indices = @transform_3, window_bounds = array<i64: 128, 384>}, {pipeline_mode = #tpu.pipeline_mode<synchronous>, transform_indices = @transform_4, window_bounds = array<i64: 1, 384>}, {pipeline_mode = #tpu.pipeline_mode<synchronous>, transform_indices = @transform_5, window_bounds = array<i64: 128, 128>}, {pipeline_mode = #tpu.pipeline_mode<synchronous>, transform_indices = @transform_6, window_bounds = array<i64: 1, 128>}, {pipeline_mode = #tpu.pipeline_mode<synchronous>, transform_indices = @transform_7, window_bounds = array<i64: 1, 128>}, {pipeline_mode = #tpu.pipeline_mode<synchronous>, transform_indices = @transform_8, window_bounds = array<i64: 1, 128>}, {pipeline_mode = #tpu.pipeline_mode<synchronous>, transform_indices = @transform_9, window_bounds = array<i64: 128, 512>}, {pipeline_mode = #tpu.pipeline_mode<synchronous>, transform_indices = @transform_10, window_bounds = array<i64: 1, 512>}, {pipeline_mode = #tpu.pipeline_mode<synchronous>, transform_indices = @transform_11, window_bounds = array<i64: 512, 128>}, {pipeline_mode = #tpu.pipeline_mode<synchronous>, transform_indices = @transform_12, window_bounds = array<i64: 1, 128>}, {transform_indices = @transform_13, window_bounds = array<i64: 1, 16, 128>}]} {
    %c0 = arith.constant 0 : index
    %c0_0 = arith.constant 0 : index
    %c0_1 = arith.constant 0 : index
    %0 = vector.load %arg1[%c0, %c0_0, %c0_1] : memref<1x16x128xf32, #tpu.memory_space<vmem>>, vector<1x16x128xf32>
    %1 = vector.shape_cast %0 : vector<1x16x128xf32> to vector<16x128xf32>
    %c0_2 = arith.constant 0 : index
    %c0_3 = arith.constant 0 : index
    %2 = vector.load %arg2[%c0_2, %c0_3] : memref<1x128xf32, #tpu.memory_space<vmem>>, vector<1x128xf32>
    %c0_4 = arith.constant 0 : index
    %c0_5 = arith.constant 0 : index
    %3 = vector.load %arg3[%c0_4, %c0_5] : memref<1x128xf32, #tpu.memory_space<vmem>>, vector<1x128xf32>
    %cst = arith.constant dense<0.000000e+00> : vector<16xf32>
    %4 = vector.multi_reduction <add>, %1, %cst [1] : vector<16x128xf32> to vector<16xf32>
    %5 = vector.shape_cast %4 : vector<16xf32> to vector<16x1xf32>
    %cst_6 = arith.constant 1.280000e+02 : f32
    %6 = vector.broadcast %cst_6 : f32 to vector<16x1xf32>
    %7 = arith.divf %5, %6 : vector<16x1xf32>
    %8 = vector.broadcast %7 : vector<16x1xf32> to vector<16x128xf32>
    %9 = arith.subf %1, %8 : vector<16x128xf32>
    %10 = arith.mulf %9, %9 : vector<16x128xf32>
    %cst_7 = arith.constant dense<0.000000e+00> : vector<16xf32>
    %11 = vector.multi_reduction <add>, %10, %cst_7 [1] : vector<16x128xf32> to vector<16xf32>
    %12 = vector.shape_cast %11 : vector<16xf32> to vector<16x1xf32>
    %cst_8 = arith.constant 1.280000e+02 : f32
    %13 = vector.broadcast %cst_8 : f32 to vector<16x1xf32>
    %14 = arith.divf %12, %13 : vector<16x1xf32>
    %15 = vector.broadcast %7 : vector<16x1xf32> to vector<16x128xf32>
    %16 = arith.subf %1, %15 : vector<16x128xf32>
    %cst_9 = arith.constant 9.99999997E-7 : f32
    %17 = vector.broadcast %cst_9 : f32 to vector<16x1xf32>
    %18 = arith.addf %14, %17 : vector<16x1xf32>
    %19 = math.rsqrt %18 : vector<16x1xf32>
    %20 = vector.broadcast %19 : vector<16x1xf32> to vector<16x128xf32>
    %21 = arith.mulf %16, %20 : vector<16x128xf32>
    %22 = vector.broadcast %2 : vector<1x128xf32> to vector<16x128xf32>
    %23 = arith.mulf %21, %22 : vector<16x128xf32>
    %24 = vector.broadcast %3 : vector<1x128xf32> to vector<16x128xf32>
    %25 = arith.addf %23, %24 : vector<16x128xf32>
    %c0_10 = arith.constant 0 : index
    %c0_11 = arith.constant 0 : index
    %26 = vector.load %arg4[%c0_10, %c0_11] : memref<128x384xf32, #tpu.memory_space<vmem>>, vector<128x384xf32>
    %cst_12 = arith.constant dense<0.000000e+00> : vector<16x384xf32>
    %27 = tpu.matmul %25, %26, %cst_12 {dimension_numbers = #tpu.dot_dimension_numbers<[1], [0], [0], [1], [0, 0, 1, 1], [], []>} : vector<16x128xf32>, vector<128x384xf32>, vector<16x384xf32> -> vector<16x384xf32>
    %c0_13 = arith.constant 0 : index
    %c0_14 = arith.constant 0 : index
    %28 = vector.load %arg5[%c0_13, %c0_14] : memref<1x384xf32, #tpu.memory_space<vmem>>, vector<1x384xf32>
    %29 = vector.broadcast %28 : vector<1x384xf32> to vector<16x384xf32>
    %30 = arith.addf %27, %29 : vector<16x384xf32>
    %31 = vector.extract_strided_slice %30 {offsets = [0, 0], sizes = [16, 128], strides = [1, 1]} : vector<16x384xf32> to vector<16x128xf32>
    %cst_15 = arith.constant 0.176776692 : f32
    %32 = vector.broadcast %cst_15 : f32 to vector<16x128xf32>
    %33 = arith.mulf %31, %32 : vector<16x128xf32>
    %34 = vector.shape_cast %33 : vector<16x128xf32> to vector<16x4x32xf32>
    %35 = tpu.transpose %34, [1, 0, 2] : vector<16x4x32xf32> -> vector<4x16x32xf32>
    %36 = vector.extract_strided_slice %30 {offsets = [0, 128], sizes = [16, 128], strides = [1, 1]} : vector<16x384xf32> to vector<16x128xf32>
    %37 = vector.shape_cast %36 : vector<16x128xf32> to vector<16x4x32xf32>
    %38 = tpu.transpose %37, [1, 0, 2] : vector<16x4x32xf32> -> vector<4x16x32xf32>
    %39 = vector.extract_strided_slice %30 {offsets = [0, 256], sizes = [16, 128], strides = [1, 1]} : vector<16x384xf32> to vector<16x128xf32>
    %40 = vector.shape_cast %39 : vector<16x128xf32> to vector<16x4x32xf32>
    %41 = tpu.transpose %40, [1, 0, 2] : vector<16x4x32xf32> -> vector<4x16x32xf32>
    "tpu.trace_start"() <{level = 10 : i32, message = "hnd,hmd->hnm"}> : () -> ()
    %cst_16 = arith.constant dense<0.000000e+00> : vector<4x16x16xf32>
    %42 = tpu.matmul %35, %38, %cst_16 {dimension_numbers = #tpu.dot_dimension_numbers<[2], [2], [1], [1], [0, 0, 0, 1, 1, 1], [0], [0]>} : vector<4x16x32xf32>, vector<4x16x32xf32>, vector<4x16x16xf32> -> vector<4x16x16xf32>
    "tpu.trace_stop"() : () -> ()
    %cst_17 = arith.constant dense<0xFF800000> : vector<4x16xf32>
    %43 = vector.multi_reduction <maximumf>, %42, %cst_17 [2] : vector<4x16x16xf32> to vector<4x16xf32>
    %44 = vector.shape_cast %43 : vector<4x16xf32> to vector<4x16x1xf32>
    %45 = vector.broadcast %44 : vector<4x16x1xf32> to vector<4x16x16xf32>
    %46 = arith.subf %42, %45 : vector<4x16x16xf32>
    %47 = math.exp %46 : vector<4x16x16xf32>
    %cst_18 = arith.constant dense<0.000000e+00> : vector<4x16xf32>
    %48 = vector.multi_reduction <add>, %47, %cst_18 [2] : vector<4x16x16xf32> to vector<4x16xf32>
    %49 = vector.shape_cast %48 : vector<4x16xf32> to vector<4x16x1xf32>
    %50 = tpu.reciprocal %49 : vector<4x16x1xf32> -> vector<4x16x1xf32>
    %51 = vector.broadcast %50 : vector<4x16x1xf32> to vector<4x16x16xf32>
    %52 = arith.mulf %47, %51 : vector<4x16x16xf32>
    "tpu.trace_start"() <{level = 10 : i32, message = "hnm,hmd->hnd"}> : () -> ()
    %cst_19 = arith.constant dense<0.000000e+00> : vector<4x16x32xf32>
    %53 = tpu.matmul %52, %41, %cst_19 {dimension_numbers = #tpu.dot_dimension_numbers<[2], [1], [1], [2], [0, 0, 0, 1, 1, 2], [0], [0]>} : vector<4x16x16xf32>, vector<4x16x32xf32>, vector<4x16x32xf32> -> vector<4x16x32xf32>
    "tpu.trace_stop"() : () -> ()
    %54 = tpu.transpose %53, [1, 0, 2] : vector<4x16x32xf32> -> vector<16x4x32xf32>
    %55 = vector.shape_cast %54 : vector<16x4x32xf32> to vector<16x128xf32>
    %c0_20 = arith.constant 0 : index
    %c0_21 = arith.constant 0 : index
    %56 = vector.load %arg6[%c0_20, %c0_21] : memref<128x128xf32, #tpu.memory_space<vmem>>, vector<128x128xf32>
    %cst_22 = arith.constant dense<0.000000e+00> : vector<16x128xf32>
    %57 = tpu.matmul %55, %56, %cst_22 {dimension_numbers = #tpu.dot_dimension_numbers<[1], [0], [0], [1], [0, 0, 1, 1], [], []>} : vector<16x128xf32>, vector<128x128xf32>, vector<16x128xf32> -> vector<16x128xf32>
    %c0_23 = arith.constant 0 : index
    %c0_24 = arith.constant 0 : index
    %58 = vector.load %arg7[%c0_23, %c0_24] : memref<1x128xf32, #tpu.memory_space<vmem>>, vector<1x128xf32>
    %59 = vector.broadcast %58 : vector<1x128xf32> to vector<16x128xf32>
    %60 = arith.addf %57, %59 : vector<16x128xf32>
    %61 = arith.addf %1, %60 : vector<16x128xf32>
    %c0_25 = arith.constant 0 : index
    %c0_26 = arith.constant 0 : index
    %62 = vector.load %arg8[%c0_25, %c0_26] : memref<1x128xf32, #tpu.memory_space<vmem>>, vector<1x128xf32>
    %c0_27 = arith.constant 0 : index
    %c0_28 = arith.constant 0 : index
    %63 = vector.load %arg9[%c0_27, %c0_28] : memref<1x128xf32, #tpu.memory_space<vmem>>, vector<1x128xf32>
    %cst_29 = arith.constant dense<0.000000e+00> : vector<16xf32>
    %64 = vector.multi_reduction <add>, %61, %cst_29 [1] : vector<16x128xf32> to vector<16xf32>
    %65 = vector.shape_cast %64 : vector<16xf32> to vector<16x1xf32>
    %cst_30 = arith.constant 1.280000e+02 : f32
    %66 = vector.broadcast %cst_30 : f32 to vector<16x1xf32>
    %67 = arith.divf %65, %66 : vector<16x1xf32>
    %68 = vector.broadcast %67 : vector<16x1xf32> to vector<16x128xf32>
    %69 = arith.subf %61, %68 : vector<16x128xf32>
    %70 = arith.mulf %69, %69 : vector<16x128xf32>
    %cst_31 = arith.constant dense<0.000000e+00> : vector<16xf32>
    %71 = vector.multi_reduction <add>, %70, %cst_31 [1] : vector<16x128xf32> to vector<16xf32>
    %72 = vector.shape_cast %71 : vector<16xf32> to vector<16x1xf32>
    %cst_32 = arith.constant 1.280000e+02 : f32
    %73 = vector.broadcast %cst_32 : f32 to vector<16x1xf32>
    %74 = arith.divf %72, %73 : vector<16x1xf32>
    %75 = vector.broadcast %67 : vector<16x1xf32> to vector<16x128xf32>
    %76 = arith.subf %61, %75 : vector<16x128xf32>
    %cst_33 = arith.constant 9.99999997E-7 : f32
    %77 = vector.broadcast %cst_33 : f32 to vector<16x1xf32>
    %78 = arith.addf %74, %77 : vector<16x1xf32>
    %79 = math.rsqrt %78 : vector<16x1xf32>
    %80 = vector.broadcast %79 : vector<16x1xf32> to vector<16x128xf32>
    %81 = arith.mulf %76, %80 : vector<16x128xf32>
    %82 = vector.broadcast %62 : vector<1x128xf32> to vector<16x128xf32>
    %83 = arith.mulf %81, %82 : vector<16x128xf32>
    %84 = vector.broadcast %63 : vector<1x128xf32> to vector<16x128xf32>
    %85 = arith.addf %83, %84 : vector<16x128xf32>
    %c0_34 = arith.constant 0 : index
    %c0_35 = arith.constant 0 : index
    %86 = vector.load %arg10[%c0_34, %c0_35] : memref<128x512xf32, #tpu.memory_space<vmem>>, vector<128x512xf32>
    %cst_36 = arith.constant dense<0.000000e+00> : vector<16x512xf32>
    %87 = tpu.matmul %85, %86, %cst_36 {dimension_numbers = #tpu.dot_dimension_numbers<[1], [0], [0], [1], [0, 0, 1, 1], [], []>} : vector<16x128xf32>, vector<128x512xf32>, vector<16x512xf32> -> vector<16x512xf32>
    %c0_37 = arith.constant 0 : index
    %c0_38 = arith.constant 0 : index
    %88 = vector.load %arg11[%c0_37, %c0_38] : memref<1x512xf32, #tpu.memory_space<vmem>>, vector<1x512xf32>
    %89 = vector.broadcast %88 : vector<1x512xf32> to vector<16x512xf32>
    %90 = arith.addf %87, %89 : vector<16x512xf32>
    %cst_39 = arith.constant 0.000000e+00 : f32
    %91 = vector.broadcast %cst_39 : f32 to vector<16x512xf32>
    %92 = arith.cmpf oge, %90, %91 : vector<16x512xf32>
    %cst_40 = arith.constant 4.000000e-01 : f32
    %93 = vector.broadcast %cst_40 : f32 to vector<16x512xf32>
    %94 = arith.mulf %93, %90 : vector<16x512xf32>
    %95 = arith.select %92, %90, %94 : vector<16x512xi1>, vector<16x512xf32>
    %c0_41 = arith.constant 0 : index
    %c0_42 = arith.constant 0 : index
    %96 = vector.load %arg12[%c0_41, %c0_42] : memref<512x128xf32, #tpu.memory_space<vmem>>, vector<512x128xf32>
    %cst_43 = arith.constant dense<0.000000e+00> : vector<16x128xf32>
    %97 = tpu.matmul %95, %96, %cst_43 {dimension_numbers = #tpu.dot_dimension_numbers<[1], [0], [0], [1], [0, 0, 1, 1], [], []>} : vector<16x512xf32>, vector<512x128xf32>, vector<16x128xf32> -> vector<16x128xf32>
    %c0_44 = arith.constant 0 : index
    %c0_45 = arith.constant 0 : index
    %98 = vector.load %arg13[%c0_44, %c0_45] : memref<1x128xf32, #tpu.memory_space<vmem>>, vector<1x128xf32>
    %99 = vector.broadcast %98 : vector<1x128xf32> to vector<16x128xf32>
    %100 = arith.addf %97, %99 : vector<16x128xf32>
    %101 = arith.addf %61, %100 : vector<16x128xf32>
    %c0_46 = arith.constant 0 : index
    %c0_47 = arith.constant 0 : index
    %c0_48 = arith.constant 0 : index
    %102 = vector.load %arg14[%c0_46, %c0_47, %c0_48] : memref<1x16x128xf32, #tpu.memory_space<vmem>>, vector<1x16x128xf32>
    %103 = vector.shape_cast %102 : vector<1x16x128xf32> to vector<16x128xf32>
    %104 = vector.shape_cast %101 : vector<16x128xf32> to vector<1x16x128xf32>
    tpu.vector_store %arg14[%c0_46, %c0_47, %c0_48], %104 {strides = array<i32>} : memref<1x16x128xf32, #tpu.memory_space<vmem>>, vector<1x16x128xf32>,
    return
  }
  func.func @transform_0(%arg0: i32) -> (i32, i32, i32) {
    %c0_i32 = arith.constant 0 : i32
    %c0_i32_0 = arith.constant 0 : i32
    %c0_i32_1 = arith.constant 0 : i32
    return %arg0, %c0_i32, %c0_i32_0 : i32, i32, i32
  }
  func.func @transform_1(%arg0: i32) -> (i32, i32) {
    %c0_i32 = arith.constant 0 : i32
    %c0_i32_0 = arith.constant 0 : i32
    %c0_i32_1 = arith.constant 0 : i32
    return %c0_i32, %c0_i32_0 : i32, i32
  }
  func.func @transform_2(%arg0: i32) -> (i32, i32) {
    %c0_i32 = arith.constant 0 : i32
    %c0_i32_0 = arith.constant 0 : i32
    %c0_i32_1 = arith.constant 0 : i32
    return %c0_i32, %c0_i32_0 : i32, i32
  }
  func.func @transform_3(%arg0: i32) -> (i32, i32) {
    %c0_i32 = arith.constant 0 : i32
    %c0_i32_0 = arith.constant 0 : i32
    %c0_i32_1 = arith.constant 0 : i32
    return %c0_i32, %c0_i32_0 : i32, i32
  }
  func.func @transform_4(%arg0: i32) -> (i32, i32) {
    %c0_i32 = arith.constant 0 : i32
    %c0_i32_0 = arith.constant 0 : i32
    %c0_i32_1 = arith.constant 0 : i32
    return %c0_i32, %c0_i32_0 : i32, i32
  }
  func.func @transform_5(%arg0: i32) -> (i32, i32) {
    %c0_i32 = arith.constant 0 : i32
    %c0_i32_0 = arith.constant 0 : i32
    %c0_i32_1 = arith.constant 0 : i32
    return %c0_i32, %c0_i32_0 : i32, i32
  }
  func.func @transform_6(%arg0: i32) -> (i32, i32) {
    %c0_i32 = arith.constant 0 : i32
    %c0_i32_0 = arith.constant 0 : i32
    %c0_i32_1 = arith.constant 0 : i32
    return %c0_i32, %c0_i32_0 : i32, i32
  }
  func.func @transform_7(%arg0: i32) -> (i32, i32) {
    %c0_i32 = arith.constant 0 : i32
    %c0_i32_0 = arith.constant 0 : i32
    %c0_i32_1 = arith.constant 0 : i32
    return %c0_i32, %c0_i32_0 : i32, i32
  }
  func.func @transform_8(%arg0: i32) -> (i32, i32) {
    %c0_i32 = arith.constant 0 : i32
    %c0_i32_0 = arith.constant 0 : i32
    %c0_i32_1 = arith.constant 0 : i32
    return %c0_i32, %c0_i32_0 : i32, i32
  }
  func.func @transform_9(%arg0: i32) -> (i32, i32) {
    %c0_i32 = arith.constant 0 : i32
    %c0_i32_0 = arith.constant 0 : i32
    %c0_i32_1 = arith.constant 0 : i32
    return %c0_i32, %c0_i32_0 : i32, i32
  }
  func.func @transform_10(%arg0: i32) -> (i32, i32) {
    %c0_i32 = arith.constant 0 : i32
    %c0_i32_0 = arith.constant 0 : i32
    %c0_i32_1 = arith.constant 0 : i32
    return %c0_i32, %c0_i32_0 : i32, i32
  }
  func.func @transform_11(%arg0: i32) -> (i32, i32) {
    %c0_i32 = arith.constant 0 : i32
    %c0_i32_0 = arith.constant 0 : i32
    %c0_i32_1 = arith.constant 0 : i32
    return %c0_i32, %c0_i32_0 : i32, i32
  }
  func.func @transform_12(%arg0: i32) -> (i32, i32) {
    %c0_i32 = arith.constant 0 : i32
    %c0_i32_0 = arith.constant 0 : i32
    %c0_i32_1 = arith.constant 0 : i32
    return %c0_i32, %c0_i32_0 : i32, i32
  }
  func.func @transform_13(%arg0: i32) -> (i32, i32, i32) {
    %c0_i32 = arith.constant 0 : i32
    %c0_i32_0 = arith.constant 0 : i32
    %c0_i32_1 = arith.constant 0 : i32
    return %arg0, %c0_i32, %c0_i32_0 : i32, i32, i32
  }
}

</mosaic_0001>

<llo_original>
// kernel: tpu_custom_call.1
$region0: #{tpu_custom_call.1}
  #allocation0 [shape = 'u32[]', space=smem, size = 0x4, offset = 0x4, fixed_abs, tag = 'smem constant byte address 0x4 - core index']
  #allocation1 [shape = 'u32[144,128]{1,0:T(1,128)}', space=vmem, size = 0x12000, scoped, tag = 'internal scratch']
  %s0 = inlined_call_operand.hbm [shape: f32[2,16,128], index: 0, kind: input, shape index: {}]
  %s1 = inlined_call_operand.hbm [shape: f32[1,128], index: 1, kind: input, shape index: {}]
  %s2 = inlined_call_operand.hbm [shape: f32[1,128], index: 2, kind: input, shape index: {}]
  %s3 = inlined_call_operand.hbm [shape: f32[128,384], index: 3, kind: input, shape index: {}]
  %s4 = inlined_call_operand.vmem [shape: f32[1,384], index: 4, kind: input, shape index: {}]
  %s5 = inlined_call_operand.hbm [shape: f32[128,128], index: 5, kind: input, shape index: {}]
  %s6 = inlined_call_operand.vmem [shape: f32[1,128], index: 6, kind: input, shape index: {}]
  %s7 = inlined_call_operand.vmem [shape: f32[1,128], index: 7, kind: input, shape index: {}]
  %s8 = inlined_call_operand.vmem [shape: f32[1,128], index: 8, kind: input, shape index: {}]
  %s9 = inlined_call_operand.hbm [shape: f32[128,512], index: 9, kind: input, shape index: {}]
  %s10 = inlined_call_operand.vmem [shape: f32[1,512], index: 10, kind: input, shape index: {}]
  %s11 = inlined_call_operand.hbm [shape: f32[512,128], index: 11, kind: input, shape index: {}]
  %s12 = inlined_call_operand.vmem [shape: f32[1,128], index: 12, kind: input, shape index: {}]
  %s13 = inlined_call_operand.hbm [shape: f32[2,16,128], index: 13, kind: output, shape index: {}]
  %s14 = sld [smem:[#allocation0]]
  $region113: #{tpu_custom_call.1} parent=0
    _
  %s16 = ssub.s32 1, %s14
  %s17 = scalar_select 0, %s16, %s14
  $region1: #{tpu_custom_call.1} parent=0
    #allocation2 [shape = 'u8[16384]{0}', space=vmem, size = 0x4000, scoped, tag = 'input window, operand 0']
    #allocation3 [shape = 's32[2]{0}', space=sflag, size = 0x8, scoped, tag = 'scoped memory for tpu_custom_call.1']
    #allocation4 [shape = 's32[2]{0}', space=sflag, size = 0x8, scoped, tag = 'scoped memory for tpu_custom_call.1']
    #allocation5 [shape = 'u8[512]{0}', space=vmem, size = 0x400, scoped, tag = 'input window, operand 1, single buffered']
    #allocation6 [shape = 's32[1]{0}', space=sflag, size = 0x4, scoped, tag = 'scoped memory for tpu_custom_call.1']
    #allocation7 [shape = 'u8[512]{0}', space=vmem, size = 0x400, scoped, tag = 'input window, operand 2, single buffered']
    #allocation8 [shape = 'u8[196608]{0}', space=vmem, size = 0x30000, scoped, tag = 'input window, operand 3, single buffered']
    #allocation9 [shape = 's32[1]{0}', space=sflag, size = 0x4, scoped, tag = 'scoped memory for tpu_custom_call.1']
    #allocation10 [shape = 'u8[65536]{0}', space=vmem, size = 0x10000, scoped, tag = 'input window, operand 5, single buffered']
    #allocation11 [shape = 'u8[262144]{0}', space=vmem, size = 0x40000, scoped, tag = 'input window, operand 9, single buffered']
    #allocation12 [shape = 's32[1]{0}', space=sflag, size = 0x4, scoped, tag = 'scoped memory for tpu_custom_call.1']
    #allocation13 [shape = 'u8[262144]{0}', space=vmem, size = 0x40000, scoped, tag = 'input window, operand 11, single buffered']
    #allocation14 [shape = 'u8[16384]{0}', space=vmem, size = 0x4000, scoped, tag = 'output window, operand 0']
    %18 = vsyncpa [#allocation3], 0
    %s19 = scalar_lea.sflag [#allocation3], 1
    %20 = vsyncpa %s19, 0
    %21 = vsyncpa [#allocation6], 0
    %22 = vsyncpa [#allocation9], 0
    %23 = vsyncpa [#allocation12], 0
    %24 = vsyncpa [#allocation4], 0
    %s25 = scalar_lea.sflag [#allocation4], 1
    %26 = vsyncpa %s25, 0
    loop: start=0, step=1, limit=4
    $region2: #{tpu_custom_call.1} parent=1 // loop_pre_header
      _
    $region3: #{tpu_custom_call.1} parent=1 // loop_header
      %s28 = sphi 0, %s32
      %p29 = scmp.ge.s32.totalorder %s28, 4
      %s38 = sphi 0, %s40
      %s41 = sphi 0, %s38
      %s42 = sphi 0, %s41
      %s58 = sphi 0, %s42
      %s62 = sphi 0, %s62
      %s64 = sphi 0, %s62
      %s65 = sphi 0, %s64
      %s79 = sphi 0, %s65
      %s83 = sphi 0, %s83
      %s85 = sphi 0, %s83
      %s86 = sphi 0, %s85
      %s100 = sphi 0, %s86
      %s104 = sphi 0, %s104
      %s106 = sphi 0, %s104
      %s107 = sphi 0, %s106
      %s121 = sphi 0, %s107
      %s125 = sphi 0, %s125
      %s127 = sphi 0, %s125
      %s128 = sphi 0, %s127
      %s142 = sphi 0, %s128
      %s146 = sphi 0, %s146
      %s148 = sphi 0, %s146
      %s149 = sphi 0, %s148
      %s163 = sphi 0, %s149
      %s167 = sphi 0, %s167
      %s169 = sphi 0, %s167
      %s170 = sphi 0, %s169
      %s184 = sphi 0, %s170
      %s188 = sphi 0, %s188
      %s190 = sphi 0, %s188
      %s191 = sphi 0, %s190
      %s205 = sphi 0, %s191
      %s209 = sphi 0, %s209
      %s211 = sphi 0, %s209
      %s212 = sphi 0, %s211
      %s226 = sphi 0, %s212
      %s230 = sphi 0, %s230
      %s232 = sphi 0, %s230
      %s233 = sphi 0, %s232
      %s247 = sphi 0, %s233
      %s251 = sphi 0, %s251
      %s253 = sphi 0, %s251
      %s254 = sphi 0, %s253
      %s268 = sphi 0, %s254
      %s272 = sphi 0, %s272
      %s274 = sphi 0, %s272
      %s275 = sphi 0, %s274
      %s289 = sphi 0, %s275
      %s293 = sphi 0, %s293
      %s295 = sphi 0, %s293
      %s296 = sphi 0, %s295
      %s310 = sphi 0, %s296
      %s316 = sphi 0, %s318
      %s319 = sphi 0, %s316
      %s320 = sphi 0, %s319
      %s336 = sphi 0, %s320
    $region4: #{tpu_custom_call.1} parent=1 // loop_header_branch
      %31 = sbr.rel (%p29) target = $region8
    $region5: #{tpu_custom_call.1} parent=1 // loop_body
      %s33 = ssub.s32 %s28, 1
      %s34 = ssub.s32 %s28, 2
      %s35 = sadd.s32 %s28, 1
      %s36 = ssub.s32 %s28, %s35
      %p37 = scmp.eq.s32.totalorder %s36, 0
      %s39 = sadd.s32 %s38, 1
      %s40 = scalar_select %p37, %s38, %s39
      %p43 = pneg %p37
      %p44 = scmp.eq.s32.totalorder %s28, 1
      %p45 = por %p43, %p44
      %p46 = scmp.ne.s32.totalorder %s38, %s41
      %p47 = scmp.eq.s32.totalorder %s28, 0
      %p48 = por %p46, %p47
      %p49 = scmp.ne.s32.totalorder %s38, %s41
      %p50 = scmp.eq.s32.totalorder %s33, 1
      %p51 = por %p49, %p50
      %p52 = scmp.ne.s32.totalorder %s41, %s42
      %p53 = scmp.eq.s32.totalorder %s33, 0
      %p54 = por %p52, %p53
      %p55 = scmp.ne.s32.totalorder %s41, %s42
      %p56 = scmp.eq.s32.totalorder %s34, 1
      %p57 = por %p55, %p56
      %p59 = scmp.ne.s32.totalorder %s42, %s58
      %p60 = scmp.eq.s32.totalorder %s34, 0
      %p61 = por %p59, %p60
      %s63 = sadd.s32 %s62, 1
      %p66 = scmp.eq.s32.totalorder %s28, 1
      %p67 = scmp.ne.s32.totalorder %s62, %s64
      %p68 = scmp.eq.s32.totalorder %s28, 0
      %p69 = por %p67, %p68
      %p70 = scmp.ne.s32.totalorder %s62, %s64
      %p71 = scmp.eq.s32.totalorder %s33, 1
      %p72 = por %p70, %p71
      %p73 = scmp.ne.s32.totalorder %s64, %s65
      %p74 = scmp.eq.s32.totalorder %s33, 0
      %p75 = por %p73, %p74
      %p76 = scmp.ne.s32.totalorder %s64, %s65
      %p77 = scmp.eq.s32.totalorder %s34, 1
      %p78 = por %p76, %p77
      %p80 = scmp.ne.s32.totalorder %s65, %s79
      %p81 = scmp.eq.s32.totalorder %s34, 0
      %p82 = por %p80, %p81
      %s84 = sadd.s32 %s83, 1
      %p87 = scmp.eq.s32.totalorder %s28, 1
      %p88 = scmp.ne.s32.totalorder %s83, %s85
      %p89 = scmp.eq.s32.totalorder %s28, 0
      %p90 = por %p88, %p89
      %p91 = scmp.ne.s32.totalorder %s83, %s85
      %p92 = scmp.eq.s32.totalorder %s33, 1
      %p93 = por %p91, %p92
      %p94 = scmp.ne.s32.totalorder %s85, %s86
      %p95 = scmp.eq.s32.totalorder %s33, 0
      %p96 = por %p94, %p95
      %p97 = scmp.ne.s32.totalorder %s85, %s86
      %p98 = scmp.eq.s32.totalorder %s34, 1
      %p99 = por %p97, %p98
      %p101 = scmp.ne.s32.totalorder %s86, %s100
      %p102 = scmp.eq.s32.totalorder %s34, 0
      %p103 = por %p101, %p102
      %s105 = sadd.s32 %s104, 1
      %p108 = scmp.eq.s32.totalorder %s28, 1
      %p109 = scmp.ne.s32.totalorder %s104, %s106
      %p110 = scmp.eq.s32.totalorder %s28, 0
      %p111 = por %p109, %p110
      %p112 = scmp.ne.s32.totalorder %s104, %s106
      %p113 = scmp.eq.s32.totalorder %s33, 1
      %p114 = por %p112, %p113
      %p115 = scmp.ne.s32.totalorder %s106, %s107
      %p116 = scmp.eq.s32.totalorder %s33, 0
      %p117 = por %p115, %p116
      %p118 = scmp.ne.s32.totalorder %s106, %s107
      %p119 = scmp.eq.s32.totalorder %s34, 1
      %p120 = por %p118, %p119
      %p122 = scmp.ne.s32.totalorder %s107, %s121
      %p123 = scmp.eq.s32.totalorder %s34, 0
      %p124 = por %p122, %p123
      %s126 = sadd.s32 %s125, 1
      %p129 = scmp.eq.s32.totalorder %s28, 1
      %p130 = scmp.ne.s32.totalorder %s125, %s127
      %p131 = scmp.eq.s32.totalorder %s28, 0
      %p132 = por %p130, %p131
      %p133 = scmp.ne.s32.totalorder %s125, %s127
      %p134 = scmp.eq.s32.totalorder %s33, 1
      %p135 = por %p133, %p134
      %p136 = scmp.ne.s32.totalorder %s127, %s128
      %p137 = scmp.eq.s32.totalorder %s33, 0
      %p138 = por %p136, %p137
      %p139 = scmp.ne.s32.totalorder %s127, %s128
      %p140 = scmp.eq.s32.totalorder %s34, 1
      %p141 = por %p139, %p140
      %p143 = scmp.ne.s32.totalorder %s128, %s142
      %p144 = scmp.eq.s32.totalorder %s34, 0
      %p145 = por %p143, %p144
      %s147 = sadd.s32 %s146, 1
      %p150 = scmp.eq.s32.totalorder %s28, 1
      %p151 = scmp.ne.s32.totalorder %s146, %s148
      %p152 = scmp.eq.s32.totalorder %s28, 0
      %p153 = por %p151, %p152
      %p154 = scmp.ne.s32.totalorder %s146, %s148
      %p155 = scmp.eq.s32.totalorder %s33, 1
      %p156 = por %p154, %p155
      %p157 = scmp.ne.s32.totalorder %s148, %s149
      %p158 = scmp.eq.s32.totalorder %s33, 0
      %p159 = por %p157, %p158
      %p160 = scmp.ne.s32.totalorder %s148, %s149
      %p161 = scmp.eq.s32.totalorder %s34, 1
      %p162 = por %p160, %p161
      %p164 = scmp.ne.s32.totalorder %s149, %s163
      %p165 = scmp.eq.s32.totalorder %s34, 0
      %p166 = por %p164, %p165
      %s168 = sadd.s32 %s167, 1
      %p171 = scmp.eq.s32.totalorder %s28, 1
      %p172 = scmp.ne.s32.totalorder %s167, %s169
      %p173 = scmp.eq.s32.totalorder %s28, 0
      %p174 = por %p172, %p173
      %p175 = scmp.ne.s32.totalorder %s167, %s169
      %p176 = scmp.eq.s32.totalorder %s33, 1
      %p177 = por %p175, %p176
      %p178 = scmp.ne.s32.totalorder %s169, %s170
      %p179 = scmp.eq.s32.totalorder %s33, 0
      %p180 = por %p178, %p179
      %p181 = scmp.ne.s32.totalorder %s169, %s170
      %p182 = scmp.eq.s32.totalorder %s34, 1
      %p183 = por %p181, %p182
      %p185 = scmp.ne.s32.totalorder %s170, %s184
      %p186 = scmp.eq.s32.totalorder %s34, 0
      %p187 = por %p185, %p186
      %s189 = sadd.s32 %s188, 1
      %p192 = scmp.eq.s32.totalorder %s28, 1
      %p193 = scmp.ne.s32.totalorder %s188, %s190
      %p194 = scmp.eq.s32.totalorder %s28, 0
      %p195 = por %p193, %p194
      %p196 = scmp.ne.s32.totalorder %s188, %s190
      %p197 = scmp.eq.s32.totalorder %s33, 1
      %p198 = por %p196, %p197
      %p199 = scmp.ne.s32.totalorder %s190, %s191
      %p200 = scmp.eq.s32.totalorder %s33, 0
      %p201 = por %p199, %p200
      %p202 = scmp.ne.s32.totalorder %s190, %s191
      %p203 = scmp.eq.s32.totalorder %s34, 1
      %p204 = por %p202, %p203
      %p206 = scmp.ne.s32.totalorder %s191, %s205
      %p207 = scmp.eq.s32.totalorder %s34, 0
      %p208 = por %p206, %p207
      %s210 = sadd.s32 %s209, 1
      %p213 = scmp.eq.s32.totalorder %s28, 1
      %p214 = scmp.ne.s32.totalorder %s209, %s211
      %p215 = scmp.eq.s32.totalorder %s28, 0
      %p216 = por %p214, %p215
      %p217 = scmp.ne.s32.totalorder %s209, %s211
      %p218 = scmp.eq.s32.totalorder %s33, 1
      %p219 = por %p217, %p218
      %p220 = scmp.ne.s32.totalorder %s211, %s212
      %p221 = scmp.eq.s32.totalorder %s33, 0
      %p222 = por %p220, %p221
      %p223 = scmp.ne.s32.totalorder %s211, %s212
      %p224 = scmp.eq.s32.totalorder %s34, 1
      %p225 = por %p223, %p224
      %p227 = scmp.ne.s32.totalorder %s212, %s226
      %p228 = scmp.eq.s32.totalorder %s34, 0
      %p229 = por %p227, %p228
      %s231 = sadd.s32 %s230, 1
      %p234 = scmp.eq.s32.totalorder %s28, 1
      %p235 = scmp.ne.s32.totalorder %s230, %s232
      %p236 = scmp.eq.s32.totalorder %s28, 0
      %p237 = por %p235, %p236
      %p238 = scmp.ne.s32.totalorder %s230, %s232
      %p239 = scmp.eq.s32.totalorder %s33, 1
      %p240 = por %p238, %p239
      %p241 = scmp.ne.s32.totalorder %s232, %s233
      %p242 = scmp.eq.s32.totalorder %s33, 0
      %p243 = por %p241, %p242
      %p244 = scmp.ne.s32.totalorder %s232, %s233
      %p245 = scmp.eq.s32.totalorder %s34, 1
      %p246 = por %p244, %p245
      %p248 = scmp.ne.s32.totalorder %s233, %s247
      %p249 = scmp.eq.s32.totalorder %s34, 0
      %p250 = por %p248, %p249
      %s252 = sadd.s32 %s251, 1
      %p255 = scmp.eq.s32.totalorder %s28, 1
      %p256 = scmp.ne.s32.totalorder %s251, %s253
      %p257 = scmp.eq.s32.totalorder %s28, 0
      %p258 = por %p256, %p257
      %p259 = scmp.ne.s32.totalorder %s251, %s253
      %p260 = scmp.eq.s32.totalorder %s33, 1
      %p261 = por %p259, %p260
      %p262 = scmp.ne.s32.totalorder %s253, %s254
      %p263 = scmp.eq.s32.totalorder %s33, 0
      %p264 = por %p262, %p263
      %p265 = scmp.ne.s32.totalorder %s253, %s254
      %p266 = scmp.eq.s32.totalorder %s34, 1
      %p267 = por %p265, %p266
      %p269 = scmp.ne.s32.totalorder %s254, %s268
      %p270 = scmp.eq.s32.totalorder %s34, 0
      %p271 = por %p269, %p270
      %s273 = sadd.s32 %s272, 1
      %p276 = scmp.eq.s32.totalorder %s28, 1
      %p277 = scmp.ne.s32.totalorder %s272, %s274
      %p278 = scmp.eq.s32.totalorder %s28, 0
      %p279 = por %p277, %p278
      %p280 = scmp.ne.s32.totalorder %s272, %s274
      %p281 = scmp.eq.s32.totalorder %s33, 1
      %p282 = por %p280, %p281
      %p283 = scmp.ne.s32.totalorder %s274, %s275
      %p284 = scmp.eq.s32.totalorder %s33, 0
      %p285 = por %p283, %p284
      %p286 = scmp.ne.s32.totalorder %s274, %s275
      %p287 = scmp.eq.s32.totalorder %s34, 1
      %p288 = por %p286, %p287
      %p290 = scmp.ne.s32.totalorder %s275, %s289
      %p291 = scmp.eq.s32.totalorder %s34, 0
      %p292 = por %p290, %p291
      %s294 = sadd.s32 %s293, 1
      %p297 = scmp.eq.s32.totalorder %s28, 1
      %p298 = scmp.ne.s32.totalorder %s293, %s295
      %p299 = scmp.eq.s32.totalorder %s28, 0
      %p300 = por %p298, %p299
      %p301 = scmp.ne.s32.totalorder %s293, %s295
      %p302 = scmp.eq.s32.totalorder %s33, 1
      %p303 = por %p301, %p302
      %p304 = scmp.ne.s32.totalorder %s295, %s296
      %p305 = scmp.eq.s32.totalorder %s33, 0
      %p306 = por %p304, %p305
      %p307 = scmp.ne.s32.totalorder %s295, %s296
      %p308 = scmp.eq.s32.totalorder %s34, 1
      %p309 = por %p307, %p308
      %p311 = scmp.ne.s32.totalorder %s296, %s310
      %p312 = scmp.eq.s32.totalorder %s34, 0
      %p313 = por %p311, %p312
      %s314 = ssub.s32 %s28, %s35
      %p315 = scmp.eq.s32.totalorder %s314, 0
      %s317 = sadd.s32 %s316, 1
      %s318 = scalar_select %p315, %s316, %s317
      %p321 = pneg %p315
      %p322 = scmp.eq.s32.totalorder %s28, 1
      %p323 = por %p321, %p322
      %p324 = scmp.ne.s32.totalorder %s316, %s319
      %p325 = scmp.eq.s32.totalorder %s28, 0
      %p326 = por %p324, %p325
      %p327 = scmp.ne.s32.totalorder %s316, %s319
      %p328 = scmp.eq.s32.totalorder %s33, 1
      %p329 = por %p327, %p328
      %p330 = scmp.ne.s32.totalorder %s319, %s320
      %p331 = scmp.eq.s32.totalorder %s33, 0
      %p332 = por %p330, %p331
      %p333 = scmp.ne.s32.totalorder %s319, %s320
      %p334 = scmp.eq.s32.totalorder %s34, 1
      %p335 = por %p333, %p334
      %p337 = scmp.ne.s32.totalorder %s320, %s336
      %p338 = scmp.eq.s32.totalorder %s34, 0
      %p339 = por %p337, %p338
      %p340 = scmp.le.s32.totalorder 1, %s28
      %p341 = scmp.lt.s32.totalorder %s28, 3
      %p342 = pnand %p340, %p341
      %p343 = pneg %p342
      // Predicated region
      $region9: #{tpu_custom_call.1} parent=5 // pred_check
        _
      $region10: #{tpu_custom_call.1} parent=5 // pred_check_branch
        %345 = sbr.rel (%p342) target = $region12
      $region11: #{tpu_custom_call.1} parent=5 // pred_region
        %s346 = ssub.s32 %s28, 1
        // Predicated region
        $region13: #{tpu_custom_call.1} parent=11 // pred_check
          %p347 = pneg %p75
        $region14: #{tpu_custom_call.1} parent=11 // pred_check_branch
          %349 = sbr.rel (%p347) target = $region16
        $region15: #{tpu_custom_call.1} parent=11 // pred_region
          %s351 = ssub.s32 16, 16
          %352 = vsyncadd [#allocation6], %s351
          %s354 = sshll.u32 [#allocation5], 4
          %s355 = int_to_ptr.vmem [resolvable:$true] %s354
          %357 = dma.hbm_to_vmem [thread:$0]  %s1, 16, %s355, [#allocation6]
        $region16: #{tpu_custom_call.1} parent=11 // pred_fallthru
          _
        // Predicated region
        $region17: #{tpu_custom_call.1} parent=11 // pred_check
          %p358 = pneg %p96
        $region18: #{tpu_custom_call.1} parent=11 // pred_check_branch
          %360 = sbr.rel (%p358) target = $region20
        $region19: #{tpu_custom_call.1} parent=11 // pred_region
          %s362 = ssub.s32 16, 16
          %363 = vsyncadd [#allocation6], %s362
          %s365 = sshll.u32 [#allocation7], 4
          %s366 = int_to_ptr.vmem [resolvable:$true] %s365
          %368 = dma.hbm_to_vmem [thread:$0]  %s2, 16, %s366, [#allocation6]
        $region20: #{tpu_custom_call.1} parent=11 // pred_fallthru
          _
        // Predicated region
        $region21: #{tpu_custom_call.1} parent=11 // pred_check
          %p369 = pneg %p117
        $region22: #{tpu_custom_call.1} parent=11 // pred_check_branch
          %371 = sbr.rel (%p369) target = $region24
        $region23: #{tpu_custom_call.1} parent=11 // pred_region
          %s373 = ssub.s32 6144, 6144
          %374 = vsyncadd [#allocation9], %s373
          %s375 = sshll.u32 [#allocation8], 4
          %s376 = int_to_ptr.vmem [resolvable:$true] %s375
          %381 = dma.hbm_to_vmem [thread:$0]  %s3, 6144, %s376, [#allocation9], 384, 384, 24
        $region24: #{tpu_custom_call.1} parent=11 // pred_fallthru
          _
        // Predicated region
        $region25: #{tpu_custom_call.1} parent=11 // pred_check
          %p382 = pneg %p138
        $region26: #{tpu_custom_call.1} parent=11 // pred_check_branch
          %384 = sbr.rel (%p382) target = $region28
        $region27: #{tpu_custom_call.1} parent=11 // pred_region
          _
        $region28: #{tpu_custom_call.1} parent=11 // pred_fallthru
          _
        // Predicated region
        $region29: #{tpu_custom_call.1} parent=11 // pred_check
          %p385 = pneg %p159
        $region30: #{tpu_custom_call.1} parent=11 // pred_check_branch
          %387 = sbr.rel (%p385) target = $region32
        $region31: #{tpu_custom_call.1} parent=11 // pred_region
          %s389 = ssub.s32 2048, 2048
          %390 = vsyncadd [#allocation9], %s389
          %s391 = sshll.u32 [#allocation10], 4
          %s392 = int_to_ptr.vmem [resolvable:$true] %s391
          %397 = dma.hbm_to_vmem [thread:$0]  %s5, 2048, %s392, [#allocation9], 128, 128, 8
        $region32: #{tpu_custom_call.1} parent=11 // pred_fallthru
          _
        // Predicated region
        $region33: #{tpu_custom_call.1} parent=11 // pred_check
          %p398 = pneg %p180
        $region34: #{tpu_custom_call.1} parent=11 // pred_check_branch
          %400 = sbr.rel (%p398) target = $region36
        $region35: #{tpu_custom_call.1} parent=11 // pred_region
          _
        $region36: #{tpu_custom_call.1} parent=11 // pred_fallthru
          _
        // Predicated region
        $region37: #{tpu_custom_call.1} parent=11 // pred_check
          %p401 = pneg %p201
        $region38: #{tpu_custom_call.1} parent=11 // pred_check_branch
          %403 = sbr.rel (%p401) target = $region40
        $region39: #{tpu_custom_call.1} parent=11 // pred_region
          _
        $region40: #{tpu_custom_call.1} parent=11 // pred_fallthru
          _
        // Predicated region
        $region41: #{tpu_custom_call.1} parent=11 // pred_check
          %p404 = pneg %p222
        $region42: #{tpu_custom_call.1} parent=11 // pred_check_branch
          %406 = sbr.rel (%p404) target = $region44
        $region43: #{tpu_custom_call.1} parent=11 // pred_region
          _
        $region44: #{tpu_custom_call.1} parent=11 // pred_fallthru
          _
        // Predicated region
        $region45: #{tpu_custom_call.1} parent=11 // pred_check
          %p407 = pneg %p243
        $region46: #{tpu_custom_call.1} parent=11 // pred_check_branch
          %409 = sbr.rel (%p407) target = $region48
        $region47: #{tpu_custom_call.1} parent=11 // pred_region
          %s411 = ssub.s32 8192, 8192
          %412 = vsyncadd [#allocation12], %s411
          %s413 = sshll.u32 [#allocation11], 4
          %s414 = int_to_ptr.vmem [resolvable:$true] %s413
          %419 = dma.hbm_to_vmem [thread:$0]  %s9, 8192, %s414, [#allocation12], 512, 512, 32
        $region48: #{tpu_custom_call.1} parent=11 // pred_fallthru
          _
        // Predicated region
        $region49: #{tpu_custom_call.1} parent=11 // pred_check
          %p420 = pneg %p264
        $region50: #{tpu_custom_call.1} parent=11 // pred_check_branch
          %422 = sbr.rel (%p420) target = $region52
        $region51: #{tpu_custom_call.1} parent=11 // pred_region
          _
        $region52: #{tpu_custom_call.1} parent=11 // pred_fallthru
          _
        // Predicated region
        $region53: #{tpu_custom_call.1} parent=11 // pred_check
          %p423 = pneg %p285
        $region54: #{tpu_custom_call.1} parent=11 // pred_check_branch
          %425 = sbr.rel (%p423) target = $region56
        $region55: #{tpu_custom_call.1} parent=11 // pred_region
          %s427 = ssub.s32 8192, 8192
          %428 = vsyncadd [#allocation12], %s427
          %s429 = sshll.u32 [#allocation13], 4
          %s430 = int_to_ptr.vmem [resolvable:$true] %s429
          %435 = dma.hbm_to_vmem [thread:$0]  %s11, 8192, %s430, [#allocation12], 128, 128, 8
        $region56: #{tpu_custom_call.1} parent=11 // pred_fallthru
          _
        // Predicated region
        $region57: #{tpu_custom_call.1} parent=11 // pred_check
          %p436 = pneg %p306
        $region58: #{tpu_custom_call.1} parent=11 // pred_check_branch
          %438 = sbr.rel (%p436) target = $region60
        $region59: #{tpu_custom_call.1} parent=11 // pred_region
          _
        $region60: #{tpu_custom_call.1} parent=11 // pred_fallthru
          _
      $region12: #{tpu_custom_call.1} parent=5 // pred_fallthru
        _
      %p439 = scmp.lt.s32.totalorder %s28, 2
      // Predicated region
      $region61: #{tpu_custom_call.1} parent=5 // pred_check
        %p440 = pneg %p439
      $region62: #{tpu_custom_call.1} parent=5 // pred_check_branch
        %442 = sbr.rel (%p440) target = $region64
      $region63: #{tpu_custom_call.1} parent=5 // pred_region
        // Predicated region
        $region65: #{tpu_custom_call.1} parent=63 // pred_check
          %p443 = pneg %p48
        $region66: #{tpu_custom_call.1} parent=63 // pred_check_branch
          %445 = sbr.rel (%p443) target = $region68
        $region67: #{tpu_custom_call.1} parent=63 // pred_region
          %s446 = sand.u32 %s38, 1
          %s447 = scalar_lea.sflag [#allocation3], %s446
          %s448 = sand.u32 %s38, 1
          %s449 = smul.addr %s448, 16
          %s450 = scalar_lea.vmem [#allocation2], %s449
          %s452 = ssub.s32 256, 256
          %453 = vsyncadd %s447, %s452
          %s454 = smul.addr %s28, 2
          %s455 = smul.addr %s454, 128
          %s456 = scalar_lea.hbm %s0, %s455
          %s457 = sshll.u32 %s450, 4
          %s458 = int_to_ptr.vmem [resolvable:$true] %s457
          %463 = dma.hbm_to_vmem [thread:$0]  %s456, 256, %s458, %s447, 128, 128, 8
        $region68: #{tpu_custom_call.1} parent=63 // pred_fallthru
          _
      $region64: #{tpu_custom_call.1} parent=5 // pred_fallthru
        _
      %p464 = scmp.le.s32.totalorder 1, %s28
      %p465 = scmp.lt.s32.totalorder %s28, 3
      %p466 = pnand %p464, %p465
      %p467 = pneg %p466
      // Predicated region
      $region69: #{tpu_custom_call.1} parent=5 // pred_check
        _
      $region70: #{tpu_custom_call.1} parent=5 // pred_check_branch
        %469 = sbr.rel (%p466) target = $region72
      $region71: #{tpu_custom_call.1} parent=5 // pred_region
        %s470 = ssub.s32 %s28, 1
        %s471 = sand.u32 %s41, 1
        %s472 = scalar_lea.sflag [#allocation3], %s471
        %s473 = sand.u32 %s41, 1
        %s474 = smul.addr %s473, 16
        %s475 = scalar_lea.vmem [#allocation2], %s474
        // Predicated region
        $region73: #{tpu_custom_call.1} parent=71 // pred_check
          %p476 = pneg %p54
        $region74: #{tpu_custom_call.1} parent=71 // pred_check_branch
          %478 = sbr.rel (%p476) target = $region76
        $region75: #{tpu_custom_call.1} parent=71 // pred_region
          %479 = dma.done %s472, 256
        $region76: #{tpu_custom_call.1} parent=71 // pred_fallthru
          _
        // Predicated region
        $region77: #{tpu_custom_call.1} parent=71 // pred_check
          %p480 = pneg %p75
        $region78: #{tpu_custom_call.1} parent=71 // pred_check_branch
          %482 = sbr.rel (%p480) target = $region80
        $region79: #{tpu_custom_call.1} parent=71 // pred_region
          %483 = dma.done [#allocation6], 16
        $region80: #{tpu_custom_call.1} parent=71 // pred_fallthru
          _
        // Predicated region
        $region81: #{tpu_custom_call.1} parent=71 // pred_check
          %p484 = pneg %p96
        $region82: #{tpu_custom_call.1} parent=71 // pred_check_branch
          %486 = sbr.rel (%p484) target = $region84
        $region83: #{tpu_custom_call.1} parent=71 // pred_region
          %487 = dma.done [#allocation6], 16
        $region84: #{tpu_custom_call.1} parent=71 // pred_fallthru
          _
        // Predicated region
        $region85: #{tpu_custom_call.1} parent=71 // pred_check
          %p488 = pneg %p117
        $region86: #{tpu_custom_call.1} parent=71 // pred_check_branch
          %490 = sbr.rel (%p488) target = $region88
        $region87: #{tpu_custom_call.1} parent=71 // pred_region
          %491 = dma.done [#allocation9], 6144
        $region88: #{tpu_custom_call.1} parent=71 // pred_fallthru
          _
        // Predicated region
        $region89: #{tpu_custom_call.1} parent=71 // pred_check
          %p492 = pneg %p159
        $region90: #{tpu_custom_call.1} parent=71 // pred_check_branch
          %494 = sbr.rel (%p492) target = $region92
        $region91: #{tpu_custom_call.1} parent=71 // pred_region
          %495 = dma.done [#allocation9], 2048
        $region92: #{tpu_custom_call.1} parent=71 // pred_fallthru
          _
        // Predicated region
        $region93: #{tpu_custom_call.1} parent=71 // pred_check
          %p496 = pneg %p243
        $region94: #{tpu_custom_call.1} parent=71 // pred_check_branch
          %498 = sbr.rel (%p496) target = $region96
        $region95: #{tpu_custom_call.1} parent=71 // pred_region
          %499 = dma.done [#allocation12], 8192
        $region96: #{tpu_custom_call.1} parent=71 // pred_fallthru
          _
        // Predicated region
        $region97: #{tpu_custom_call.1} parent=71 // pred_check
          %p500 = pneg %p285
        $region98: #{tpu_custom_call.1} parent=71 // pred_check_branch
          %502 = sbr.rel (%p500) target = $region100
        $region99: #{tpu_custom_call.1} parent=71 // pred_region
          %503 = dma.done [#allocation12], 8192
        $region100: #{tpu_custom_call.1} parent=71 // pred_fallthru
          _
        %s504 = sand.u32 %s41, 1
        %s505 = scalar_lea.sflag [#allocation3], %s504
        %s506 = sand.u32 %s41, 1
        %s507 = smul.addr %s506, 16
        %s508 = scalar_lea.vmem [#allocation2], %s507
        %p509 = pneg %p54
        %p510 = pneg %p51
        %p511 = pneg %p75
        %p512 = pneg %p72
        %p513 = pneg %p96
        %p514 = pneg %p93
        %p515 = pneg %p117
        %p516 = pneg %p114
        %p517 = pneg %p138
        %p518 = pneg %p135
        %p519 = pneg %p159
        %p520 = pneg %p156
        %p521 = pneg %p180
        %p522 = pneg %p177
        %p523 = pneg %p201
        %p524 = pneg %p198
        %p525 = pneg %p222
        %p526 = pneg %p219
        %p527 = pneg %p243
        %p528 = pneg %p240
        %p529 = pneg %p264
        %p530 = pneg %p261
        %p531 = pneg %p285
        %p532 = pneg %p282
        %p533 = pneg %p306
        %p534 = pneg %p303
        %p535 = pneg %p332
        %p536 = pneg %p329
        %s537 = sand.u32 %s319, 1
        %s538 = scalar_lea.sflag [#allocation4], %s537
        %s539 = sand.u32 %s319, 1
        %s540 = smul.addr %s539, 16
        %s541 = scalar_lea.vmem [#allocation14], %s540
        %v542 = vld [vmem:[%s475] sm:$0xff]
        %v543 = vld [vmem:[%s475 + $0x8] sm:$0xff]
        %v544 = vld [vmem:[#allocation5] sm:$0x1]
        %v545 = vld [vmem:[#allocation7] sm:$0x1]
        %546 = vadd.xlane.f32.xlu0 %v542
        %v547 = vpop.xlane.xlu0 %546
        %548 = vadd.xlane.f32.xlu0 %v543
        %v549 = vpop.xlane.xlu0 %548
        %v550 = vrcp.pop 128.0
        %v551 = vmul.f32 %v547, %v550
        %v552 = vmul.f32 %v549, %v550
        %v553 = vsub.f32 %v542, %v551
        %v554 = vsub.f32 %v543, %v552
        %v555 = vmul.f32 %v553, %v553
        %v556 = vmul.f32 %v554, %v554
        %557 = vadd.xlane.f32.xlu0 %v555
        %v558 = vpop.xlane.xlu0 %557
        %559 = vadd.xlane.f32.xlu0 %v556
        %v560 = vpop.xlane.xlu0 %559
        %v561 = vmul.f32 %v558, %v550
        %v562 = vmul.f32 %v560, %v550
        %v563 = vadd.f32 %v561, 1e-06
        %v564 = vadd.f32 %v562, 1e-06
        %v565 = vrsqrt.pop %v563
        %v566 = vrsqrt.pop %v564
        %v567 = vmul.f32 %v553, %v565
        %v568 = vmul.f32 %v554, %v566
        %v570 = vlaneseq
        %v571 = vshrl.u32 %v570, 7
        %v572 = vsub.s32 0, %v571
        %v573 = vrot.slane %v544, %v572
        %v575 = vmul.f32 %v567, %v573
        %v576 = vmul.f32 %v568, %v573
        %v578 = vlaneseq
        %v579 = vshrl.u32 %v578, 7
        %v580 = vsub.s32 0, %v579
        %v581 = vrot.slane %v545, %v580
        %v583 = vadd.f32 %v575, %v581
        %v584 = vadd.f32 %v576, %v581
        %v585 = vld [vmem:[#allocation8] sm:$0xff]
        %v586 = vld [vmem:[#allocation8 + $0x8] sm:$0xff]
        %v587 = vld [vmem:[#allocation8 + $0x10] sm:$0xff]
        %v588 = vld [vmem:[#allocation8 + $0x18] sm:$0xff]
        %v589 = vld [vmem:[#allocation8 + $0x20] sm:$0xff]
        %v590 = vld [vmem:[#allocation8 + $0x28] sm:$0xff]
        %v591 = vld [vmem:[#allocation8 + $0x30] sm:$0xff]
        %v592 = vld [vmem:[#allocation8 + $0x38] sm:$0xff]
        %v593 = vld [vmem:[#allocation8 + $0x40] sm:$0xff]
        %v594 = vld [vmem:[#allocation8 + $0x48] sm:$0xff]
        %v595 = vld [vmem:[#allocation8 + $0x50] sm:$0xff]
        %v596 = vld [vmem:[#allocation8 + $0x58] sm:$0xff]
        %v597 = vld [vmem:[#allocation8 + $0x60] sm:$0xff]
        %v598 = vld [vmem:[#allocation8 + $0x68] sm:$0xff]
        %v599 = vld [vmem:[#allocation8 + $0x70] sm:$0xff]
        %v600 = vld [vmem:[#allocation8 + $0x78] sm:$0xff]
        %v601 = vld [vmem:[#allocation8 + $0x80] sm:$0xff]
        %v602 = vld [vmem:[#allocation8 + $0x88] sm:$0xff]
        %v603 = vld [vmem:[#allocation8 + $0x90] sm:$0xff]
        %v604 = vld [vmem:[#allocation8 + $0x98] sm:$0xff]
        %v605 = vld [vmem:[#allocation8 + $0xa0] sm:$0xff]
        %v606 = vld [vmem:[#allocation8 + $0xa8] sm:$0xff]
        %v607 = vld [vmem:[#allocation8 + $0xb0] sm:$0xff]
        %v608 = vld [vmem:[#allocation8 + $0xb8] sm:$0xff]
        %v609 = vld [vmem:[#allocation8 + $0xc0] sm:$0xff]
        %v610 = vld [vmem:[#allocation8 + $0xc8] sm:$0xff]
        %v611 = vld [vmem:[#allocation8 + $0xd0] sm:$0xff]
        %v612 = vld [vmem:[#allocation8 + $0xd8] sm:$0xff]
        %v613 = vld [vmem:[#allocation8 + $0xe0] sm:$0xff]
        %v614 = vld [vmem:[#allocation8 + $0xe8] sm:$0xff]
        %v615 = vld [vmem:[#allocation8 + $0xf0] sm:$0xff]
        %v616 = vld [vmem:[#allocation8 + $0xf8] sm:$0xff]
        %v617 = vld [vmem:[#allocation8 + $0x100] sm:$0xff]
        %v618 = vld [vmem:[#allocation8 + $0x108] sm:$0xff]
        %v619 = vld [vmem:[#allocation8 + $0x110] sm:$0xff]
        %v620 = vld [vmem:[#allocation8 + $0x118] sm:$0xff]
        %v621 = vld [vmem:[#allocation8 + $0x120] sm:$0xff]
        %v622 = vld [vmem:[#allocation8 + $0x128] sm:$0xff]
        %v623 = vld [vmem:[#allocation8 + $0x130] sm:$0xff]
        %v624 = vld [vmem:[#allocation8 + $0x138] sm:$0xff]
        %v625 = vld [vmem:[#allocation8 + $0x140] sm:$0xff]
        %v626 = vld [vmem:[#allocation8 + $0x148] sm:$0xff]
        %v627 = vld [vmem:[#allocation8 + $0x150] sm:$0xff]
        %v628 = vld [vmem:[#allocation8 + $0x158] sm:$0xff]
        %v629 = vld [vmem:[#allocation8 + $0x160] sm:$0xff]
        %v630 = vld [vmem:[#allocation8 + $0x168] sm:$0xff]
        %v631 = vld [vmem:[#allocation8 + $0x170] sm:$0xff]
        %v632 = vld [vmem:[#allocation8 + $0x178] sm:$0xff]
        %v633 = vld [vmem:[%s4] sm:$0x7]
        %v635 = vlaneseq
        %v636 = vshrl.u32 %v635, 7
        %v637 = vsub.s32 0, %v636
        %v638 = vrot.slane %v633, %v637
        %v639 = vlaneseq
        %v640 = vshrl.u32 %v639, 7
        %v641 = vsub.s32 1, %v640
        %v642 = vrot.slane %v633, %v641
        %v643 = vlaneseq
        %v644 = vshrl.u32 %v643, 7
        %v645 = vsub.s32 2, %v644
        %v646 = vrot.slane %v633, %v645
        %650 = vmatprep.subr.mxu0 %v631
        %651 = vmatpush1.msra.mxu0 %v630
        %652 = vmatprep.subr.mxu0 %v628
        %653 = vmatpush1.msra.mxu0 %v627
        %654 = vmatprep.subr.mxu0 %v625
        %655 = vmatpush1.msra.mxu0 %v624
        %656 = vmatprep.subr.mxu0 %v622
        %657 = vmatpush1.msra.mxu0 %v621
        %658 = vmatprep.subr.mxu0 %v619
        %659 = vmatpush1.msra.mxu0 %v618
        %660 = vmatprep.subr.mxu0 %v616
        %661 = vmatpush1.msra.mxu0 %v615
        %662 = vmatprep.subr.mxu0 %v613
        %663 = vmatpush1.msra.mxu0 %v612
        %664 = vmatprep.subr.mxu0 %v610
        %665 = vmatpush1.msra.mxu0 %v609
        %666 = vmatprep.subr.mxu0 %v607
        %667 = vmatpush1.msra.mxu0 %v606
        %668 = vmatprep.subr.mxu0 %v604
        %669 = vmatpush1.msra.mxu0 %v603
        %670 = vmatprep.subr.mxu0 %v601
        %671 = vmatpush1.msra.mxu0 %v600
        %672 = vmatprep.subr.mxu0 %v598
        %673 = vmatpush1.msra.mxu0 %v597
        %674 = vmatprep.subr.mxu0 %v595
        %675 = vmatpush1.msra.mxu0 %v594
        %676 = vmatprep.subr.mxu0 %v592
        %677 = vmatpush1.msra.mxu0 %v591
        %678 = vmatprep.subr.mxu0 %v589
        %679 = vmatpush1.msra.mxu0 %v588
        %680 = vmatprep.subr.mxu0 %v586
        %681 = vmatpush1.msra.mxu0 %v585
        %682 = vmatprep.subr.mxu0 0.0
        %683 = vmatpush2.msra.mxu0 0.0
        %684 = vmatprep.subr.mxu0 0.0
        %685 = vmatpush2.msra.mxu0 0.0
        %686 = vmatprep.subr.mxu0 0.0
        %687 = vmatpush2.msra.mxu0 0.0
        %688 = vmatprep.subr.mxu0 0.0
        %689 = vmatpush2.msra.mxu0 0.0
        %690 = vmatprep.subr.mxu0 0.0
        %691 = vmatpush2.msra.mxu0 0.0
        %692 = vmatprep.subr.mxu0 0.0
        %693 = vmatpush2.msra.mxu0 0.0
        %694 = vmatprep.subr.mxu0 0.0
        %695 = vmatpush2.msra.mxu0 0.0
        %696 = vmatprep.subr.mxu0 0.0
        %697 = vmatpush2.msra.mxu0 0.0
        %698 = vmatprep.subr.mxu0 0.0
        %699 = vmatpush2.msra.mxu0 0.0
        %700 = vmatprep.subr.mxu0 0.0
        %701 = vmatpush2.msra.mxu0 0.0
        %702 = vmatprep.subr.mxu0 0.0
        %703 = vmatpush2.msra.mxu0 0.0
        %704 = vmatprep.subr.mxu0 0.0
        %705 = vmatpush2.msra.mxu0 0.0
        %706 = vmatprep.subr.mxu0 0.0
        %707 = vmatpush2.msra.mxu0 0.0
        %708 = vmatprep.subr.mxu0 0.0
        %709 = vmatpush2.msra.mxu0 0.0
        %710 = vmatprep.subr.mxu0 0.0
        %711 = vmatpush2.msra.mxu0 0.0
        %712 = vmatprep.subr.mxu0 0.0
        %713 = vmatpush2.msra.mxu0 0.0
        %714 = vmatprep.mubr.f32.mxu0 0.0
        %715 = vmatmul.mubr.f32.gmra.mxu0 %v583
        %v716 = vpop.f32.mrf.mxu0
        %v717 = vadd.f32 %v638, %v716
        %v718 = vpop.f32.mrf.mxu0
        %v719 = vadd.f32 %v642, %v718
        %720 = vmatprep.mubr.f32.mxu0 0.0
        %721 = vmatmul.mubr.f32.gmra.mxu0 %v584
        %v722 = vpop.f32.mrf.mxu0
        %v723 = vadd.f32 %v638, %v722
        %v724 = vpop.f32.mrf.mxu0
        %v725 = vadd.f32 %v642, %v724
        %726 = vdwg.mxu0
        %727 = vmatprep.subr.mxu0 0.0
        %728 = vmatpush1.msra.mxu0 %v632
        %729 = vmatprep.subr.mxu0 0.0
        %730 = vmatpush1.msra.mxu0 %v629
        %731 = vmatprep.subr.mxu0 0.0
        %732 = vmatpush1.msra.mxu0 %v626
        %733 = vmatprep.subr.mxu0 0.0
        %734 = vmatpush1.msra.mxu0 %v623
        %735 = vmatprep.subr.mxu0 0.0
        %736 = vmatpush1.msra.mxu0 %v620
        %737 = vmatprep.subr.mxu0 0.0
        %738 = vmatpush1.msra.mxu0 %v617
        %739 = vmatprep.subr.mxu0 0.0
        %740 = vmatpush1.msra.mxu0 %v614
        %741 = vmatprep.subr.mxu0 0.0
        %742 = vmatpush1.msra.mxu0 %v611
        %743 = vmatprep.subr.mxu0 0.0
        %744 = vmatpush1.msra.mxu0 %v608
        %745 = vmatprep.subr.mxu0 0.0
        %746 = vmatpush1.msra.mxu0 %v605
        %747 = vmatprep.subr.mxu0 0.0
        %748 = vmatpush1.msra.mxu0 %v602
        %749 = vmatprep.subr.mxu0 0.0
        %750 = vmatpush1.msra.mxu0 %v599
        %751 = vmatprep.subr.mxu0 0.0
        %752 = vmatpush1.msra.mxu0 %v596
        %753 = vmatprep.subr.mxu0 0.0
        %754 = vmatpush1.msra.mxu0 %v593
        %755 = vmatprep.subr.mxu0 0.0
        %756 = vmatpush1.msra.mxu0 %v590
        %757 = vmatprep.subr.mxu0 0.0
        %758 = vmatpush1.msra.mxu0 %v587
        %759 = vmatprep.subr.mxu0 0.0
        %760 = vmatpush2.msra.mxu0 0.0
        %761 = vmatprep.subr.mxu0 0.0
        %762 = vmatpush2.msra.mxu0 0.0
        %763 = vmatprep.subr.mxu0 0.0
        %764 = vmatpush2.msra.mxu0 0.0
        %765 = vmatprep.subr.mxu0 0.0
        %766 = vmatpush2.msra.mxu0 0.0
        %767 = vmatprep.subr.mxu0 0.0
        %768 = vmatpush2.msra.mxu0 0.0
        %769 = vmatprep.subr.mxu0 0.0
        %770 = vmatpush2.msra.mxu0 0.0
        %771 = vmatprep.subr.mxu0 0.0
        %772 = vmatpush2.msra.mxu0 0.0
        %773 = vmatprep.subr.mxu0 0.0
        %774 = vmatpush2.msra.mxu0 0.0
        %775 = vmatprep.subr.mxu0 0.0
        %776 = vmatpush2.msra.mxu0 0.0
        %777 = vmatprep.subr.mxu0 0.0
        %778 = vmatpush2.msra.mxu0 0.0
        %779 = vmatprep.subr.mxu0 0.0
        %780 = vmatpush2.msra.mxu0 0.0
        %781 = vmatprep.subr.mxu0 0.0
        %782 = vmatpush2.msra.mxu0 0.0
        %783 = vmatprep.subr.mxu0 0.0
        %784 = vmatpush2.msra.mxu0 0.0
        %785 = vmatprep.subr.mxu0 0.0
        %786 = vmatpush2.msra.mxu0 0.0
        %787 = vmatprep.subr.mxu0 0.0
        %788 = vmatpush2.msra.mxu0 0.0
        %789 = vmatprep.subr.mxu0 0.0
        %790 = vmatpush2.msra.mxu0 0.0
        %791 = vmatprep.mubr.f32.mxu0 0.0
        %792 = vmatmul.mubr.f32.gmra.mxu0 %v583
        %v793 = vpop.f32.mrf.mxu0
        %v794 = vadd.f32 %v646, %v793
        %v795 = vpop.f32.mrf.mxu0
        %796 = vmatprep.mubr.f32.mxu0 0.0
        %797 = vmatmul.mubr.f32.gmra.mxu0 %v584
        %v798 = vpop.f32.mrf.mxu0
        %v799 = vadd.f32 %v646, %v798
        %v800 = vpop.f32.mrf.mxu0
        %801 = vdwg.mxu0
        %v802 = vmul.f32 %v717, 0.17677669
        %v803 = vmul.f32 %v723, 0.17677669
        %806 = vrot.lane.b32.xlu0 %v802, 96
        %v807 = vpop.permute.xlu0 %806
        %808 = vrot.lane.b32.xlu0 %v803, 96
        %v809 = vpop.permute.xlu0 %808
        %812 = vrot.lane.b32.xlu0 %v802, 64
        %v813 = vpop.permute.xlu0 %812
        %814 = vrot.lane.b32.xlu0 %v803, 64
        %v815 = vpop.permute.xlu0 %814
        %818 = vrot.lane.b32.xlu0 %v802, 32
        %v819 = vpop.permute.xlu0 %818
        %820 = vrot.lane.b32.xlu0 %v803, 32
        %v821 = vpop.permute.xlu0 %820
        %v824 = vcombine.low %v802, %v813
        %v825 = vcombine.high %v802, %v813
        %v827 = vunpack.c.l.s4 1983009808
        %v828 = vunpack.c.0.s8 %v827
        %v829 = vlaneseq
        %v830 = vshrl.u32 %v829, 7
        %v831 = vsub.s32 %v828, %v830
        %v832 = vrot.slane %v824, %v831
        %v834 = vunpack.c.l.s4 1983009808
        %v835 = vunpack.c.0.s8 %v834
        %v836 = vlaneseq
        %v837 = vshrl.u32 %v836, 7
        %v838 = vsub.s32 %v835, %v837
        %v839 = vrot.slane %v825, %v838
        %v840 = vcombine.low %v807, %v819
        %v841 = vcombine.high %v807, %v819
        %v843 = vunpack.c.l.s4 1983009808
        %v844 = vunpack.c.0.s8 %v843
        %v845 = vlaneseq
        %v846 = vshrl.u32 %v845, 7
        %v847 = vsub.s32 %v844, %v846
        %v848 = vrot.slane %v840, %v847
        %v850 = vunpack.c.l.s4 1983009808
        %v851 = vunpack.c.0.s8 %v850
        %v852 = vlaneseq
        %v853 = vshrl.u32 %v852, 7
        %v854 = vsub.s32 %v851, %v853
        %v855 = vrot.slane %v841, %v854
        %v856 = vcombine.low %v832, %v848
        %v857 = vcombine.high %v832, %v848
        %v859 = vunpack.c.l.s4 1934713408
        %v860 = vunpack.c.0.s8 %v859
        %v861 = vlaneseq
        %v862 = vshrl.u32 %v861, 7
        %v863 = vsub.s32 %v860, %v862
        %v864 = vrot.slane %v856, %v863
        %v866 = vunpack.c.l.s4 1934713408
        %v867 = vunpack.c.0.s8 %v866
        %v868 = vlaneseq
        %v869 = vshrl.u32 %v868, 7
        %v870 = vsub.s32 %v867, %v869
        %v871 = vrot.slane %v857, %v870
        %v872 = vcombine.low %v839, %v855
        %v873 = vcombine.high %v839, %v855
        %v875 = vunpack.c.l.s4 1934713408
        %v876 = vunpack.c.0.s8 %v875
        %v877 = vlaneseq
        %v878 = vshrl.u32 %v877, 7
        %v879 = vsub.s32 %v876, %v878
        %v880 = vrot.slane %v872, %v879
        %v882 = vunpack.c.l.s4 1934713408
        %v883 = vunpack.c.0.s8 %v882
        %v884 = vlaneseq
        %v885 = vshrl.u32 %v884, 7
        %v886 = vsub.s32 %v883, %v885
        %v887 = vrot.slane %v873, %v886
        %v888 = vcombine.high %v864, 0.0
        %v889 = vcombine.high %v871, 0.0
        %v890 = vcombine.high %v880, 0.0
        %v891 = vcombine.high %v887, 0.0
        %v892 = vcombine.low %v803, %v815
        %v893 = vcombine.high %v803, %v815
        %v895 = vunpack.c.l.s4 1983009808
        %v896 = vunpack.c.0.s8 %v895
        %v897 = vlaneseq
        %v898 = vshrl.u32 %v897, 7
        %v899 = vsub.s32 %v896, %v898
        %v900 = vrot.slane %v892, %v899
        %v902 = vunpack.c.l.s4 1983009808
        %v903 = vunpack.c.0.s8 %v902
        %v904 = vlaneseq
        %v905 = vshrl.u32 %v904, 7
        %v906 = vsub.s32 %v903, %v905
        %v907 = vrot.slane %v893, %v906
        %v908 = vcombine.low %v809, %v821
        %v909 = vcombine.high %v809, %v821
        %v911 = vunpack.c.l.s4 1983009808
        %v912 = vunpack.c.0.s8 %v911
        %v913 = vlaneseq
        %v914 = vshrl.u32 %v913, 7
        %v915 = vsub.s32 %v912, %v914
        %v916 = vrot.slane %v908, %v915
        %v918 = vunpack.c.l.s4 1983009808
        %v919 = vunpack.c.0.s8 %v918
        %v920 = vlaneseq
        %v921 = vshrl.u32 %v920, 7
        %v922 = vsub.s32 %v919, %v921
        %v923 = vrot.slane %v909, %v922
        %v924 = vcombine.low %v900, %v916
        %v925 = vcombine.high %v900, %v916
        %v927 = vunpack.c.l.s4 1934713408
        %v928 = vunpack.c.0.s8 %v927
        %v929 = vlaneseq
        %v930 = vshrl.u32 %v929, 7
        %v931 = vsub.s32 %v928, %v930
        %v932 = vrot.slane %v924, %v931
        %v934 = vunpack.c.l.s4 1934713408
        %v935 = vunpack.c.0.s8 %v934
        %v936 = vlaneseq
        %v937 = vshrl.u32 %v936, 7
        %v938 = vsub.s32 %v935, %v937
        %v939 = vrot.slane %v925, %v938
        %v940 = vcombine.low %v907, %v923
        %v941 = vcombine.high %v907, %v923
        %v943 = vunpack.c.l.s4 1934713408
        %v944 = vunpack.c.0.s8 %v943
        %v945 = vlaneseq
        %v946 = vshrl.u32 %v945, 7
        %v947 = vsub.s32 %v944, %v946
        %v948 = vrot.slane %v940, %v947
        %v950 = vunpack.c.l.s4 1934713408
        %v951 = vunpack.c.0.s8 %v950
        %v952 = vlaneseq
        %v953 = vshrl.u32 %v952, 7
        %v954 = vsub.s32 %v951, %v953
        %v955 = vrot.slane %v941, %v954
        %v956 = vcombine.high %v932, 0.0
        %v957 = vcombine.high %v939, 0.0
        %v958 = vcombine.high %v948, 0.0
        %v959 = vcombine.high %v955, 0.0
        %v960 = vcombine.low %v864, %v871
        %v962 = vunpack.c.l.s4 1983009808
        %v963 = vunpack.c.0.s8 %v962
        %v964 = vlaneseq
        %v965 = vshrl.u32 %v964, 7
        %v966 = vsub.s32 %v963, %v965
        %v967 = vrot.slane %v960, %v966
        %v968 = vcombine.low %v888, %v889
        %v970 = vunpack.c.l.s4 1983009808
        %v971 = vunpack.c.0.s8 %v970
        %v972 = vlaneseq
        %v973 = vshrl.u32 %v972, 7
        %v974 = vsub.s32 %v971, %v973
        %v975 = vrot.slane %v968, %v974
        %v976 = vcombine.low %v880, %v887
        %v978 = vunpack.c.l.s4 1983009808
        %v979 = vunpack.c.0.s8 %v978
        %v980 = vlaneseq
        %v981 = vshrl.u32 %v980, 7
        %v982 = vsub.s32 %v979, %v981
        %v983 = vrot.slane %v976, %v982
        %v984 = vcombine.low %v890, %v891
        %v986 = vunpack.c.l.s4 1983009808
        %v987 = vunpack.c.0.s8 %v986
        %v988 = vlaneseq
        %v989 = vshrl.u32 %v988, 7
        %v990 = vsub.s32 %v987, %v989
        %v991 = vrot.slane %v984, %v990
        %v992 = vcombine.low %v967, %v975
        %v993 = vcombine.high %v967, %v975
        %v995 = vunpack.c.l.s4 1934713408
        %v996 = vunpack.c.0.s8 %v995
        %v997 = vlaneseq
        %v998 = vshrl.u32 %v997, 7
        %v999 = vsub.s32 %v996, %v998
        %v1000 = vrot.slane %v992, %v999
        %v1002 = vunpack.c.l.s4 1934713408
        %v1003 = vunpack.c.0.s8 %v1002
        %v1004 = vlaneseq
        %v1005 = vshrl.u32 %v1004, 7
        %v1006 = vsub.s32 %v1003, %v1005
        %v1007 = vrot.slane %v993, %v1006
        %v1008 = vcombine.low %v983, %v991
        %v1009 = vcombine.high %v983, %v991
        %v1011 = vunpack.c.l.s4 1934713408
        %v1012 = vunpack.c.0.s8 %v1011
        %v1013 = vlaneseq
        %v1014 = vshrl.u32 %v1013, 7
        %v1015 = vsub.s32 %v1012, %v1014
        %v1016 = vrot.slane %v1008, %v1015
        %v1018 = vunpack.c.l.s4 1934713408
        %v1019 = vunpack.c.0.s8 %v1018
        %v1020 = vlaneseq
        %v1021 = vshrl.u32 %v1020, 7
        %v1022 = vsub.s32 %v1019, %v1021
        %v1023 = vrot.slane %v1009, %v1022
        %v1024 = vcombine.low %v1000, %v1016
        %v1025 = vcombine.high %v1000, %v1016
        %v1026 = vcombine.low %v1007, %v1023
        %v1027 = vcombine.high %v1007, %v1023
        %v1028 = vcombine.low %v932, %v939
        %v1030 = vunpack.c.l.s4 1983009808
        %v1031 = vunpack.c.0.s8 %v1030
        %v1032 = vlaneseq
        %v1033 = vshrl.u32 %v1032, 7
        %v1034 = vsub.s32 %v1031, %v1033
        %v1035 = vrot.slane %v1028, %v1034
        %v1036 = vcombine.low %v956, %v957
        %v1038 = vunpack.c.l.s4 1983009808
        %v1039 = vunpack.c.0.s8 %v1038
        %v1040 = vlaneseq
        %v1041 = vshrl.u32 %v1040, 7
        %v1042 = vsub.s32 %v1039, %v1041
        %v1043 = vrot.slane %v1036, %v1042
        %v1044 = vcombine.low %v948, %v955
        %v1046 = vunpack.c.l.s4 1983009808
        %v1047 = vunpack.c.0.s8 %v1046
        %v1048 = vlaneseq
        %v1049 = vshrl.u32 %v1048, 7
        %v1050 = vsub.s32 %v1047, %v1049
        %v1051 = vrot.slane %v1044, %v1050
        %v1052 = vcombine.low %v958, %v959
        %v1054 = vunpack.c.l.s4 1983009808
        %v1055 = vunpack.c.0.s8 %v1054
        %v1056 = vlaneseq
        %v1057 = vshrl.u32 %v1056, 7
        %v1058 = vsub.s32 %v1055, %v1057
        %v1059 = vrot.slane %v1052, %v1058
        %v1060 = vcombine.low %v1035, %v1043
        %v1061 = vcombine.high %v1035, %v1043
        %v1063 = vunpack.c.l.s4 1934713408
        %v1064 = vunpack.c.0.s8 %v1063
        %v1065 = vlaneseq
        %v1066 = vshrl.u32 %v1065, 7
        %v1067 = vsub.s32 %v1064, %v1066
        %v1068 = vrot.slane %v1060, %v1067
        %v1070 = vunpack.c.l.s4 1934713408
        %v1071 = vunpack.c.0.s8 %v1070
        %v1072 = vlaneseq
        %v1073 = vshrl.u32 %v1072, 7
        %v1074 = vsub.s32 %v1071, %v1073
        %v1075 = vrot.slane %v1061, %v1074
        %v1076 = vcombine.low %v1051, %v1059
        %v1077 = vcombine.high %v1051, %v1059
        %v1079 = vunpack.c.l.s4 1934713408
        %v1080 = vunpack.c.0.s8 %v1079
        %v1081 = vlaneseq
        %v1082 = vshrl.u32 %v1081, 7
        %v1083 = vsub.s32 %v1080, %v1082
        %v1084 = vrot.slane %v1076, %v1083
        %v1086 = vunpack.c.l.s4 1934713408
        %v1087 = vunpack.c.0.s8 %v1086
        %v1088 = vlaneseq
        %v1089 = vshrl.u32 %v1088, 7
        %v1090 = vsub.s32 %v1087, %v1089
        %v1091 = vrot.slane %v1077, %v1090
        %v1092 = vcombine.low %v1068, %v1084
        %v1093 = vcombine.high %v1068, %v1084
        %v1094 = vcombine.low %v1075, %v1091
        %v1095 = vcombine.high %v1075, %v1091
        %1098 = vrot.lane.b32.xlu0 %v719, 96
        %v1099 = vpop.permute.xlu0 %1098
        %1100 = vrot.lane.b32.xlu0 %v725, 96
        %v1101 = vpop.permute.xlu0 %1100
        %1104 = vrot.lane.b32.xlu0 %v719, 64
        %v1105 = vpop.permute.xlu0 %1104
        %1106 = vrot.lane.b32.xlu0 %v725, 64
        %v1107 = vpop.permute.xlu0 %1106
        %1110 = vrot.lane.b32.xlu0 %v719, 32
        %v1111 = vpop.permute.xlu0 %1110
        %1112 = vrot.lane.b32.xlu0 %v725, 32
        %v1113 = vpop.permute.xlu0 %1112
        %v1116 = vcombine.low %v719, %v1105
        %v1117 = vcombine.high %v719, %v1105
        %v1119 = vunpack.c.l.s4 1983009808
        %v1120 = vunpack.c.0.s8 %v1119
        %v1121 = vlaneseq
        %v1122 = vshrl.u32 %v1121, 7
        %v1123 = vsub.s32 %v1120, %v1122
        %v1124 = vrot.slane %v1116, %v1123
        %v1126 = vunpack.c.l.s4 1983009808
        %v1127 = vunpack.c.0.s8 %v1126
        %v1128 = vlaneseq
        %v1129 = vshrl.u32 %v1128, 7
        %v1130 = vsub.s32 %v1127, %v1129
        %v1131 = vrot.slane %v1117, %v1130
        %v1132 = vcombine.low %v1099, %v1111
        %v1133 = vcombine.high %v1099, %v1111
        %v1135 = vunpack.c.l.s4 1983009808
        %v1136 = vunpack.c.0.s8 %v1135
        %v1137 = vlaneseq
        %v1138 = vshrl.u32 %v1137, 7
        %v1139 = vsub.s32 %v1136, %v1138
        %v1140 = vrot.slane %v1132, %v1139
        %v1142 = vunpack.c.l.s4 1983009808
        %v1143 = vunpack.c.0.s8 %v1142
        %v1144 = vlaneseq
        %v1145 = vshrl.u32 %v1144, 7
        %v1146 = vsub.s32 %v1143, %v1145
        %v1147 = vrot.slane %v1133, %v1146
        %v1148 = vcombine.low %v1124, %v1140
        %v1149 = vcombine.high %v1124, %v1140
        %v1151 = vunpack.c.l.s4 1934713408
        %v1152 = vunpack.c.0.s8 %v1151
        %v1153 = vlaneseq
        %v1154 = vshrl.u32 %v1153, 7
        %v1155 = vsub.s32 %v1152, %v1154
        %v1156 = vrot.slane %v1148, %v1155
        %v1158 = vunpack.c.l.s4 1934713408
        %v1159 = vunpack.c.0.s8 %v1158
        %v1160 = vlaneseq
        %v1161 = vshrl.u32 %v1160, 7
        %v1162 = vsub.s32 %v1159, %v1161
        %v1163 = vrot.slane %v1149, %v1162
        %v1164 = vcombine.low %v1131, %v1147
        %v1165 = vcombine.high %v1131, %v1147
        %v1167 = vunpack.c.l.s4 1934713408
        %v1168 = vunpack.c.0.s8 %v1167
        %v1169 = vlaneseq
        %v1170 = vshrl.u32 %v1169, 7
        %v1171 = vsub.s32 %v1168, %v1170
        %v1172 = vrot.slane %v1164, %v1171
        %v1174 = vunpack.c.l.s4 1934713408
        %v1175 = vunpack.c.0.s8 %v1174
        %v1176 = vlaneseq
        %v1177 = vshrl.u32 %v1176, 7
        %v1178 = vsub.s32 %v1175, %v1177
        %v1179 = vrot.slane %v1165, %v1178
        %v1180 = vcombine.high %v1156, 0.0
        %v1181 = vcombine.high %v1163, 0.0
        %v1182 = vcombine.high %v1172, 0.0
        %v1183 = vcombine.high %v1179, 0.0
        %v1184 = vcombine.low %v725, %v1107
        %v1185 = vcombine.high %v725, %v1107
        %v1187 = vunpack.c.l.s4 1983009808
        %v1188 = vunpack.c.0.s8 %v1187
        %v1189 = vlaneseq
        %v1190 = vshrl.u32 %v1189, 7
        %v1191 = vsub.s32 %v1188, %v1190
        %v1192 = vrot.slane %v1184, %v1191
        %v1194 = vunpack.c.l.s4 1983009808
        %v1195 = vunpack.c.0.s8 %v1194
        %v1196 = vlaneseq
        %v1197 = vshrl.u32 %v1196, 7
        %v1198 = vsub.s32 %v1195, %v1197
        %v1199 = vrot.slane %v1185, %v1198
        %v1200 = vcombine.low %v1101, %v1113
        %v1201 = vcombine.high %v1101, %v1113
        %v1203 = vunpack.c.l.s4 1983009808
        %v1204 = vunpack.c.0.s8 %v1203
        %v1205 = vlaneseq
        %v1206 = vshrl.u32 %v1205, 7
        %v1207 = vsub.s32 %v1204, %v1206
        %v1208 = vrot.slane %v1200, %v1207
        %v1210 = vunpack.c.l.s4 1983009808
        %v1211 = vunpack.c.0.s8 %v1210
        %v1212 = vlaneseq
        %v1213 = vshrl.u32 %v1212, 7
        %v1214 = vsub.s32 %v1211, %v1213
        %v1215 = vrot.slane %v1201, %v1214
        %v1216 = vcombine.low %v1192, %v1208
        %v1217 = vcombine.high %v1192, %v1208
        %v1219 = vunpack.c.l.s4 1934713408
        %v1220 = vunpack.c.0.s8 %v1219
        %v1221 = vlaneseq
        %v1222 = vshrl.u32 %v1221, 7
        %v1223 = vsub.s32 %v1220, %v1222
        %v1224 = vrot.slane %v1216, %v1223
        %v1226 = vunpack.c.l.s4 1934713408
        %v1227 = vunpack.c.0.s8 %v1226
        %v1228 = vlaneseq
        %v1229 = vshrl.u32 %v1228, 7
        %v1230 = vsub.s32 %v1227, %v1229
        %v1231 = vrot.slane %v1217, %v1230
        %v1232 = vcombine.low %v1199, %v1215
        %v1233 = vcombine.high %v1199, %v1215
        %v1235 = vunpack.c.l.s4 1934713408
        %v1236 = vunpack.c.0.s8 %v1235
        %v1237 = vlaneseq
        %v1238 = vshrl.u32 %v1237, 7
        %v1239 = vsub.s32 %v1236, %v1238
        %v1240 = vrot.slane %v1232, %v1239
        %v1242 = vunpack.c.l.s4 1934713408
        %v1243 = vunpack.c.0.s8 %v1242
        %v1244 = vlaneseq
        %v1245 = vshrl.u32 %v1244, 7
        %v1246 = vsub.s32 %v1243, %v1245
        %v1247 = vrot.slane %v1233, %v1246
        %v1248 = vcombine.high %v1224, 0.0
        %v1249 = vcombine.high %v1231, 0.0
        %v1250 = vcombine.high %v1240, 0.0
        %v1251 = vcombine.high %v1247, 0.0
        %v1252 = vcombine.low %v1156, %v1163
        %v1254 = vunpack.c.l.s4 1983009808
        %v1255 = vunpack.c.0.s8 %v1254
        %v1256 = vlaneseq
        %v1257 = vshrl.u32 %v1256, 7
        %v1258 = vsub.s32 %v1255, %v1257
        %v1259 = vrot.slane %v1252, %v1258
        %v1260 = vcombine.low %v1180, %v1181
        %v1262 = vunpack.c.l.s4 1983009808
        %v1263 = vunpack.c.0.s8 %v1262
        %v1264 = vlaneseq
        %v1265 = vshrl.u32 %v1264, 7
        %v1266 = vsub.s32 %v1263, %v1265
        %v1267 = vrot.slane %v1260, %v1266
        %v1268 = vcombine.low %v1172, %v1179
        %v1270 = vunpack.c.l.s4 1983009808
        %v1271 = vunpack.c.0.s8 %v1270
        %v1272 = vlaneseq
        %v1273 = vshrl.u32 %v1272, 7
        %v1274 = vsub.s32 %v1271, %v1273
        %v1275 = vrot.slane %v1268, %v1274
        %v1276 = vcombine.low %v1182, %v1183
        %v1278 = vunpack.c.l.s4 1983009808
        %v1279 = vunpack.c.0.s8 %v1278
        %v1280 = vlaneseq
        %v1281 = vshrl.u32 %v1280, 7
        %v1282 = vsub.s32 %v1279, %v1281
        %v1283 = vrot.slane %v1276, %v1282
        %v1284 = vcombine.low %v1259, %v1267
        %v1285 = vcombine.high %v1259, %v1267
        %v1287 = vunpack.c.l.s4 1934713408
        %v1288 = vunpack.c.0.s8 %v1287
        %v1289 = vlaneseq
        %v1290 = vshrl.u32 %v1289, 7
        %v1291 = vsub.s32 %v1288, %v1290
        %v1292 = vrot.slane %v1284, %v1291
        %v1294 = vunpack.c.l.s4 1934713408
        %v1295 = vunpack.c.0.s8 %v1294
        %v1296 = vlaneseq
        %v1297 = vshrl.u32 %v1296, 7
        %v1298 = vsub.s32 %v1295, %v1297
        %v1299 = vrot.slane %v1285, %v1298
        %v1300 = vcombine.low %v1275, %v1283
        %v1301 = vcombine.high %v1275, %v1283
        %v1303 = vunpack.c.l.s4 1934713408
        %v1304 = vunpack.c.0.s8 %v1303
        %v1305 = vlaneseq
        %v1306 = vshrl.u32 %v1305, 7
        %v1307 = vsub.s32 %v1304, %v1306
        %v1308 = vrot.slane %v1300, %v1307
        %v1310 = vunpack.c.l.s4 1934713408
        %v1311 = vunpack.c.0.s8 %v1310
        %v1312 = vlaneseq
        %v1313 = vshrl.u32 %v1312, 7
        %v1314 = vsub.s32 %v1311, %v1313
        %v1315 = vrot.slane %v1301, %v1314
        %v1316 = vcombine.low %v1292, %v1308
        %v1317 = vcombine.high %v1292, %v1308
        %v1318 = vcombine.low %v1299, %v1315
        %v1319 = vcombine.high %v1299, %v1315
        %v1320 = vcombine.low %v1224, %v1231
        %v1322 = vunpack.c.l.s4 1983009808
        %v1323 = vunpack.c.0.s8 %v1322
        %v1324 = vlaneseq
        %v1325 = vshrl.u32 %v1324, 7
        %v1326 = vsub.s32 %v1323, %v1325
        %v1327 = vrot.slane %v1320, %v1326
        %v1328 = vcombine.low %v1248, %v1249
        %v1330 = vunpack.c.l.s4 1983009808
        %v1331 = vunpack.c.0.s8 %v1330
        %v1332 = vlaneseq
        %v1333 = vshrl.u32 %v1332, 7
        %v1334 = vsub.s32 %v1331, %v1333
        %v1335 = vrot.slane %v1328, %v1334
        %v1336 = vcombine.low %v1240, %v1247
        %v1338 = vunpack.c.l.s4 1983009808
        %v1339 = vunpack.c.0.s8 %v1338
        %v1340 = vlaneseq
        %v1341 = vshrl.u32 %v1340, 7
        %v1342 = vsub.s32 %v1339, %v1341
        %v1343 = vrot.slane %v1336, %v1342
        %v1344 = vcombine.low %v1250, %v1251
        %v1346 = vunpack.c.l.s4 1983009808
        %v1347 = vunpack.c.0.s8 %v1346
        %v1348 = vlaneseq
        %v1349 = vshrl.u32 %v1348, 7
        %v1350 = vsub.s32 %v1347, %v1349
        %v1351 = vrot.slane %v1344, %v1350
        %v1352 = vcombine.low %v1327, %v1335
        %v1353 = vcombine.high %v1327, %v1335
        %v1355 = vunpack.c.l.s4 1934713408
        %v1356 = vunpack.c.0.s8 %v1355
        %v1357 = vlaneseq
        %v1358 = vshrl.u32 %v1357, 7
        %v1359 = vsub.s32 %v1356, %v1358
        %v1360 = vrot.slane %v1352, %v1359
        %v1362 = vunpack.c.l.s4 1934713408
        %v1363 = vunpack.c.0.s8 %v1362
        %v1364 = vlaneseq
        %v1365 = vshrl.u32 %v1364, 7
        %v1366 = vsub.s32 %v1363, %v1365
        %v1367 = vrot.slane %v1353, %v1366
        %v1368 = vcombine.low %v1343, %v1351
        %v1369 = vcombine.high %v1343, %v1351
        %v1371 = vunpack.c.l.s4 1934713408
        %v1372 = vunpack.c.0.s8 %v1371
        %v1373 = vlaneseq
        %v1374 = vshrl.u32 %v1373, 7
        %v1375 = vsub.s32 %v1372, %v1374
        %v1376 = vrot.slane %v1368, %v1375
        %v1378 = vunpack.c.l.s4 1934713408
        %v1379 = vunpack.c.0.s8 %v1378
        %v1380 = vlaneseq
        %v1381 = vshrl.u32 %v1380, 7
        %v1382 = vsub.s32 %v1379, %v1381
        %v1383 = vrot.slane %v1369, %v1382
        %v1384 = vcombine.low %v1360, %v1376
        %v1385 = vcombine.high %v1360, %v1376
        %v1386 = vcombine.low %v1367, %v1383
        %v1387 = vcombine.high %v1367, %v1383
        %1390 = vrot.lane.b32.xlu0 %v794, 96
        %v1391 = vpop.permute.xlu0 %1390
        %1392 = vrot.lane.b32.xlu0 %v799, 96
        %v1393 = vpop.permute.xlu0 %1392
        %1396 = vrot.lane.b32.xlu0 %v794, 64
        %v1397 = vpop.permute.xlu0 %1396
        %1398 = vrot.lane.b32.xlu0 %v799, 64
        %v1399 = vpop.permute.xlu0 %1398
        %1402 = vrot.lane.b32.xlu0 %v794, 32
        %v1403 = vpop.permute.xlu0 %1402
        %1404 = vrot.lane.b32.xlu0 %v799, 32
        %v1405 = vpop.permute.xlu0 %1404
        %v1408 = vcombine.low %v794, %v1397
        %v1409 = vcombine.high %v794, %v1397
        %v1411 = vunpack.c.l.s4 1983009808
        %v1412 = vunpack.c.0.s8 %v1411
        %v1413 = vlaneseq
        %v1414 = vshrl.u32 %v1413, 7
        %v1415 = vsub.s32 %v1412, %v1414
        %v1416 = vrot.slane %v1408, %v1415
        %v1418 = vunpack.c.l.s4 1983009808
        %v1419 = vunpack.c.0.s8 %v1418
        %v1420 = vlaneseq
        %v1421 = vshrl.u32 %v1420, 7
        %v1422 = vsub.s32 %v1419, %v1421
        %v1423 = vrot.slane %v1409, %v1422
        %v1424 = vcombine.low %v1391, %v1403
        %v1425 = vcombine.high %v1391, %v1403
        %v1427 = vunpack.c.l.s4 1983009808
        %v1428 = vunpack.c.0.s8 %v1427
        %v1429 = vlaneseq
        %v1430 = vshrl.u32 %v1429, 7
        %v1431 = vsub.s32 %v1428, %v1430
        %v1432 = vrot.slane %v1424, %v1431
        %v1434 = vunpack.c.l.s4 1983009808
        %v1435 = vunpack.c.0.s8 %v1434
        %v1436 = vlaneseq
        %v1437 = vshrl.u32 %v1436, 7
        %v1438 = vsub.s32 %v1435, %v1437
        %v1439 = vrot.slane %v1425, %v1438
        %v1440 = vcombine.low %v1416, %v1432
        %v1441 = vcombine.high %v1416, %v1432
        %v1443 = vunpack.c.l.s4 1934713408
        %v1444 = vunpack.c.0.s8 %v1443
        %v1445 = vlaneseq
        %v1446 = vshrl.u32 %v1445, 7
        %v1447 = vsub.s32 %v1444, %v1446
        %v1448 = vrot.slane %v1440, %v1447
        %v1450 = vunpack.c.l.s4 1934713408
        %v1451 = vunpack.c.0.s8 %v1450
        %v1452 = vlaneseq
        %v1453 = vshrl.u32 %v1452, 7
        %v1454 = vsub.s32 %v1451, %v1453
        %v1455 = vrot.slane %v1441, %v1454
        %v1456 = vcombine.low %v1423, %v1439
        %v1457 = vcombine.high %v1423, %v1439
        %v1459 = vunpack.c.l.s4 1934713408
        %v1460 = vunpack.c.0.s8 %v1459
        %v1461 = vlaneseq
        %v1462 = vshrl.u32 %v1461, 7
        %v1463 = vsub.s32 %v1460, %v1462
        %v1464 = vrot.slane %v1456, %v1463
        %v1466 = vunpack.c.l.s4 1934713408
        %v1467 = vunpack.c.0.s8 %v1466
        %v1468 = vlaneseq
        %v1469 = vshrl.u32 %v1468, 7
        %v1470 = vsub.s32 %v1467, %v1469
        %v1471 = vrot.slane %v1457, %v1470
        %v1472 = vcombine.high %v1448, 0.0
        %v1473 = vcombine.high %v1455, 0.0
        %v1474 = vcombine.high %v1464, 0.0
        %v1475 = vcombine.high %v1471, 0.0
        %v1476 = vcombine.low %v799, %v1399
        %v1477 = vcombine.high %v799, %v1399
        %v1479 = vunpack.c.l.s4 1983009808
        %v1480 = vunpack.c.0.s8 %v1479
        %v1481 = vlaneseq
        %v1482 = vshrl.u32 %v1481, 7
        %v1483 = vsub.s32 %v1480, %v1482
        %v1484 = vrot.slane %v1476, %v1483
        %v1486 = vunpack.c.l.s4 1983009808
        %v1487 = vunpack.c.0.s8 %v1486
        %v1488 = vlaneseq
        %v1489 = vshrl.u32 %v1488, 7
        %v1490 = vsub.s32 %v1487, %v1489
        %v1491 = vrot.slane %v1477, %v1490
        %v1492 = vcombine.low %v1393, %v1405
        %v1493 = vcombine.high %v1393, %v1405
        %v1495 = vunpack.c.l.s4 1983009808
        %v1496 = vunpack.c.0.s8 %v1495
        %v1497 = vlaneseq
        %v1498 = vshrl.u32 %v1497, 7
        %v1499 = vsub.s32 %v1496, %v1498
        %v1500 = vrot.slane %v1492, %v1499
        %v1502 = vunpack.c.l.s4 1983009808
        %v1503 = vunpack.c.0.s8 %v1502
        %v1504 = vlaneseq
        %v1505 = vshrl.u32 %v1504, 7
        %v1506 = vsub.s32 %v1503, %v1505
        %v1507 = vrot.slane %v1493, %v1506
        %v1508 = vcombine.low %v1484, %v1500
        %v1509 = vcombine.high %v1484, %v1500
        %v1511 = vunpack.c.l.s4 1934713408
        %v1512 = vunpack.c.0.s8 %v1511
        %v1513 = vlaneseq
        %v1514 = vshrl.u32 %v1513, 7
        %v1515 = vsub.s32 %v1512, %v1514
        %v1516 = vrot.slane %v1508, %v1515
        %v1518 = vunpack.c.l.s4 1934713408
        %v1519 = vunpack.c.0.s8 %v1518
        %v1520 = vlaneseq
        %v1521 = vshrl.u32 %v1520, 7
        %v1522 = vsub.s32 %v1519, %v1521
        %v1523 = vrot.slane %v1509, %v1522
        %v1524 = vcombine.low %v1491, %v1507
        %v1525 = vcombine.high %v1491, %v1507
        %v1527 = vunpack.c.l.s4 1934713408
        %v1528 = vunpack.c.0.s8 %v1527
        %v1529 = vlaneseq
        %v1530 = vshrl.u32 %v1529, 7
        %v1531 = vsub.s32 %v1528, %v1530
        %v1532 = vrot.slane %v1524, %v1531
        %v1534 = vunpack.c.l.s4 1934713408
        %v1535 = vunpack.c.0.s8 %v1534
        %v1536 = vlaneseq
        %v1537 = vshrl.u32 %v1536, 7
        %v1538 = vsub.s32 %v1535, %v1537
        %v1539 = vrot.slane %v1525, %v1538
        %v1540 = vcombine.high %v1516, 0.0
        %v1541 = vcombine.high %v1523, 0.0
        %v1542 = vcombine.high %v1532, 0.0
        %v1543 = vcombine.high %v1539, 0.0
        %v1544 = vcombine.low %v1448, %v1455
        %v1546 = vunpack.c.l.s4 1983009808
        %v1547 = vunpack.c.0.s8 %v1546
        %v1548 = vlaneseq
        %v1549 = vshrl.u32 %v1548, 7
        %v1550 = vsub.s32 %v1547, %v1549
        %v1551 = vrot.slane %v1544, %v1550
        %v1552 = vcombine.low %v1472, %v1473
        %v1554 = vunpack.c.l.s4 1983009808
        %v1555 = vunpack.c.0.s8 %v1554
        %v1556 = vlaneseq
        %v1557 = vshrl.u32 %v1556, 7
        %v1558 = vsub.s32 %v1555, %v1557
        %v1559 = vrot.slane %v1552, %v1558
        %v1560 = vcombine.low %v1464, %v1471
        %v1562 = vunpack.c.l.s4 1983009808
        %v1563 = vunpack.c.0.s8 %v1562
        %v1564 = vlaneseq
        %v1565 = vshrl.u32 %v1564, 7
        %v1566 = vsub.s32 %v1563, %v1565
        %v1567 = vrot.slane %v1560, %v1566
        %v1568 = vcombine.low %v1474, %v1475
        %v1570 = vunpack.c.l.s4 1983009808
        %v1571 = vunpack.c.0.s8 %v1570
        %v1572 = vlaneseq
        %v1573 = vshrl.u32 %v1572, 7
        %v1574 = vsub.s32 %v1571, %v1573
        %v1575 = vrot.slane %v1568, %v1574
        %v1576 = vcombine.low %v1551, %v1559
        %v1577 = vcombine.high %v1551, %v1559
        %v1579 = vunpack.c.l.s4 1934713408
        %v1580 = vunpack.c.0.s8 %v1579
        %v1581 = vlaneseq
        %v1582 = vshrl.u32 %v1581, 7
        %v1583 = vsub.s32 %v1580, %v1582
        %v1584 = vrot.slane %v1576, %v1583
        %v1586 = vunpack.c.l.s4 1934713408
        %v1587 = vunpack.c.0.s8 %v1586
        %v1588 = vlaneseq
        %v1589 = vshrl.u32 %v1588, 7
        %v1590 = vsub.s32 %v1587, %v1589
        %v1591 = vrot.slane %v1577, %v1590
        %v1592 = vcombine.low %v1567, %v1575
        %v1593 = vcombine.high %v1567, %v1575
        %v1595 = vunpack.c.l.s4 1934713408
        %v1596 = vunpack.c.0.s8 %v1595
        %v1597 = vlaneseq
        %v1598 = vshrl.u32 %v1597, 7
        %v1599 = vsub.s32 %v1596, %v1598
        %v1600 = vrot.slane %v1592, %v1599
        %v1602 = vunpack.c.l.s4 1934713408
        %v1603 = vunpack.c.0.s8 %v1602
        %v1604 = vlaneseq
        %v1605 = vshrl.u32 %v1604, 7
        %v1606 = vsub.s32 %v1603, %v1605
        %v1607 = vrot.slane %v1593, %v1606
        %v1608 = vcombine.low %v1584, %v1600
        %v1609 = vcombine.high %v1584, %v1600
        %v1610 = vcombine.low %v1591, %v1607
        %v1611 = vcombine.high %v1591, %v1607
        %v1612 = vcombine.low %v1516, %v1523
        %v1614 = vunpack.c.l.s4 1983009808
        %v1615 = vunpack.c.0.s8 %v1614
        %v1616 = vlaneseq
        %v1617 = vshrl.u32 %v1616, 7
        %v1618 = vsub.s32 %v1615, %v1617
        %v1619 = vrot.slane %v1612, %v1618
        %v1620 = vcombine.low %v1540, %v1541
        %v1622 = vunpack.c.l.s4 1983009808
        %v1623 = vunpack.c.0.s8 %v1622
        %v1624 = vlaneseq
        %v1625 = vshrl.u32 %v1624, 7
        %v1626 = vsub.s32 %v1623, %v1625
        %v1627 = vrot.slane %v1620, %v1626
        %v1628 = vcombine.low %v1532, %v1539
        %v1630 = vunpack.c.l.s4 1983009808
        %v1631 = vunpack.c.0.s8 %v1630
        %v1632 = vlaneseq
        %v1633 = vshrl.u32 %v1632, 7
        %v1634 = vsub.s32 %v1631, %v1633
        %v1635 = vrot.slane %v1628, %v1634
        %v1636 = vcombine.low %v1542, %v1543
        %v1638 = vunpack.c.l.s4 1983009808
        %v1639 = vunpack.c.0.s8 %v1638
        %v1640 = vlaneseq
        %v1641 = vshrl.u32 %v1640, 7
        %v1642 = vsub.s32 %v1639, %v1641
        %v1643 = vrot.slane %v1636, %v1642
        %v1644 = vcombine.low %v1619, %v1627
        %v1645 = vcombine.high %v1619, %v1627
        %v1647 = vunpack.c.l.s4 1934713408
        %v1648 = vunpack.c.0.s8 %v1647
        %v1649 = vlaneseq
        %v1650 = vshrl.u32 %v1649, 7
        %v1651 = vsub.s32 %v1648, %v1650
        %v1652 = vrot.slane %v1644, %v1651
        %v1654 = vunpack.c.l.s4 1934713408
        %v1655 = vunpack.c.0.s8 %v1654
        %v1656 = vlaneseq
        %v1657 = vshrl.u32 %v1656, 7
        %v1658 = vsub.s32 %v1655, %v1657
        %v1659 = vrot.slane %v1645, %v1658
        %v1660 = vcombine.low %v1635, %v1643
        %v1661 = vcombine.high %v1635, %v1643
        %v1663 = vunpack.c.l.s4 1934713408
        %v1664 = vunpack.c.0.s8 %v1663
        %v1665 = vlaneseq
        %v1666 = vshrl.u32 %v1665, 7
        %v1667 = vsub.s32 %v1664, %v1666
        %v1668 = vrot.slane %v1660, %v1667
        %v1670 = vunpack.c.l.s4 1934713408
        %v1671 = vunpack.c.0.s8 %v1670
        %v1672 = vlaneseq
        %v1673 = vshrl.u32 %v1672, 7
        %v1674 = vsub.s32 %v1671, %v1673
        %v1675 = vrot.slane %v1661, %v1674
        %v1676 = vcombine.low %v1652, %v1668
        %v1677 = vcombine.high %v1652, %v1668
        %v1678 = vcombine.low %v1659, %v1675
        %v1679 = vcombine.high %v1659, %v1675
        %vm1680 = vcmask 261120
        %v1682 = vsel %vm1680, %v1024, 0
        %v1685 = vsel %vm1680, %v1092, 0
        %v1688 = vsel %vm1680, %v1316, 0
        %v1691 = vsel %vm1680, %v1384, 0
        %1693 = vmatprep.subr.mxu0 0.0
        %1694 = vmatpush1.xpose.msra.mxu0 0.0
        %1695 = vmatprep.subr.mxu0 0.0
        %1696 = vmatpush1.xpose.msra.mxu0 0.0
        %1697 = vmatprep.subr.mxu0 0.0
        %1698 = vmatpush1.xpose.msra.mxu0 0.0
        %1699 = vmatprep.subr.mxu0 0.0
        %1700 = vmatpush1.xpose.msra.mxu0 0.0
        %1701 = vmatprep.subr.mxu0 0.0
        %1702 = vmatpush1.xpose.msra.mxu0 0.0
        %1703 = vmatprep.subr.mxu0 0.0
        %1704 = vmatpush1.xpose.msra.mxu0 0.0
        %1705 = vmatprep.subr.mxu0 0.0
        %1706 = vmatpush1.xpose.msra.mxu0 0.0
        %1707 = vmatprep.subr.mxu0 0.0
        %1708 = vmatpush1.xpose.msra.mxu0 0.0
        %1709 = vmatprep.subr.mxu0 0.0
        %1710 = vmatpush1.xpose.msra.mxu0 0.0
        %1711 = vmatprep.subr.mxu0 0.0
        %1712 = vmatpush1.xpose.msra.mxu0 0.0
        %1713 = vmatprep.subr.mxu0 0.0
        %1714 = vmatpush1.xpose.msra.mxu0 0.0
        %1715 = vmatprep.subr.mxu0 0.0
        %1716 = vmatpush1.xpose.msra.mxu0 0.0
        %1717 = vmatprep.subr.mxu0 0.0
        %1718 = vmatpush1.xpose.msra.mxu0 0.0
        %1719 = vmatprep.subr.mxu0 0.0
        %1720 = vmatpush1.xpose.msra.mxu0 0.0
        %1721 = vmatprep.subr.mxu0 0.0
        %1722 = vmatpush1.xpose.msra.mxu0 %v1691
        %1723 = vmatprep.subr.mxu0 0.0
        %1724 = vmatpush1.xpose.msra.mxu0 %v1688
        %1725 = vmatprep.subr.mxu0 0.0
        %1726 = vmatpush2.xpose.msra.mxu0 0.0
        %1727 = vmatprep.subr.mxu0 0.0
        %1728 = vmatpush2.xpose.msra.mxu0 0.0
        %1729 = vmatprep.subr.mxu0 0.0
        %1730 = vmatpush2.xpose.msra.mxu0 0.0
        %1731 = vmatprep.subr.mxu0 0.0
        %1732 = vmatpush2.xpose.msra.mxu0 0.0
        %1733 = vmatprep.subr.mxu0 0.0
        %1734 = vmatpush2.xpose.msra.mxu0 0.0
        %1735 = vmatprep.subr.mxu0 0.0
        %1736 = vmatpush2.xpose.msra.mxu0 0.0
        %1737 = vmatprep.subr.mxu0 0.0
        %1738 = vmatpush2.xpose.msra.mxu0 0.0
        %1739 = vmatprep.subr.mxu0 0.0
        %1740 = vmatpush2.xpose.msra.mxu0 0.0
        %1741 = vmatprep.subr.mxu0 0.0
        %1742 = vmatpush2.xpose.msra.mxu0 0.0
        %1743 = vmatprep.subr.mxu0 0.0
        %1744 = vmatpush2.xpose.msra.mxu0 0.0
        %1745 = vmatprep.subr.mxu0 0.0
        %1746 = vmatpush2.xpose.msra.mxu0 0.0
        %1747 = vmatprep.subr.mxu0 0.0
        %1748 = vmatpush2.xpose.msra.mxu0 0.0
        %1749 = vmatprep.subr.mxu0 0.0
        %1750 = vmatpush2.xpose.msra.mxu0 0.0
        %1751 = vmatprep.subr.mxu0 0.0
        %1752 = vmatpush2.xpose.msra.mxu0 0.0
        %1753 = vmatprep.subr.mxu0 0.0
        %1754 = vmatpush2.xpose.msra.mxu0 0.0
        %1755 = vmatprep.subr.mxu0 0.0
        %1756 = vmatpush2.xpose.msra.mxu0 0.0
        %1757 = vmatprep.mubr.f32.mxu0 0.0
        %1758 = vmatmul.mubr.f32.gmra.mxu0 %v1682
        %v1759 = vpop.f32.mrf.mxu0
        %v1760 = vadd.f32 0.0, %v1759
        %v1761 = vpop.f32.mrf.mxu0
        %1762 = vmatprep.mubr.f32.mxu0 0.0
        %1763 = vmatmul.mubr.f32.gmra.mxu0 %v1685
        %v1764 = vpop.f32.mrf.mxu0
        %v1765 = vadd.f32 0.0, %v1764
        %v1766 = vpop.f32.mrf.mxu0
        %1767 = vdwg.mxu0
        %v1769 = vsel %vm1680, %v1025, 0
        %v1772 = vsel %vm1680, %v1093, 0
        %v1775 = vsel %vm1680, %v1317, 0
        %v1778 = vsel %vm1680, %v1385, 0
        %1780 = vmatprep.subr.mxu0 0.0
        %1781 = vmatpush1.xpose.msra.mxu0 0.0
        %1782 = vmatprep.subr.mxu0 0.0
        %1783 = vmatpush1.xpose.msra.mxu0 0.0
        %1784 = vmatprep.subr.mxu0 0.0
        %1785 = vmatpush1.xpose.msra.mxu0 0.0
        %1786 = vmatprep.subr.mxu0 0.0
        %1787 = vmatpush1.xpose.msra.mxu0 0.0
        %1788 = vmatprep.subr.mxu0 0.0
        %1789 = vmatpush1.xpose.msra.mxu0 0.0
        %1790 = vmatprep.subr.mxu0 0.0
        %1791 = vmatpush1.xpose.msra.mxu0 0.0
        %1792 = vmatprep.subr.mxu0 0.0
        %1793 = vmatpush1.xpose.msra.mxu0 0.0
        %1794 = vmatprep.subr.mxu0 0.0
        %1795 = vmatpush1.xpose.msra.mxu0 0.0
        %1796 = vmatprep.subr.mxu0 0.0
        %1797 = vmatpush1.xpose.msra.mxu0 0.0
        %1798 = vmatprep.subr.mxu0 0.0
        %1799 = vmatpush1.xpose.msra.mxu0 0.0
        %1800 = vmatprep.subr.mxu0 0.0
        %1801 = vmatpush1.xpose.msra.mxu0 0.0
        %1802 = vmatprep.subr.mxu0 0.0
        %1803 = vmatpush1.xpose.msra.mxu0 0.0
        %1804 = vmatprep.subr.mxu0 0.0
        %1805 = vmatpush1.xpose.msra.mxu0 0.0
        %1806 = vmatprep.subr.mxu0 0.0
        %1807 = vmatpush1.xpose.msra.mxu0 0.0
        %1808 = vmatprep.subr.mxu0 0.0
        %1809 = vmatpush1.xpose.msra.mxu0 %v1778
        %1810 = vmatprep.subr.mxu0 0.0
        %1811 = vmatpush1.xpose.msra.mxu0 %v1775
        %1812 = vmatprep.subr.mxu0 0.0
        %1813 = vmatpush2.xpose.msra.mxu0 0.0
        %1814 = vmatprep.subr.mxu0 0.0
        %1815 = vmatpush2.xpose.msra.mxu0 0.0
        %1816 = vmatprep.subr.mxu0 0.0
        %1817 = vmatpush2.xpose.msra.mxu0 0.0
        %1818 = vmatprep.subr.mxu0 0.0
        %1819 = vmatpush2.xpose.msra.mxu0 0.0
        %1820 = vmatprep.subr.mxu0 0.0
        %1821 = vmatpush2.xpose.msra.mxu0 0.0
        %1822 = vmatprep.subr.mxu0 0.0
        %1823 = vmatpush2.xpose.msra.mxu0 0.0
        %1824 = vmatprep.subr.mxu0 0.0
        %1825 = vmatpush2.xpose.msra.mxu0 0.0
        %1826 = vmatprep.subr.mxu0 0.0
        %1827 = vmatpush2.xpose.msra.mxu0 0.0
        %1828 = vmatprep.subr.mxu0 0.0
        %1829 = vmatpush2.xpose.msra.mxu0 0.0
        %1830 = vmatprep.subr.mxu0 0.0
        %1831 = vmatpush2.xpose.msra.mxu0 0.0
        %1832 = vmatprep.subr.mxu0 0.0
        %1833 = vmatpush2.xpose.msra.mxu0 0.0
        %1834 = vmatprep.subr.mxu0 0.0
        %1835 = vmatpush2.xpose.msra.mxu0 0.0
        %1836 = vmatprep.subr.mxu0 0.0
        %1837 = vmatpush2.xpose.msra.mxu0 0.0
        %1838 = vmatprep.subr.mxu0 0.0
        %1839 = vmatpush2.xpose.msra.mxu0 0.0
        %1840 = vmatprep.subr.mxu0 0.0
        %1841 = vmatpush2.xpose.msra.mxu0 0.0
        %1842 = vmatprep.subr.mxu0 0.0
        %1843 = vmatpush2.xpose.msra.mxu0 0.0
        %1844 = vmatprep.mubr.f32.mxu0 0.0
        %1845 = vmatmul.mubr.f32.gmra.mxu0 %v1769
        %v1846 = vpop.f32.mrf.mxu0
        %v1847 = vadd.f32 0.0, %v1846
        %v1848 = vpop.f32.mrf.mxu0
        %1849 = vmatprep.mubr.f32.mxu0 0.0
        %1850 = vmatmul.mubr.f32.gmra.mxu0 %v1772
        %v1851 = vpop.f32.mrf.mxu0
        %v1852 = vadd.f32 0.0, %v1851
        %v1853 = vpop.f32.mrf.mxu0
        %1854 = vdwg.mxu0
        %v1856 = vsel %vm1680, %v1026, 0
        %v1859 = vsel %vm1680, %v1094, 0
        %v1862 = vsel %vm1680, %v1318, 0
        %v1865 = vsel %vm1680, %v1386, 0
        %1867 = vmatprep.subr.mxu0 0.0
        %1868 = vmatpush1.xpose.msra.mxu0 0.0
        %1869 = vmatprep.subr.mxu0 0.0
        %1870 = vmatpush1.xpose.msra.mxu0 0.0
        %1871 = vmatprep.subr.mxu0 0.0
        %1872 = vmatpush1.xpose.msra.mxu0 0.0
        %1873 = vmatprep.subr.mxu0 0.0
        %1874 = vmatpush1.xpose.msra.mxu0 0.0
        %1875 = vmatprep.subr.mxu0 0.0
        %1876 = vmatpush1.xpose.msra.mxu0 0.0
        %1877 = vmatprep.subr.mxu0 0.0
        %1878 = vmatpush1.xpose.msra.mxu0 0.0
        %1879 = vmatprep.subr.mxu0 0.0
        %1880 = vmatpush1.xpose.msra.mxu0 0.0
        %1881 = vmatprep.subr.mxu0 0.0
        %1882 = vmatpush1.xpose.msra.mxu0 0.0
        %1883 = vmatprep.subr.mxu0 0.0
        %1884 = vmatpush1.xpose.msra.mxu0 0.0
        %1885 = vmatprep.subr.mxu0 0.0
        %1886 = vmatpush1.xpose.msra.mxu0 0.0
        %1887 = vmatprep.subr.mxu0 0.0
        %1888 = vmatpush1.xpose.msra.mxu0 0.0
        %1889 = vmatprep.subr.mxu0 0.0
        %1890 = vmatpush1.xpose.msra.mxu0 0.0
        %1891 = vmatprep.subr.mxu0 0.0
        %1892 = vmatpush1.xpose.msra.mxu0 0.0
        %1893 = vmatprep.subr.mxu0 0.0
        %1894 = vmatpush1.xpose.msra.mxu0 0.0
        %1895 = vmatprep.subr.mxu0 0.0
        %1896 = vmatpush1.xpose.msra.mxu0 %v1865
        %1897 = vmatprep.subr.mxu0 0.0
        %1898 = vmatpush1.xpose.msra.mxu0 %v1862
        %1899 = vmatprep.subr.mxu0 0.0
        %1900 = vmatpush2.xpose.msra.mxu0 0.0
        %1901 = vmatprep.subr.mxu0 0.0
        %1902 = vmatpush2.xpose.msra.mxu0 0.0
        %1903 = vmatprep.subr.mxu0 0.0
        %1904 = vmatpush2.xpose.msra.mxu0 0.0
        %1905 = vmatprep.subr.mxu0 0.0
        %1906 = vmatpush2.xpose.msra.mxu0 0.0
        %1907 = vmatprep.subr.mxu0 0.0
        %1908 = vmatpush2.xpose.msra.mxu0 0.0
        %1909 = vmatprep.subr.mxu0 0.0
        %1910 = vmatpush2.xpose.msra.mxu0 0.0
        %1911 = vmatprep.subr.mxu0 0.0
        %1912 = vmatpush2.xpose.msra.mxu0 0.0
        %1913 = vmatprep.subr.mxu0 0.0
        %1914 = vmatpush2.xpose.msra.mxu0 0.0
        %1915 = vmatprep.subr.mxu0 0.0
        %1916 = vmatpush2.xpose.msra.mxu0 0.0
        %1917 = vmatprep.subr.mxu0 0.0
        %1918 = vmatpush2.xpose.msra.mxu0 0.0
        %1919 = vmatprep.subr.mxu0 0.0
        %1920 = vmatpush2.xpose.msra.mxu0 0.0
        %1921 = vmatprep.subr.mxu0 0.0
        %1922 = vmatpush2.xpose.msra.mxu0 0.0
        %1923 = vmatprep.subr.mxu0 0.0
        %1924 = vmatpush2.xpose.msra.mxu0 0.0
        %1925 = vmatprep.subr.mxu0 0.0
        %1926 = vmatpush2.xpose.msra.mxu0 0.0
        %1927 = vmatprep.subr.mxu0 0.0
        %1928 = vmatpush2.xpose.msra.mxu0 0.0
        %1929 = vmatprep.subr.mxu0 0.0
        %1930 = vmatpush2.xpose.msra.mxu0 0.0
        %1931 = vmatprep.mubr.f32.mxu0 0.0
        %1932 = vmatmul.mubr.f32.gmra.mxu0 %v1856
        %v1933 = vpop.f32.mrf.mxu0
        %v1934 = vadd.f32 0.0, %v1933
        %v1935 = vpop.f32.mrf.mxu0
        %1936 = vmatprep.mubr.f32.mxu0 0.0
        %1937 = vmatmul.mubr.f32.gmra.mxu0 %v1859
        %v1938 = vpop.f32.mrf.mxu0
        %v1939 = vadd.f32 0.0, %v1938
        %v1940 = vpop.f32.mrf.mxu0
        %1941 = vdwg.mxu0
        %v1943 = vsel %vm1680, %v1027, 0
        %v1946 = vsel %vm1680, %v1095, 0
        %v1949 = vsel %vm1680, %v1319, 0
        %v1952 = vsel %vm1680, %v1387, 0
        %1954 = vmatprep.subr.mxu0 0.0
        %1955 = vmatpush1.xpose.msra.mxu0 0.0
        %1956 = vmatprep.subr.mxu0 0.0
        %1957 = vmatpush1.xpose.msra.mxu0 0.0
        %1958 = vmatprep.subr.mxu0 0.0
        %1959 = vmatpush1.xpose.msra.mxu0 0.0
        %1960 = vmatprep.subr.mxu0 0.0
        %1961 = vmatpush1.xpose.msra.mxu0 0.0
        %1962 = vmatprep.subr.mxu0 0.0
        %1963 = vmatpush1.xpose.msra.mxu0 0.0
        %1964 = vmatprep.subr.mxu0 0.0
        %1965 = vmatpush1.xpose.msra.mxu0 0.0
        %1966 = vmatprep.subr.mxu0 0.0
        %1967 = vmatpush1.xpose.msra.mxu0 0.0
        %1968 = vmatprep.subr.mxu0 0.0
        %1969 = vmatpush1.xpose.msra.mxu0 0.0
        %1970 = vmatprep.subr.mxu0 0.0
        %1971 = vmatpush1.xpose.msra.mxu0 0.0
        %1972 = vmatprep.subr.mxu0 0.0
        %1973 = vmatpush1.xpose.msra.mxu0 0.0
        %1974 = vmatprep.subr.mxu0 0.0
        %1975 = vmatpush1.xpose.msra.mxu0 0.0
        %1976 = vmatprep.subr.mxu0 0.0
        %1977 = vmatpush1.xpose.msra.mxu0 0.0
        %1978 = vmatprep.subr.mxu0 0.0
        %1979 = vmatpush1.xpose.msra.mxu0 0.0
        %1980 = vmatprep.subr.mxu0 0.0
        %1981 = vmatpush1.xpose.msra.mxu0 0.0
        %1982 = vmatprep.subr.mxu0 0.0
        %1983 = vmatpush1.xpose.msra.mxu0 %v1952
        %1984 = vmatprep.subr.mxu0 0.0
        %1985 = vmatpush1.xpose.msra.mxu0 %v1949
        %1986 = vmatprep.subr.mxu0 0.0
        %1987 = vmatpush2.xpose.msra.mxu0 0.0
        %1988 = vmatprep.subr.mxu0 0.0
        %1989 = vmatpush2.xpose.msra.mxu0 0.0
        %1990 = vmatprep.subr.mxu0 0.0
        %1991 = vmatpush2.xpose.msra.mxu0 0.0
        %1992 = vmatprep.subr.mxu0 0.0
        %1993 = vmatpush2.xpose.msra.mxu0 0.0
        %1994 = vmatprep.subr.mxu0 0.0
        %1995 = vmatpush2.xpose.msra.mxu0 0.0
        %1996 = vmatprep.subr.mxu0 0.0
        %1997 = vmatpush2.xpose.msra.mxu0 0.0
        %1998 = vmatprep.subr.mxu0 0.0
        %1999 = vmatpush2.xpose.msra.mxu0 0.0
        %2000 = vmatprep.subr.mxu0 0.0
        %2001 = vmatpush2.xpose.msra.mxu0 0.0
        %2002 = vmatprep.subr.mxu0 0.0
        %2003 = vmatpush2.xpose.msra.mxu0 0.0
        %2004 = vmatprep.subr.mxu0 0.0
        %2005 = vmatpush2.xpose.msra.mxu0 0.0
        %2006 = vmatprep.subr.mxu0 0.0
        %2007 = vmatpush2.xpose.msra.mxu0 0.0
        %2008 = vmatprep.subr.mxu0 0.0
        %2009 = vmatpush2.xpose.msra.mxu0 0.0
        %2010 = vmatprep.subr.mxu0 0.0
        %2011 = vmatpush2.xpose.msra.mxu0 0.0
        %2012 = vmatprep.subr.mxu0 0.0
        %2013 = vmatpush2.xpose.msra.mxu0 0.0
        %2014 = vmatprep.subr.mxu0 0.0
        %2015 = vmatpush2.xpose.msra.mxu0 0.0
        %2016 = vmatprep.subr.mxu0 0.0
        %2017 = vmatpush2.xpose.msra.mxu0 0.0
        %2018 = vmatprep.mubr.f32.mxu0 0.0
        %2019 = vmatmul.mubr.f32.gmra.mxu0 %v1943
        %v2020 = vpop.f32.mrf.mxu0
        %v2021 = vadd.f32 0.0, %v2020
        %v2022 = vpop.f32.mrf.mxu0
        %2023 = vmatprep.mubr.f32.mxu0 0.0
        %2024 = vmatmul.mubr.f32.gmra.mxu0 %v1946
        %v2025 = vpop.f32.mrf.mxu0
        %v2026 = vadd.f32 0.0, %v2025
        %v2027 = vpop.f32.mrf.mxu0
        %2028 = vdwg.mxu0
        %vm2029 = vcmask 130048
        %v2030 = vsel %vm2029, %v1760, -inf
        %2031 = vmax.xlane.f32.xlu0 %v2030
        %v2032 = vpop.xlane.xlu0 %2031
        %v2033 = vsel %vm2029, %v1765, -inf
        %2034 = vmax.xlane.f32.xlu0 %v2033
        %v2035 = vpop.xlane.xlu0 %2034
        %v2036 = vsel %vm2029, %v1847, -inf
        %2037 = vmax.xlane.f32.xlu0 %v2036
        %v2038 = vpop.xlane.xlu0 %2037
        %v2039 = vsel %vm2029, %v1852, -inf
        %2040 = vmax.xlane.f32.xlu0 %v2039
        %v2041 = vpop.xlane.xlu0 %2040
        %v2042 = vsel %vm2029, %v1934, -inf
        %2043 = vmax.xlane.f32.xlu0 %v2042
        %v2044 = vpop.xlane.xlu0 %2043
        %v2045 = vsel %vm2029, %v1939, -inf
        %2046 = vmax.xlane.f32.xlu0 %v2045
        %v2047 = vpop.xlane.xlu0 %2046
        %v2048 = vsel %vm2029, %v2021, -inf
        %2049 = vmax.xlane.f32.xlu0 %v2048
        %v2050 = vpop.xlane.xlu0 %2049
        %v2051 = vsel %vm2029, %v2026, -inf
        %2052 = vmax.xlane.f32.xlu0 %v2051
        %v2053 = vpop.xlane.xlu0 %2052
        %v2054 = vsub.f32 %v1760, %v2032
        %v2055 = vsub.f32 %v1765, %v2035
        %v2056 = vsub.f32 %v1847, %v2038
        %v2057 = vsub.f32 %v1852, %v2041
        %v2058 = vsub.f32 %v1934, %v2044
        %v2059 = vsub.f32 %v1939, %v2047
        %v2060 = vsub.f32 %v2021, %v2050
        %v2061 = vsub.f32 %v2026, %v2053
        %v2062 = vmul.f32 %v2054, 1.442695
        %v2063 = vpow.pop %v2062
        %v2064 = vmul.f32 %v2055, 1.442695
        %v2065 = vpow.pop %v2064
        %v2066 = vmul.f32 %v2056, 1.442695
        %v2067 = vpow.pop %v2066
        %v2068 = vmul.f32 %v2057, 1.442695
        %v2069 = vpow.pop %v2068
        %v2070 = vmul.f32 %v2058, 1.442695
        %v2071 = vpow.pop %v2070
        %v2072 = vmul.f32 %v2059, 1.442695
        %v2073 = vpow.pop %v2072
        %v2074 = vmul.f32 %v2060, 1.442695
        %v2075 = vpow.pop %v2074
        %v2076 = vmul.f32 %v2061, 1.442695
        %v2077 = vpow.pop %v2076
        %v2078 = vsel %vm2029, %v2063, 0.0
        %2079 = vadd.xlane.f32.xlu0 %v2078
        %v2080 = vpop.xlane.xlu0 %2079
        %v2081 = vsel %vm2029, %v2065, 0.0
        %2082 = vadd.xlane.f32.xlu0 %v2081
        %v2083 = vpop.xlane.xlu0 %2082
        %v2084 = vsel %vm2029, %v2067, 0.0
        %2085 = vadd.xlane.f32.xlu0 %v2084
        %v2086 = vpop.xlane.xlu0 %2085
        %v2087 = vsel %vm2029, %v2069, 0.0
        %2088 = vadd.xlane.f32.xlu0 %v2087
        %v2089 = vpop.xlane.xlu0 %2088
        %v2090 = vsel %vm2029, %v2071, 0.0
        %2091 = vadd.xlane.f32.xlu0 %v2090
        %v2092 = vpop.xlane.xlu0 %2091
        %v2093 = vsel %vm2029, %v2073, 0.0
        %2094 = vadd.xlane.f32.xlu0 %v2093
        %v2095 = vpop.xlane.xlu0 %2094
        %v2096 = vsel %vm2029, %v2075, 0.0
        %2097 = vadd.xlane.f32.xlu0 %v2096
        %v2098 = vpop.xlane.xlu0 %2097
        %v2099 = vsel %vm2029, %v2077, 0.0
        %2100 = vadd.xlane.f32.xlu0 %v2099
        %v2101 = vpop.xlane.xlu0 %2100
        %v2102 = vrcp.pop %v2080
        %v2103 = vrcp.pop %v2083
        %v2104 = vrcp.pop %v2086
        %v2105 = vrcp.pop %v2089
        %v2106 = vrcp.pop %v2092
        %v2107 = vrcp.pop %v2095
        %v2108 = vrcp.pop %v2098
        %v2109 = vrcp.pop %v2101
        %v2110 = vmul.f32 %v2063, %v2102
        %v2111 = vmul.f32 %v2065, %v2103
        %v2112 = vmul.f32 %v2067, %v2104
        %v2113 = vmul.f32 %v2069, %v2105
        %v2114 = vmul.f32 %v2071, %v2106
        %v2115 = vmul.f32 %v2073, %v2107
        %v2116 = vmul.f32 %v2075, %v2108
        %v2117 = vmul.f32 %v2077, %v2109
        %v2119 = vsel %vm2029, %v2110, 0
        %v2122 = vsel %vm2029, %v2111, 0
        %2124 = vmatprep.subr.mxu0 0.0
        %2125 = vmatpush1.msra.mxu0 0.0
        %2126 = vmatprep.subr.mxu0 0.0
        %2127 = vmatpush1.msra.mxu0 0.0
        %2128 = vmatprep.subr.mxu0 0.0
        %2129 = vmatpush1.msra.mxu0 0.0
        %2130 = vmatprep.subr.mxu0 0.0
        %2131 = vmatpush1.msra.mxu0 0.0
        %2132 = vmatprep.subr.mxu0 0.0
        %2133 = vmatpush1.msra.mxu0 0.0
        %2134 = vmatprep.subr.mxu0 0.0
        %2135 = vmatpush1.msra.mxu0 0.0
        %2136 = vmatprep.subr.mxu0 0.0
        %2137 = vmatpush1.msra.mxu0 0.0
        %2138 = vmatprep.subr.mxu0 0.0
        %2139 = vmatpush1.msra.mxu0 0.0
        %2140 = vmatprep.subr.mxu0 0.0
        %2141 = vmatpush1.msra.mxu0 0.0
        %2142 = vmatprep.subr.mxu0 0.0
        %2143 = vmatpush1.msra.mxu0 0.0
        %2144 = vmatprep.subr.mxu0 0.0
        %2145 = vmatpush1.msra.mxu0 0.0
        %2146 = vmatprep.subr.mxu0 0.0
        %2147 = vmatpush1.msra.mxu0 0.0
        %2148 = vmatprep.subr.mxu0 0.0
        %2149 = vmatpush1.msra.mxu0 0.0
        %2150 = vmatprep.subr.mxu0 0.0
        %2151 = vmatpush1.msra.mxu0 0.0
        %2152 = vmatprep.subr.mxu0 0.0
        %2153 = vmatpush1.msra.mxu0 %v1676
        %2154 = vmatprep.subr.mxu0 0.0
        %2155 = vmatpush1.msra.mxu0 %v1608
        %2156 = vmatprep.subr.mxu0 0.0
        %2157 = vmatpush2.msra.mxu0 0.0
        %2158 = vmatprep.subr.mxu0 0.0
        %2159 = vmatpush2.msra.mxu0 0.0
        %2160 = vmatprep.subr.mxu0 0.0
        %2161 = vmatpush2.msra.mxu0 0.0
        %2162 = vmatprep.subr.mxu0 0.0
        %2163 = vmatpush2.msra.mxu0 0.0
        %2164 = vmatprep.subr.mxu0 0.0
        %2165 = vmatpush2.msra.mxu0 0.0
        %2166 = vmatprep.subr.mxu0 0.0
        %2167 = vmatpush2.msra.mxu0 0.0
        %2168 = vmatprep.subr.mxu0 0.0
        %2169 = vmatpush2.msra.mxu0 0.0
        %2170 = vmatprep.subr.mxu0 0.0
        %2171 = vmatpush2.msra.mxu0 0.0
        %2172 = vmatprep.subr.mxu0 0.0
        %2173 = vmatpush2.msra.mxu0 0.0
        %2174 = vmatprep.subr.mxu0 0.0
        %2175 = vmatpush2.msra.mxu0 0.0
        %2176 = vmatprep.subr.mxu0 0.0
        %2177 = vmatpush2.msra.mxu0 0.0
        %2178 = vmatprep.subr.mxu0 0.0
        %2179 = vmatpush2.msra.mxu0 0.0
        %2180 = vmatprep.subr.mxu0 0.0
        %2181 = vmatpush2.msra.mxu0 0.0
        %2182 = vmatprep.subr.mxu0 0.0
        %2183 = vmatpush2.msra.mxu0 0.0
        %2184 = vmatprep.subr.mxu0 0.0
        %2185 = vmatpush2.msra.mxu0 0.0
        %2186 = vmatprep.subr.mxu0 0.0
        %2187 = vmatpush2.msra.mxu0 0.0
        %2188 = vmatprep.mubr.f32.mxu0 0.0
        %2189 = vmatmul.mubr.f32.gmra.mxu0 %v2119
        %v2190 = vpop.f32.mrf.mxu0
        %v2191 = vadd.f32 0.0, %v2190
        %v2192 = vpop.f32.mrf.mxu0
        %2193 = vmatprep.mubr.f32.mxu0 0.0
        %2194 = vmatmul.mubr.f32.gmra.mxu0 %v2122
        %v2195 = vpop.f32.mrf.mxu0
        %v2196 = vadd.f32 0.0, %v2195
        %v2197 = vpop.f32.mrf.mxu0
        %2198 = vdwg.mxu0
        %v2200 = vsel %vm2029, %v2112, 0
        %v2203 = vsel %vm2029, %v2113, 0
        %2205 = vmatprep.subr.mxu0 0.0
        %2206 = vmatpush1.msra.mxu0 0.0
        %2207 = vmatprep.subr.mxu0 0.0
        %2208 = vmatpush1.msra.mxu0 0.0
        %2209 = vmatprep.subr.mxu0 0.0
        %2210 = vmatpush1.msra.mxu0 0.0
        %2211 = vmatprep.subr.mxu0 0.0
        %2212 = vmatpush1.msra.mxu0 0.0
        %2213 = vmatprep.subr.mxu0 0.0
        %2214 = vmatpush1.msra.mxu0 0.0
        %2215 = vmatprep.subr.mxu0 0.0
        %2216 = vmatpush1.msra.mxu0 0.0
        %2217 = vmatprep.subr.mxu0 0.0
        %2218 = vmatpush1.msra.mxu0 0.0
        %2219 = vmatprep.subr.mxu0 0.0
        %2220 = vmatpush1.msra.mxu0 0.0
        %2221 = vmatprep.subr.mxu0 0.0
        %2222 = vmatpush1.msra.mxu0 0.0
        %2223 = vmatprep.subr.mxu0 0.0
        %2224 = vmatpush1.msra.mxu0 0.0
        %2225 = vmatprep.subr.mxu0 0.0
        %2226 = vmatpush1.msra.mxu0 0.0
        %2227 = vmatprep.subr.mxu0 0.0
        %2228 = vmatpush1.msra.mxu0 0.0
        %2229 = vmatprep.subr.mxu0 0.0
        %2230 = vmatpush1.msra.mxu0 0.0
        %2231 = vmatprep.subr.mxu0 0.0
        %2232 = vmatpush1.msra.mxu0 0.0
        %2233 = vmatprep.subr.mxu0 0.0
        %2234 = vmatpush1.msra.mxu0 %v1677
        %2235 = vmatprep.subr.mxu0 0.0
        %2236 = vmatpush1.msra.mxu0 %v1609
        %2237 = vmatprep.subr.mxu0 0.0
        %2238 = vmatpush2.msra.mxu0 0.0
        %2239 = vmatprep.subr.mxu0 0.0
        %2240 = vmatpush2.msra.mxu0 0.0
        %2241 = vmatprep.subr.mxu0 0.0
        %2242 = vmatpush2.msra.mxu0 0.0
        %2243 = vmatprep.subr.mxu0 0.0
        %2244 = vmatpush2.msra.mxu0 0.0
        %2245 = vmatprep.subr.mxu0 0.0
        %2246 = vmatpush2.msra.mxu0 0.0
        %2247 = vmatprep.subr.mxu0 0.0
        %2248 = vmatpush2.msra.mxu0 0.0
        %2249 = vmatprep.subr.mxu0 0.0
        %2250 = vmatpush2.msra.mxu0 0.0
        %2251 = vmatprep.subr.mxu0 0.0
        %2252 = vmatpush2.msra.mxu0 0.0
        %2253 = vmatprep.subr.mxu0 0.0
        %2254 = vmatpush2.msra.mxu0 0.0
        %2255 = vmatprep.subr.mxu0 0.0
        %2256 = vmatpush2.msra.mxu0 0.0
        %2257 = vmatprep.subr.mxu0 0.0
        %2258 = vmatpush2.msra.mxu0 0.0
        %2259 = vmatprep.subr.mxu0 0.0
        %2260 = vmatpush2.msra.mxu0 0.0
        %2261 = vmatprep.subr.mxu0 0.0
        %2262 = vmatpush2.msra.mxu0 0.0
        %2263 = vmatprep.subr.mxu0 0.0
        %2264 = vmatpush2.msra.mxu0 0.0
        %2265 = vmatprep.subr.mxu0 0.0
        %2266 = vmatpush2.msra.mxu0 0.0
        %2267 = vmatprep.subr.mxu0 0.0
        %2268 = vmatpush2.msra.mxu0 0.0
        %2269 = vmatprep.mubr.f32.mxu0 0.0
        %2270 = vmatmul.mubr.f32.gmra.mxu0 %v2200
        %v2271 = vpop.f32.mrf.mxu0
        %v2272 = vadd.f32 0.0, %v2271
        %v2273 = vpop.f32.mrf.mxu0
        %2274 = vmatprep.mubr.f32.mxu0 0.0
        %2275 = vmatmul.mubr.f32.gmra.mxu0 %v2203
        %v2276 = vpop.f32.mrf.mxu0
        %v2277 = vadd.f32 0.0, %v2276
        %v2278 = vpop.f32.mrf.mxu0
        %2279 = vdwg.mxu0
        %v2281 = vsel %vm2029, %v2114, 0
        %v2284 = vsel %vm2029, %v2115, 0
        %2286 = vmatprep.subr.mxu0 0.0
        %2287 = vmatpush1.msra.mxu0 0.0
        %2288 = vmatprep.subr.mxu0 0.0
        %2289 = vmatpush1.msra.mxu0 0.0
        %2290 = vmatprep.subr.mxu0 0.0
        %2291 = vmatpush1.msra.mxu0 0.0
        %2292 = vmatprep.subr.mxu0 0.0
        %2293 = vmatpush1.msra.mxu0 0.0
        %2294 = vmatprep.subr.mxu0 0.0
        %2295 = vmatpush1.msra.mxu0 0.0
        %2296 = vmatprep.subr.mxu0 0.0
        %2297 = vmatpush1.msra.mxu0 0.0
        %2298 = vmatprep.subr.mxu0 0.0
        %2299 = vmatpush1.msra.mxu0 0.0
        %2300 = vmatprep.subr.mxu0 0.0
        %2301 = vmatpush1.msra.mxu0 0.0
        %2302 = vmatprep.subr.mxu0 0.0
        %2303 = vmatpush1.msra.mxu0 0.0
        %2304 = vmatprep.subr.mxu0 0.0
        %2305 = vmatpush1.msra.mxu0 0.0
        %2306 = vmatprep.subr.mxu0 0.0
        %2307 = vmatpush1.msra.mxu0 0.0
        %2308 = vmatprep.subr.mxu0 0.0
        %2309 = vmatpush1.msra.mxu0 0.0
        %2310 = vmatprep.subr.mxu0 0.0
        %2311 = vmatpush1.msra.mxu0 0.0
        %2312 = vmatprep.subr.mxu0 0.0
        %2313 = vmatpush1.msra.mxu0 0.0
        %2314 = vmatprep.subr.mxu0 0.0
        %2315 = vmatpush1.msra.mxu0 %v1678
        %2316 = vmatprep.subr.mxu0 0.0
        %2317 = vmatpush1.msra.mxu0 %v1610
        %2318 = vmatprep.subr.mxu0 0.0
        %2319 = vmatpush2.msra.mxu0 0.0
        %2320 = vmatprep.subr.mxu0 0.0
        %2321 = vmatpush2.msra.mxu0 0.0
        %2322 = vmatprep.subr.mxu0 0.0
        %2323 = vmatpush2.msra.mxu0 0.0
        %2324 = vmatprep.subr.mxu0 0.0
        %2325 = vmatpush2.msra.mxu0 0.0
        %2326 = vmatprep.subr.mxu0 0.0
        %2327 = vmatpush2.msra.mxu0 0.0
        %2328 = vmatprep.subr.mxu0 0.0
        %2329 = vmatpush2.msra.mxu0 0.0
        %2330 = vmatprep.subr.mxu0 0.0
        %2331 = vmatpush2.msra.mxu0 0.0
        %2332 = vmatprep.subr.mxu0 0.0
        %2333 = vmatpush2.msra.mxu0 0.0
        %2334 = vmatprep.subr.mxu0 0.0
        %2335 = vmatpush2.msra.mxu0 0.0
        %2336 = vmatprep.subr.mxu0 0.0
        %2337 = vmatpush2.msra.mxu0 0.0
        %2338 = vmatprep.subr.mxu0 0.0
        %2339 = vmatpush2.msra.mxu0 0.0
        %2340 = vmatprep.subr.mxu0 0.0
        %2341 = vmatpush2.msra.mxu0 0.0
        %2342 = vmatprep.subr.mxu0 0.0
        %2343 = vmatpush2.msra.mxu0 0.0
        %2344 = vmatprep.subr.mxu0 0.0
        %2345 = vmatpush2.msra.mxu0 0.0
        %2346 = vmatprep.subr.mxu0 0.0
        %2347 = vmatpush2.msra.mxu0 0.0
        %2348 = vmatprep.subr.mxu0 0.0
        %2349 = vmatpush2.msra.mxu0 0.0
        %2350 = vmatprep.mubr.f32.mxu0 0.0
        %2351 = vmatmul.mubr.f32.gmra.mxu0 %v2281
        %v2352 = vpop.f32.mrf.mxu0
        %v2353 = vadd.f32 0.0, %v2352
        %v2354 = vpop.f32.mrf.mxu0
        %2355 = vmatprep.mubr.f32.mxu0 0.0
        %2356 = vmatmul.mubr.f32.gmra.mxu0 %v2284
        %v2357 = vpop.f32.mrf.mxu0
        %v2358 = vadd.f32 0.0, %v2357
        %v2359 = vpop.f32.mrf.mxu0
        %2360 = vdwg.mxu0
        %v2362 = vsel %vm2029, %v2116, 0
        %v2365 = vsel %vm2029, %v2117, 0
        %2367 = vmatprep.subr.mxu0 0.0
        %2368 = vmatpush1.msra.mxu0 0.0
        %2369 = vmatprep.subr.mxu0 0.0
        %2370 = vmatpush1.msra.mxu0 0.0
        %2371 = vmatprep.subr.mxu0 0.0
        %2372 = vmatpush1.msra.mxu0 0.0
        %2373 = vmatprep.subr.mxu0 0.0
        %2374 = vmatpush1.msra.mxu0 0.0
        %2375 = vmatprep.subr.mxu0 0.0
        %2376 = vmatpush1.msra.mxu0 0.0
        %2377 = vmatprep.subr.mxu0 0.0
        %2378 = vmatpush1.msra.mxu0 0.0
        %2379 = vmatprep.subr.mxu0 0.0
        %2380 = vmatpush1.msra.mxu0 0.0
        %2381 = vmatprep.subr.mxu0 0.0
        %2382 = vmatpush1.msra.mxu0 0.0
        %2383 = vmatprep.subr.mxu0 0.0
        %2384 = vmatpush1.msra.mxu0 0.0
        %2385 = vmatprep.subr.mxu0 0.0
        %2386 = vmatpush1.msra.mxu0 0.0
        %2387 = vmatprep.subr.mxu0 0.0
        %2388 = vmatpush1.msra.mxu0 0.0
        %2389 = vmatprep.subr.mxu0 0.0
        %2390 = vmatpush1.msra.mxu0 0.0
        %2391 = vmatprep.subr.mxu0 0.0
        %2392 = vmatpush1.msra.mxu0 0.0
        %2393 = vmatprep.subr.mxu0 0.0
        %2394 = vmatpush1.msra.mxu0 0.0
        %2395 = vmatprep.subr.mxu0 0.0
        %2396 = vmatpush1.msra.mxu0 %v1679
        %2397 = vmatprep.subr.mxu0 0.0
        %2398 = vmatpush1.msra.mxu0 %v1611
        %2399 = vmatprep.subr.mxu0 0.0
        %2400 = vmatpush2.msra.mxu0 0.0
        %2401 = vmatprep.subr.mxu0 0.0
        %2402 = vmatpush2.msra.mxu0 0.0
        %2403 = vmatprep.subr.mxu0 0.0
        %2404 = vmatpush2.msra.mxu0 0.0
        %2405 = vmatprep.subr.mxu0 0.0
        %2406 = vmatpush2.msra.mxu0 0.0
        %2407 = vmatprep.subr.mxu0 0.0
        %2408 = vmatpush2.msra.mxu0 0.0
        %2409 = vmatprep.subr.mxu0 0.0
        %2410 = vmatpush2.msra.mxu0 0.0
        %2411 = vmatprep.subr.mxu0 0.0
        %2412 = vmatpush2.msra.mxu0 0.0
        %2413 = vmatprep.subr.mxu0 0.0
        %2414 = vmatpush2.msra.mxu0 0.0
        %2415 = vmatprep.subr.mxu0 0.0
        %2416 = vmatpush2.msra.mxu0 0.0
        %2417 = vmatprep.subr.mxu0 0.0
        %2418 = vmatpush2.msra.mxu0 0.0
        %2419 = vmatprep.subr.mxu0 0.0
        %2420 = vmatpush2.msra.mxu0 0.0
        %2421 = vmatprep.subr.mxu0 0.0
        %2422 = vmatpush2.msra.mxu0 0.0
        %2423 = vmatprep.subr.mxu0 0.0
        %2424 = vmatpush2.msra.mxu0 0.0
        %2425 = vmatprep.subr.mxu0 0.0
        %2426 = vmatpush2.msra.mxu0 0.0
        %2427 = vmatprep.subr.mxu0 0.0
        %2428 = vmatpush2.msra.mxu0 0.0
        %2429 = vmatprep.subr.mxu0 0.0
        %2430 = vmatpush2.msra.mxu0 0.0
        %2431 = vmatprep.mubr.f32.mxu0 0.0
        %2432 = vmatmul.mubr.f32.gmra.mxu0 %v2362
        %v2433 = vpop.f32.mrf.mxu0
        %v2434 = vadd.f32 0.0, %v2433
        %v2435 = vpop.f32.mrf.mxu0
        %2436 = vmatprep.mubr.f32.mxu0 0.0
        %2437 = vmatmul.mubr.f32.gmra.mxu0 %v2365
        %v2438 = vpop.f32.mrf.mxu0
        %v2439 = vadd.f32 0.0, %v2438
        %v2440 = vpop.f32.mrf.mxu0
        %2441 = vdwg.mxu0
        %v2442 = vcombine.low %v2191, %v2353
        %v2443 = vcombine.high %v2191, %v2353
        %v2445 = vunpack.c.l.s4 1983009808
        %v2446 = vunpack.c.0.s8 %v2445
        %v2447 = vlaneseq
        %v2448 = vshrl.u32 %v2447, 7
        %v2449 = vsub.s32 %v2446, %v2448
        %v2450 = vrot.slane %v2442, %v2449
        %v2452 = vunpack.c.l.s4 1983009808
        %v2453 = vunpack.c.0.s8 %v2452
        %v2454 = vlaneseq
        %v2455 = vshrl.u32 %v2454, 7
        %v2456 = vsub.s32 %v2453, %v2455
        %v2457 = vrot.slane %v2443, %v2456
        %v2458 = vcombine.low %v2272, %v2434
        %v2459 = vcombine.high %v2272, %v2434
        %v2461 = vunpack.c.l.s4 1983009808
        %v2462 = vunpack.c.0.s8 %v2461
        %v2463 = vlaneseq
        %v2464 = vshrl.u32 %v2463, 7
        %v2465 = vsub.s32 %v2462, %v2464
        %v2466 = vrot.slane %v2458, %v2465
        %v2468 = vunpack.c.l.s4 1983009808
        %v2469 = vunpack.c.0.s8 %v2468
        %v2470 = vlaneseq
        %v2471 = vshrl.u32 %v2470, 7
        %v2472 = vsub.s32 %v2469, %v2471
        %v2473 = vrot.slane %v2459, %v2472
        %v2474 = vcombine.low %v2450, %v2466
        %v2475 = vcombine.high %v2450, %v2466
        %v2477 = vunpack.c.l.s4 1934713408
        %v2478 = vunpack.c.0.s8 %v2477
        %v2479 = vlaneseq
        %v2480 = vshrl.u32 %v2479, 7
        %v2481 = vsub.s32 %v2478, %v2480
        %v2482 = vrot.slane %v2474, %v2481
        %v2484 = vunpack.c.l.s4 1934713408
        %v2485 = vunpack.c.0.s8 %v2484
        %v2486 = vlaneseq
        %v2487 = vshrl.u32 %v2486, 7
        %v2488 = vsub.s32 %v2485, %v2487
        %v2489 = vrot.slane %v2475, %v2488
        %v2490 = vcombine.low %v2457, %v2473
        %v2491 = vcombine.high %v2457, %v2473
        %v2493 = vunpack.c.l.s4 1934713408
        %v2494 = vunpack.c.0.s8 %v2493
        %v2495 = vlaneseq
        %v2496 = vshrl.u32 %v2495, 7
        %v2497 = vsub.s32 %v2494, %v2496
        %v2498 = vrot.slane %v2490, %v2497
        %v2500 = vunpack.c.l.s4 1934713408
        %v2501 = vunpack.c.0.s8 %v2500
        %v2502 = vlaneseq
        %v2503 = vshrl.u32 %v2502, 7
        %v2504 = vsub.s32 %v2501, %v2503
        %v2505 = vrot.slane %v2491, %v2504
        %v2506 = vcombine.high %v2482, 0.0
        %v2507 = vcombine.high %v2489, 0.0
        %v2508 = vcombine.high %v2498, 0.0
        %v2509 = vcombine.high %v2505, 0.0
        %v2510 = vcombine.low %v2196, %v2358
        %v2511 = vcombine.high %v2196, %v2358
        %v2513 = vunpack.c.l.s4 1983009808
        %v2514 = vunpack.c.0.s8 %v2513
        %v2515 = vlaneseq
        %v2516 = vshrl.u32 %v2515, 7
        %v2517 = vsub.s32 %v2514, %v2516
        %v2518 = vrot.slane %v2510, %v2517
        %v2520 = vunpack.c.l.s4 1983009808
        %v2521 = vunpack.c.0.s8 %v2520
        %v2522 = vlaneseq
        %v2523 = vshrl.u32 %v2522, 7
        %v2524 = vsub.s32 %v2521, %v2523
        %v2525 = vrot.slane %v2511, %v2524
        %v2526 = vcombine.low %v2277, %v2439
        %v2527 = vcombine.high %v2277, %v2439
        %v2529 = vunpack.c.l.s4 1983009808
        %v2530 = vunpack.c.0.s8 %v2529
        %v2531 = vlaneseq
        %v2532 = vshrl.u32 %v2531, 7
        %v2533 = vsub.s32 %v2530, %v2532
        %v2534 = vrot.slane %v2526, %v2533
        %v2536 = vunpack.c.l.s4 1983009808
        %v2537 = vunpack.c.0.s8 %v2536
        %v2538 = vlaneseq
        %v2539 = vshrl.u32 %v2538, 7
        %v2540 = vsub.s32 %v2537, %v2539
        %v2541 = vrot.slane %v2527, %v2540
        %v2542 = vcombine.low %v2518, %v2534
        %v2543 = vcombine.high %v2518, %v2534
        %v2545 = vunpack.c.l.s4 1934713408
        %v2546 = vunpack.c.0.s8 %v2545
        %v2547 = vlaneseq
        %v2548 = vshrl.u32 %v2547, 7
        %v2549 = vsub.s32 %v2546, %v2548
        %v2550 = vrot.slane %v2542, %v2549
        %v2552 = vunpack.c.l.s4 1934713408
        %v2553 = vunpack.c.0.s8 %v2552
        %v2554 = vlaneseq
        %v2555 = vshrl.u32 %v2554, 7
        %v2556 = vsub.s32 %v2553, %v2555
        %v2557 = vrot.slane %v2543, %v2556
        %v2558 = vcombine.low %v2525, %v2541
        %v2559 = vcombine.high %v2525, %v2541
        %v2561 = vunpack.c.l.s4 1934713408
        %v2562 = vunpack.c.0.s8 %v2561
        %v2563 = vlaneseq
        %v2564 = vshrl.u32 %v2563, 7
        %v2565 = vsub.s32 %v2562, %v2564
        %v2566 = vrot.slane %v2558, %v2565
        %v2568 = vunpack.c.l.s4 1934713408
        %v2569 = vunpack.c.0.s8 %v2568
        %v2570 = vlaneseq
        %v2571 = vshrl.u32 %v2570, 7
        %v2572 = vsub.s32 %v2569, %v2571
        %v2573 = vrot.slane %v2559, %v2572
        %v2574 = vcombine.high %v2550, 0.0
        %v2575 = vcombine.high %v2557, 0.0
        %v2576 = vcombine.high %v2566, 0.0
        %v2577 = vcombine.high %v2573, 0.0
        %v2578 = vcombine.low %v2482, %v2489
        %v2580 = vunpack.c.l.s4 1983009808
        %v2581 = vunpack.c.0.s8 %v2580
        %v2582 = vlaneseq
        %v2583 = vshrl.u32 %v2582, 7
        %v2584 = vsub.s32 %v2581, %v2583
        %v2585 = vrot.slane %v2578, %v2584
        %v2586 = vcombine.low %v2506, %v2507
        %v2588 = vunpack.c.l.s4 1983009808
        %v2589 = vunpack.c.0.s8 %v2588
        %v2590 = vlaneseq
        %v2591 = vshrl.u32 %v2590, 7
        %v2592 = vsub.s32 %v2589, %v2591
        %v2593 = vrot.slane %v2586, %v2592
        %v2594 = vcombine.low %v2498, %v2505
        %v2596 = vunpack.c.l.s4 1983009808
        %v2597 = vunpack.c.0.s8 %v2596
        %v2598 = vlaneseq
        %v2599 = vshrl.u32 %v2598, 7
        %v2600 = vsub.s32 %v2597, %v2599
        %v2601 = vrot.slane %v2594, %v2600
        %v2602 = vcombine.low %v2508, %v2509
        %v2604 = vunpack.c.l.s4 1983009808
        %v2605 = vunpack.c.0.s8 %v2604
        %v2606 = vlaneseq
        %v2607 = vshrl.u32 %v2606, 7
        %v2608 = vsub.s32 %v2605, %v2607
        %v2609 = vrot.slane %v2602, %v2608
        %v2610 = vcombine.low %v2585, %v2593
        %v2611 = vcombine.high %v2585, %v2593
        %v2613 = vunpack.c.l.s4 1934713408
        %v2614 = vunpack.c.0.s8 %v2613
        %v2615 = vlaneseq
        %v2616 = vshrl.u32 %v2615, 7
        %v2617 = vsub.s32 %v2614, %v2616
        %v2618 = vrot.slane %v2610, %v2617
        %v2620 = vunpack.c.l.s4 1934713408
        %v2621 = vunpack.c.0.s8 %v2620
        %v2622 = vlaneseq
        %v2623 = vshrl.u32 %v2622, 7
        %v2624 = vsub.s32 %v2621, %v2623
        %v2625 = vrot.slane %v2611, %v2624
        %v2626 = vcombine.low %v2601, %v2609
        %v2627 = vcombine.high %v2601, %v2609
        %v2629 = vunpack.c.l.s4 1934713408
        %v2630 = vunpack.c.0.s8 %v2629
        %v2631 = vlaneseq
        %v2632 = vshrl.u32 %v2631, 7
        %v2633 = vsub.s32 %v2630, %v2632
        %v2634 = vrot.slane %v2626, %v2633
        %v2636 = vunpack.c.l.s4 1934713408
        %v2637 = vunpack.c.0.s8 %v2636
        %v2638 = vlaneseq
        %v2639 = vshrl.u32 %v2638, 7
        %v2640 = vsub.s32 %v2637, %v2639
        %v2641 = vrot.slane %v2627, %v2640
        %v2642 = vcombine.low %v2618, %v2634
        %v2643 = vcombine.high %v2618, %v2634
        %v2644 = vcombine.low %v2625, %v2641
        %v2645 = vcombine.high %v2625, %v2641
        %v2646 = vcombine.low %v2550, %v2557
        %v2648 = vunpack.c.l.s4 1983009808
        %v2649 = vunpack.c.0.s8 %v2648
        %v2650 = vlaneseq
        %v2651 = vshrl.u32 %v2650, 7
        %v2652 = vsub.s32 %v2649, %v2651
        %v2653 = vrot.slane %v2646, %v2652
        %v2654 = vcombine.low %v2574, %v2575
        %v2656 = vunpack.c.l.s4 1983009808
        %v2657 = vunpack.c.0.s8 %v2656
        %v2658 = vlaneseq
        %v2659 = vshrl.u32 %v2658, 7
        %v2660 = vsub.s32 %v2657, %v2659
        %v2661 = vrot.slane %v2654, %v2660
        %v2662 = vcombine.low %v2566, %v2573
        %v2664 = vunpack.c.l.s4 1983009808
        %v2665 = vunpack.c.0.s8 %v2664
        %v2666 = vlaneseq
        %v2667 = vshrl.u32 %v2666, 7
        %v2668 = vsub.s32 %v2665, %v2667
        %v2669 = vrot.slane %v2662, %v2668
        %v2670 = vcombine.low %v2576, %v2577
        %v2672 = vunpack.c.l.s4 1983009808
        %v2673 = vunpack.c.0.s8 %v2672
        %v2674 = vlaneseq
        %v2675 = vshrl.u32 %v2674, 7
        %v2676 = vsub.s32 %v2673, %v2675
        %v2677 = vrot.slane %v2670, %v2676
        %v2678 = vcombine.low %v2653, %v2661
        %v2679 = vcombine.high %v2653, %v2661
        %v2681 = vunpack.c.l.s4 1934713408
        %v2682 = vunpack.c.0.s8 %v2681
        %v2683 = vlaneseq
        %v2684 = vshrl.u32 %v2683, 7
        %v2685 = vsub.s32 %v2682, %v2684
        %v2686 = vrot.slane %v2678, %v2685
        %v2688 = vunpack.c.l.s4 1934713408
        %v2689 = vunpack.c.0.s8 %v2688
        %v2690 = vlaneseq
        %v2691 = vshrl.u32 %v2690, 7
        %v2692 = vsub.s32 %v2689, %v2691
        %v2693 = vrot.slane %v2679, %v2692
        %v2694 = vcombine.low %v2669, %v2677
        %v2695 = vcombine.high %v2669, %v2677
        %v2697 = vunpack.c.l.s4 1934713408
        %v2698 = vunpack.c.0.s8 %v2697
        %v2699 = vlaneseq
        %v2700 = vshrl.u32 %v2699, 7
        %v2701 = vsub.s32 %v2698, %v2700
        %v2702 = vrot.slane %v2694, %v2701
        %v2704 = vunpack.c.l.s4 1934713408
        %v2705 = vunpack.c.0.s8 %v2704
        %v2706 = vlaneseq
        %v2707 = vshrl.u32 %v2706, 7
        %v2708 = vsub.s32 %v2705, %v2707
        %v2709 = vrot.slane %v2695, %v2708
        %v2710 = vcombine.low %v2686, %v2702
        %v2711 = vcombine.high %v2686, %v2702
        %v2712 = vcombine.low %v2693, %v2709
        %v2713 = vcombine.high %v2693, %v2709
        %2716 = vrot.lane.b32.xlu0 %v2643, 32
        %v2717 = vpop.permute.xlu0 %2716
        %2718 = vrot.lane.b32.xlu0 %v2711, 32
        %v2719 = vpop.permute.xlu0 %2718
        %2724 = vrot.lane.b32.xlu0 %v2644, 64
        %v2725 = vpop.permute.xlu0 %2724
        %2726 = vrot.lane.b32.xlu0 %v2712, 64
        %v2727 = vpop.permute.xlu0 %2726
        %2732 = vrot.lane.b32.xlu0 %v2645, 96
        %v2733 = vpop.permute.xlu0 %2732
        %2734 = vrot.lane.b32.xlu0 %v2713, 96
        %v2735 = vpop.permute.xlu0 %2734
        %v2738 = vsel %vm1680, %v2642, %v2717
        %v2739 = vsel %vm1680, %v2710, %v2719
        %vm2740 = vcmask 523264
        %v2741 = vsel %vm2740, %v2738, %v2725
        %v2742 = vsel %vm2740, %v2739, %v2727
        %vm2743 = vcmask 785408
        %v2744 = vsel %vm2743, %v2741, %v2733
        %v2745 = vsel %vm2743, %v2742, %v2735
        %v2746 = vld [vmem:[#allocation10] sm:$0xff]
        %v2747 = vld [vmem:[#allocation10 + $0x8] sm:$0xff]
        %v2748 = vld [vmem:[#allocation10 + $0x10] sm:$0xff]
        %v2749 = vld [vmem:[#allocation10 + $0x18] sm:$0xff]
        %v2750 = vld [vmem:[#allocation10 + $0x20] sm:$0xff]
        %v2751 = vld [vmem:[#allocation10 + $0x28] sm:$0xff]
        %v2752 = vld [vmem:[#allocation10 + $0x30] sm:$0xff]
        %v2753 = vld [vmem:[#allocation10 + $0x38] sm:$0xff]
        %v2754 = vld [vmem:[#allocation10 + $0x40] sm:$0xff]
        %v2755 = vld [vmem:[#allocation10 + $0x48] sm:$0xff]
        %v2756 = vld [vmem:[#allocation10 + $0x50] sm:$0xff]
        %v2757 = vld [vmem:[#allocation10 + $0x58] sm:$0xff]
        %v2758 = vld [vmem:[#allocation10 + $0x60] sm:$0xff]
        %v2759 = vld [vmem:[#allocation10 + $0x68] sm:$0xff]
        %v2760 = vld [vmem:[#allocation10 + $0x70] sm:$0xff]
        %v2761 = vld [vmem:[#allocation10 + $0x78] sm:$0xff]
        %v2762 = vld [vmem:[%s6] sm:$0x1]
        %v2764 = vlaneseq
        %v2765 = vshrl.u32 %v2764, 7
        %v2766 = vsub.s32 0, %v2765
        %v2767 = vrot.slane %v2762, %v2766
        %2769 = vmatprep.subr.mxu0 0.0
        %2770 = vmatpush1.msra.mxu0 %v2761
        %2771 = vmatprep.subr.mxu0 0.0
        %2772 = vmatpush1.msra.mxu0 %v2760
        %2773 = vmatprep.subr.mxu0 0.0
        %2774 = vmatpush1.msra.mxu0 %v2759
        %2775 = vmatprep.subr.mxu0 0.0
        %2776 = vmatpush1.msra.mxu0 %v2758
        %2777 = vmatprep.subr.mxu0 0.0
        %2778 = vmatpush1.msra.mxu0 %v2757
        %2779 = vmatprep.subr.mxu0 0.0
        %2780 = vmatpush1.msra.mxu0 %v2756
        %2781 = vmatprep.subr.mxu0 0.0
        %2782 = vmatpush1.msra.mxu0 %v2755
        %2783 = vmatprep.subr.mxu0 0.0
        %2784 = vmatpush1.msra.mxu0 %v2754
        %2785 = vmatprep.subr.mxu0 0.0
        %2786 = vmatpush1.msra.mxu0 %v2753
        %2787 = vmatprep.subr.mxu0 0.0
        %2788 = vmatpush1.msra.mxu0 %v2752
        %2789 = vmatprep.subr.mxu0 0.0
        %2790 = vmatpush1.msra.mxu0 %v2751
        %2791 = vmatprep.subr.mxu0 0.0
        %2792 = vmatpush1.msra.mxu0 %v2750
        %2793 = vmatprep.subr.mxu0 0.0
        %2794 = vmatpush1.msra.mxu0 %v2749
        %2795 = vmatprep.subr.mxu0 0.0
        %2796 = vmatpush1.msra.mxu0 %v2748
        %2797 = vmatprep.subr.mxu0 0.0
        %2798 = vmatpush1.msra.mxu0 %v2747
        %2799 = vmatprep.subr.mxu0 0.0
        %2800 = vmatpush1.msra.mxu0 %v2746
        %2801 = vmatprep.subr.mxu0 0.0
        %2802 = vmatpush2.msra.mxu0 0.0
        %2803 = vmatprep.subr.mxu0 0.0
        %2804 = vmatpush2.msra.mxu0 0.0
        %2805 = vmatprep.subr.mxu0 0.0
        %2806 = vmatpush2.msra.mxu0 0.0
        %2807 = vmatprep.subr.mxu0 0.0
        %2808 = vmatpush2.msra.mxu0 0.0
        %2809 = vmatprep.subr.mxu0 0.0
        %2810 = vmatpush2.msra.mxu0 0.0
        %2811 = vmatprep.subr.mxu0 0.0
        %2812 = vmatpush2.msra.mxu0 0.0
        %2813 = vmatprep.subr.mxu0 0.0
        %2814 = vmatpush2.msra.mxu0 0.0
        %2815 = vmatprep.subr.mxu0 0.0
        %2816 = vmatpush2.msra.mxu0 0.0
        %2817 = vmatprep.subr.mxu0 0.0
        %2818 = vmatpush2.msra.mxu0 0.0
        %2819 = vmatprep.subr.mxu0 0.0
        %2820 = vmatpush2.msra.mxu0 0.0
        %2821 = vmatprep.subr.mxu0 0.0
        %2822 = vmatpush2.msra.mxu0 0.0
        %2823 = vmatprep.subr.mxu0 0.0
        %2824 = vmatpush2.msra.mxu0 0.0
        %2825 = vmatprep.subr.mxu0 0.0
        %2826 = vmatpush2.msra.mxu0 0.0
        %2827 = vmatprep.subr.mxu0 0.0
        %2828 = vmatpush2.msra.mxu0 0.0
        %2829 = vmatprep.subr.mxu0 0.0
        %2830 = vmatpush2.msra.mxu0 0.0
        %2831 = vmatprep.subr.mxu0 0.0
        %2832 = vmatpush2.msra.mxu0 0.0
        %2833 = vmatprep.mubr.f32.mxu0 0.0
        %2834 = vmatmul.mubr.f32.gmra.mxu0 %v2744
        %v2835 = vpop.f32.mrf.mxu0
        %v2836 = vadd.f32 %v2767, %v2835
        %v2837 = vpop.f32.mrf.mxu0
        %2838 = vmatprep.mubr.f32.mxu0 0.0
        %2839 = vmatmul.mubr.f32.gmra.mxu0 %v2745
        %v2840 = vpop.f32.mrf.mxu0
        %v2841 = vadd.f32 %v2767, %v2840
        %v2842 = vpop.f32.mrf.mxu0
        %2843 = vdwg.mxu0
        %v2844 = vadd.f32 %v542, %v2836
        %v2845 = vadd.f32 %v543, %v2841
        %v2846 = vld [vmem:[%s7] sm:$0x1]
        %v2847 = vld [vmem:[%s8] sm:$0x1]
        %2848 = vadd.xlane.f32.xlu0 %v2844
        %v2849 = vpop.xlane.xlu0 %2848
        %2850 = vadd.xlane.f32.xlu0 %v2845
        %v2851 = vpop.xlane.xlu0 %2850
        %v2852 = vmul.f32 %v2849, %v550
        %v2853 = vmul.f32 %v2851, %v550
        %v2854 = vsub.f32 %v2844, %v2852
        %v2855 = vsub.f32 %v2845, %v2853
        %v2856 = vmul.f32 %v2854, %v2854
        %v2857 = vmul.f32 %v2855, %v2855
        %2858 = vadd.xlane.f32.xlu0 %v2856
        %v2859 = vpop.xlane.xlu0 %2858
        %2860 = vadd.xlane.f32.xlu0 %v2857
        %v2861 = vpop.xlane.xlu0 %2860
        %v2862 = vmul.f32 %v2859, %v550
        %v2863 = vmul.f32 %v2861, %v550
        %v2864 = vadd.f32 %v2862, 1e-06
        %v2865 = vadd.f32 %v2863, 1e-06
        %v2866 = vrsqrt.pop %v2864
        %v2867 = vrsqrt.pop %v2865
        %v2868 = vmul.f32 %v2854, %v2866
        %v2869 = vmul.f32 %v2855, %v2867
        %v2871 = vlaneseq
        %v2872 = vshrl.u32 %v2871, 7
        %v2873 = vsub.s32 0, %v2872
        %v2874 = vrot.slane %v2846, %v2873
        %v2876 = vmul.f32 %v2868, %v2874
        %v2877 = vmul.f32 %v2869, %v2874
        %v2879 = vlaneseq
        %v2880 = vshrl.u32 %v2879, 7
        %v2881 = vsub.s32 0, %v2880
        %v2882 = vrot.slane %v2847, %v2881
        %v2884 = vadd.f32 %v2876, %v2882
        %v2885 = vadd.f32 %v2877, %v2882
        %v2886 = vld [vmem:[#allocation11] sm:$0xff]
        %v2887 = vld [vmem:[#allocation11 + $0x8] sm:$0xff]
        %v2888 = vld [vmem:[#allocation11 + $0x10] sm:$0xff]
        %v2889 = vld [vmem:[#allocation11 + $0x18] sm:$0xff]
        %v2890 = vld [vmem:[#allocation11 + $0x20] sm:$0xff]
        %v2891 = vld [vmem:[#allocation11 + $0x28] sm:$0xff]
        %v2892 = vld [vmem:[#allocation11 + $0x30] sm:$0xff]
        %v2893 = vld [vmem:[#allocation11 + $0x38] sm:$0xff]
        %v2894 = vld [vmem:[#allocation11 + $0x40] sm:$0xff]
        %v2895 = vld [vmem:[#allocation11 + $0x48] sm:$0xff]
        %v2896 = vld [vmem:[#allocation11 + $0x50] sm:$0xff]
        %v2897 = vld [vmem:[#allocation11 + $0x58] sm:$0xff]
        %v2898 = vld [vmem:[#allocation11 + $0x60] sm:$0xff]
        %v2899 = vld [vmem:[#allocation11 + $0x68] sm:$0xff]
        %v2900 = vld [vmem:[#allocation11 + $0x70] sm:$0xff]
        %v2901 = vld [vmem:[#allocation11 + $0x78] sm:$0xff]
        %v2902 = vld [vmem:[#allocation11 + $0x80] sm:$0xff]
        %v2903 = vld [vmem:[#allocation11 + $0x88] sm:$0xff]
        %v2904 = vld [vmem:[#allocation11 + $0x90] sm:$0xff]
        %v2905 = vld [vmem:[#allocation11 + $0x98] sm:$0xff]
        %v2906 = vld [vmem:[#allocation11 + $0xa0] sm:$0xff]
        %v2907 = vld [vmem:[#allocation11 + $0xa8] sm:$0xff]
        %v2908 = vld [vmem:[#allocation11 + $0xb0] sm:$0xff]
        %v2909 = vld [vmem:[#allocation11 + $0xb8] sm:$0xff]
        %v2910 = vld [vmem:[#allocation11 + $0xc0] sm:$0xff]
        %v2911 = vld [vmem:[#allocation11 + $0xc8] sm:$0xff]
        %v2912 = vld [vmem:[#allocation11 + $0xd0] sm:$0xff]
        %v2913 = vld [vmem:[#allocation11 + $0xd8] sm:$0xff]
        %v2914 = vld [vmem:[#allocation11 + $0xe0] sm:$0xff]
        %v2915 = vld [vmem:[#allocation11 + $0xe8] sm:$0xff]
        %v2916 = vld [vmem:[#allocation11 + $0xf0] sm:$0xff]
        %v2917 = vld [vmem:[#allocation11 + $0xf8] sm:$0xff]
        %v2918 = vld [vmem:[#allocation11 + $0x100] sm:$0xff]
        %v2919 = vld [vmem:[#allocation11 + $0x108] sm:$0xff]
        %v2920 = vld [vmem:[#allocation11 + $0x110] sm:$0xff]
        %v2921 = vld [vmem:[#allocation11 + $0x118] sm:$0xff]
        %v2922 = vld [vmem:[#allocation11 + $0x120] sm:$0xff]
        %v2923 = vld [vmem:[#allocation11 + $0x128] sm:$0xff]
        %v2924 = vld [vmem:[#allocation11 + $0x130] sm:$0xff]
        %v2925 = vld [vmem:[#allocation11 + $0x138] sm:$0xff]
        %v2926 = vld [vmem:[#allocation11 + $0x140] sm:$0xff]
        %v2927 = vld [vmem:[#allocation11 + $0x148] sm:$0xff]
        %v2928 = vld [vmem:[#allocation11 + $0x150] sm:$0xff]
        %v2929 = vld [vmem:[#allocation11 + $0x158] sm:$0xff]
        %v2930 = vld [vmem:[#allocation11 + $0x160] sm:$0xff]
        %v2931 = vld [vmem:[#allocation11 + $0x168] sm:$0xff]
        %v2932 = vld [vmem:[#allocation11 + $0x170] sm:$0xff]
        %v2933 = vld [vmem:[#allocation11 + $0x178] sm:$0xff]
        %v2934 = vld [vmem:[#allocation11 + $0x180] sm:$0xff]
        %v2935 = vld [vmem:[#allocation11 + $0x188] sm:$0xff]
        %v2936 = vld [vmem:[#allocation11 + $0x190] sm:$0xff]
        %v2937 = vld [vmem:[#allocation11 + $0x198] sm:$0xff]
        %v2938 = vld [vmem:[#allocation11 + $0x1a0] sm:$0xff]
        %v2939 = vld [vmem:[#allocation11 + $0x1a8] sm:$0xff]
        %v2940 = vld [vmem:[#allocation11 + $0x1b0] sm:$0xff]
        %v2941 = vld [vmem:[#allocation11 + $0x1b8] sm:$0xff]
        %v2942 = vld [vmem:[#allocation11 + $0x1c0] sm:$0xff]
        %v2943 = vld [vmem:[#allocation11 + $0x1c8] sm:$0xff]
        %v2944 = vld [vmem:[#allocation11 + $0x1d0] sm:$0xff]
        %v2945 = vld [vmem:[#allocation11 + $0x1d8] sm:$0xff]
        %v2946 = vld [vmem:[#allocation11 + $0x1e0] sm:$0xff]
        %v2947 = vld [vmem:[#allocation11 + $0x1e8] sm:$0xff]
        %v2948 = vld [vmem:[#allocation11 + $0x1f0] sm:$0xff]
        %v2949 = vld [vmem:[#allocation11 + $0x1f8] sm:$0xff]
        %v2950 = vld [vmem:[%s10] sm:$0xf]
        %v2952 = vlaneseq
        %v2953 = vshrl.u32 %v2952, 7
        %v2954 = vsub.s32 0, %v2953
        %v2955 = vrot.slane %v2950, %v2954
        %v2956 = vlaneseq
        %v2957 = vshrl.u32 %v2956, 7
        %v2958 = vsub.s32 1, %v2957
        %v2959 = vrot.slane %v2950, %v2958
        %v2960 = vlaneseq
        %v2961 = vshrl.u32 %v2960, 7
        %v2962 = vsub.s32 2, %v2961
        %v2963 = vrot.slane %v2950, %v2962
        %v2964 = vlaneseq
        %v2965 = vshrl.u32 %v2964, 7
        %v2966 = vsub.s32 3, %v2965
        %v2967 = vrot.slane %v2950, %v2966
        %2972 = vmatprep.subr.mxu0 %v2947
        %2973 = vmatpush1.msra.mxu0 %v2946
        %2974 = vmatprep.subr.mxu0 %v2943
        %2975 = vmatpush1.msra.mxu0 %v2942
        %2976 = vmatprep.subr.mxu0 %v2939
        %2977 = vmatpush1.msra.mxu0 %v2938
        %2978 = vmatprep.subr.mxu0 %v2935
        %2979 = vmatpush1.msra.mxu0 %v2934
        %2980 = vmatprep.subr.mxu0 %v2931
        %2981 = vmatpush1.msra.mxu0 %v2930
        %2982 = vmatprep.subr.mxu0 %v2927
        %2983 = vmatpush1.msra.mxu0 %v2926
        %2984 = vmatprep.subr.mxu0 %v2923
        %2985 = vmatpush1.msra.mxu0 %v2922
        %2986 = vmatprep.subr.mxu0 %v2919
        %2987 = vmatpush1.msra.mxu0 %v2918
        %2988 = vmatprep.subr.mxu0 %v2915
        %2989 = vmatpush1.msra.mxu0 %v2914
        %2990 = vmatprep.subr.mxu0 %v2911
        %2991 = vmatpush1.msra.mxu0 %v2910
        %2992 = vmatprep.subr.mxu0 %v2907
        %2993 = vmatpush1.msra.mxu0 %v2906
        %2994 = vmatprep.subr.mxu0 %v2903
        %2995 = vmatpush1.msra.mxu0 %v2902
        %2996 = vmatprep.subr.mxu0 %v2899
        %2997 = vmatpush1.msra.mxu0 %v2898
        %2998 = vmatprep.subr.mxu0 %v2895
        %2999 = vmatpush1.msra.mxu0 %v2894
        %3000 = vmatprep.subr.mxu0 %v2891
        %3001 = vmatpush1.msra.mxu0 %v2890
        %3002 = vmatprep.subr.mxu0 %v2887
        %3003 = vmatpush1.msra.mxu0 %v2886
        %3004 = vmatprep.subr.mxu0 0.0
        %3005 = vmatpush2.msra.mxu0 0.0
        %3006 = vmatprep.subr.mxu0 0.0
        %3007 = vmatpush2.msra.mxu0 0.0
        %3008 = vmatprep.subr.mxu0 0.0
        %3009 = vmatpush2.msra.mxu0 0.0
        %3010 = vmatprep.subr.mxu0 0.0
        %3011 = vmatpush2.msra.mxu0 0.0
        %3012 = vmatprep.subr.mxu0 0.0
        %3013 = vmatpush2.msra.mxu0 0.0
        %3014 = vmatprep.subr.mxu0 0.0
        %3015 = vmatpush2.msra.mxu0 0.0
        %3016 = vmatprep.subr.mxu0 0.0
        %3017 = vmatpush2.msra.mxu0 0.0
        %3018 = vmatprep.subr.mxu0 0.0
        %3019 = vmatpush2.msra.mxu0 0.0
        %3020 = vmatprep.subr.mxu0 0.0
        %3021 = vmatpush2.msra.mxu0 0.0
        %3022 = vmatprep.subr.mxu0 0.0
        %3023 = vmatpush2.msra.mxu0 0.0
        %3024 = vmatprep.subr.mxu0 0.0
        %3025 = vmatpush2.msra.mxu0 0.0
        %3026 = vmatprep.subr.mxu0 0.0
        %3027 = vmatpush2.msra.mxu0 0.0
        %3028 = vmatprep.subr.mxu0 0.0
        %3029 = vmatpush2.msra.mxu0 0.0
        %3030 = vmatprep.subr.mxu0 0.0
        %3031 = vmatpush2.msra.mxu0 0.0
        %3032 = vmatprep.subr.mxu0 0.0
        %3033 = vmatpush2.msra.mxu0 0.0
        %3034 = vmatprep.subr.mxu0 0.0
        %3035 = vmatpush2.msra.mxu0 0.0
        %3036 = vmatprep.mubr.f32.mxu0 0.0
        %3037 = vmatmul.mubr.f32.gmra.mxu0 %v2884
        %v3038 = vpop.f32.mrf.mxu0
        %v3039 = vadd.f32 %v2955, %v3038
        %v3040 = vpop.f32.mrf.mxu0
        %v3041 = vadd.f32 %v2959, %v3040
        %3042 = vmatprep.mubr.f32.mxu0 0.0
        %3043 = vmatmul.mubr.f32.gmra.mxu0 %v2885
        %v3044 = vpop.f32.mrf.mxu0
        %v3045 = vadd.f32 %v2955, %v3044
        %v3046 = vpop.f32.mrf.mxu0
        %v3047 = vadd.f32 %v2959, %v3046
        %3048 = vdwg.mxu0
        %3049 = vmatprep.subr.mxu0 %v2949
        %3050 = vmatpush1.msra.mxu0 %v2948
        %3051 = vmatprep.subr.mxu0 %v2945
        %3052 = vmatpush1.msra.mxu0 %v2944
        %3053 = vmatprep.subr.mxu0 %v2941
        %3054 = vmatpush1.msra.mxu0 %v2940
        %3055 = vmatprep.subr.mxu0 %v2937
        %3056 = vmatpush1.msra.mxu0 %v2936
        %3057 = vmatprep.subr.mxu0 %v2933
        %3058 = vmatpush1.msra.mxu0 %v2932
        %3059 = vmatprep.subr.mxu0 %v2929
        %3060 = vmatpush1.msra.mxu0 %v2928
        %3061 = vmatprep.subr.mxu0 %v2925
        %3062 = vmatpush1.msra.mxu0 %v2924
        %3063 = vmatprep.subr.mxu0 %v2921
        %3064 = vmatpush1.msra.mxu0 %v2920
        %3065 = vmatprep.subr.mxu0 %v2917
        %3066 = vmatpush1.msra.mxu0 %v2916
        %3067 = vmatprep.subr.mxu0 %v2913
        %3068 = vmatpush1.msra.mxu0 %v2912
        %3069 = vmatprep.subr.mxu0 %v2909
        %3070 = vmatpush1.msra.mxu0 %v2908
        %3071 = vmatprep.subr.mxu0 %v2905
        %3072 = vmatpush1.msra.mxu0 %v2904
        %3073 = vmatprep.subr.mxu0 %v2901
        %3074 = vmatpush1.msra.mxu0 %v2900
        %3075 = vmatprep.subr.mxu0 %v2897
        %3076 = vmatpush1.msra.mxu0 %v2896
        %3077 = vmatprep.subr.mxu0 %v2893
        %3078 = vmatpush1.msra.mxu0 %v2892
        %3079 = vmatprep.subr.mxu0 %v2889
        %3080 = vmatpush1.msra.mxu0 %v2888
        %3081 = vmatprep.subr.mxu0 0.0
        %3082 = vmatpush2.msra.mxu0 0.0
        %3083 = vmatprep.subr.mxu0 0.0
        %3084 = vmatpush2.msra.mxu0 0.0
        %3085 = vmatprep.subr.mxu0 0.0
        %3086 = vmatpush2.msra.mxu0 0.0
        %3087 = vmatprep.subr.mxu0 0.0
        %3088 = vmatpush2.msra.mxu0 0.0
        %3089 = vmatprep.subr.mxu0 0.0
        %3090 = vmatpush2.msra.mxu0 0.0
        %3091 = vmatprep.subr.mxu0 0.0
        %3092 = vmatpush2.msra.mxu0 0.0
        %3093 = vmatprep.subr.mxu0 0.0
        %3094 = vmatpush2.msra.mxu0 0.0
        %3095 = vmatprep.subr.mxu0 0.0
        %3096 = vmatpush2.msra.mxu0 0.0
        %3097 = vmatprep.subr.mxu0 0.0
        %3098 = vmatpush2.msra.mxu0 0.0
        %3099 = vmatprep.subr.mxu0 0.0
        %3100 = vmatpush2.msra.mxu0 0.0
        %3101 = vmatprep.subr.mxu0 0.0
        %3102 = vmatpush2.msra.mxu0 0.0
        %3103 = vmatprep.subr.mxu0 0.0
        %3104 = vmatpush2.msra.mxu0 0.0
        %3105 = vmatprep.subr.mxu0 0.0
        %3106 = vmatpush2.msra.mxu0 0.0
        %3107 = vmatprep.subr.mxu0 0.0
        %3108 = vmatpush2.msra.mxu0 0.0
        %3109 = vmatprep.subr.mxu0 0.0
        %3110 = vmatpush2.msra.mxu0 0.0
        %3111 = vmatprep.subr.mxu0 0.0
        %3112 = vmatpush2.msra.mxu0 0.0
        %3113 = vmatprep.mubr.f32.mxu0 0.0
        %3114 = vmatmul.mubr.f32.gmra.mxu0 %v2884
        %v3115 = vpop.f32.mrf.mxu0
        %v3116 = vadd.f32 %v2963, %v3115
        %v3117 = vpop.f32.mrf.mxu0
        %v3118 = vadd.f32 %v2967, %v3117
        %3119 = vmatprep.mubr.f32.mxu0 0.0
        %3120 = vmatmul.mubr.f32.gmra.mxu0 %v2885
        %v3121 = vpop.f32.mrf.mxu0
        %v3122 = vadd.f32 %v2963, %v3121
        %v3123 = vpop.f32.mrf.mxu0
        %v3124 = vadd.f32 %v2967, %v3123
        %3125 = vdwg.mxu0
        %vm3126 = vcmp.ge.f32.partialorder %v3039, 0.0
        %vm3127 = vcmp.ge.f32.partialorder %v3041, 0.0
        %vm3128 = vcmp.ge.f32.partialorder %v3116, 0.0
        %vm3129 = vcmp.ge.f32.partialorder %v3118, 0.0
        %vm3130 = vcmp.ge.f32.partialorder %v3045, 0.0
        %vm3131 = vcmp.ge.f32.partialorder %v3047, 0.0
        %vm3132 = vcmp.ge.f32.partialorder %v3122, 0.0
        %vm3133 = vcmp.ge.f32.partialorder %v3124, 0.0
        %v3134 = vmul.f32 %v3039, 0.4
        %v3135 = vmul.f32 %v3041, 0.4
        %v3136 = vmul.f32 %v3116, 0.4
        %v3137 = vmul.f32 %v3118, 0.4
        %v3138 = vmul.f32 %v3045, 0.4
        %v3139 = vmul.f32 %v3047, 0.4
        %v3140 = vmul.f32 %v3122, 0.4
        %v3141 = vmul.f32 %v3124, 0.4
        %v3142 = vsel %vm3126, %v3039, %v3134
        %v3143 = vsel %vm3127, %v3041, %v3135
        %v3144 = vsel %vm3128, %v3116, %v3136
        %v3145 = vsel %vm3129, %v3118, %v3137
        %v3146 = vsel %vm3130, %v3045, %v3138
        %v3147 = vsel %vm3131, %v3047, %v3139
        %v3148 = vsel %vm3132, %v3122, %v3140
        %v3149 = vsel %vm3133, %v3124, %v3141
        %v3150 = vld [vmem:[#allocation13] sm:$0xff]
        %v3151 = vld [vmem:[#allocation13 + $0x8] sm:$0xff]
        %v3152 = vld [vmem:[#allocation13 + $0x10] sm:$0xff]
        %v3153 = vld [vmem:[#allocation13 + $0x18] sm:$0xff]
        %v3154 = vld [vmem:[#allocation13 + $0x20] sm:$0xff]
        %v3155 = vld [vmem:[#allocation13 + $0x28] sm:$0xff]
        %v3156 = vld [vmem:[#allocation13 + $0x30] sm:$0xff]
        %v3157 = vld [vmem:[#allocation13 + $0x38] sm:$0xff]
        %v3158 = vld [vmem:[#allocation13 + $0x40] sm:$0xff]
        %v3159 = vld [vmem:[#allocation13 + $0x48] sm:$0xff]
        %v3160 = vld [vmem:[#allocation13 + $0x50] sm:$0xff]
        %v3161 = vld [vmem:[#allocation13 + $0x58] sm:$0xff]
        %v3162 = vld [vmem:[#allocation13 + $0x60] sm:$0xff]
        %v3163 = vld [vmem:[#allocation13 + $0x68] sm:$0xff]
        %v3164 = vld [vmem:[#allocation13 + $0x70] sm:$0xff]
        %v3165 = vld [vmem:[#allocation13 + $0x78] sm:$0xff]
        %v3166 = vld [vmem:[#allocation13 + $0x80] sm:$0xff]
        %v3167 = vld [vmem:[#allocation13 + $0x88] sm:$0xff]
        %v3168 = vld [vmem:[#allocation13 + $0x90] sm:$0xff]
        %v3169 = vld [vmem:[#allocation13 + $0x98] sm:$0xff]
        %v3170 = vld [vmem:[#allocation13 + $0xa0] sm:$0xff]
        %v3171 = vld [vmem:[#allocation13 + $0xa8] sm:$0xff]
        %v3172 = vld [vmem:[#allocation13 + $0xb0] sm:$0xff]
        %v3173 = vld [vmem:[#allocation13 + $0xb8] sm:$0xff]
        %v3174 = vld [vmem:[#allocation13 + $0xc0] sm:$0xff]
        %v3175 = vld [vmem:[#allocation13 + $0xc8] sm:$0xff]
        %v3176 = vld [vmem:[#allocation13 + $0xd0] sm:$0xff]
        %v3177 = vld [vmem:[#allocation13 + $0xd8] sm:$0xff]
        %v3178 = vld [vmem:[#allocation13 + $0xe0] sm:$0xff]
        %v3179 = vld [vmem:[#allocation13 + $0xe8] sm:$0xff]
        %v3180 = vld [vmem:[#allocation13 + $0xf0] sm:$0xff]
        %v3181 = vld [vmem:[#allocation13 + $0xf8] sm:$0xff]
        %v3182 = vld [vmem:[#allocation13 + $0x100] sm:$0xff]
        %v3183 = vld [vmem:[#allocation13 + $0x108] sm:$0xff]
        %v3184 = vld [vmem:[#allocation13 + $0x110] sm:$0xff]
        %v3185 = vld [vmem:[#allocation13 + $0x118] sm:$0xff]
        %v3186 = vld [vmem:[#allocation13 + $0x120] sm:$0xff]
        %v3187 = vld [vmem:[#allocation13 + $0x128] sm:$0xff]
        %v3188 = vld [vmem:[#allocation13 + $0x130] sm:$0xff]
        %v3189 = vld [vmem:[#allocation13 + $0x138] sm:$0xff]
        %v3190 = vld [vmem:[#allocation13 + $0x140] sm:$0xff]
        %v3191 = vld [vmem:[#allocation13 + $0x148] sm:$0xff]
        %v3192 = vld [vmem:[#allocation13 + $0x150] sm:$0xff]
        %v3193 = vld [vmem:[#allocation13 + $0x158] sm:$0xff]
        %v3194 = vld [vmem:[#allocation13 + $0x160] sm:$0xff]
        %v3195 = vld [vmem:[#allocation13 + $0x168] sm:$0xff]
        %v3196 = vld [vmem:[#allocation13 + $0x170] sm:$0xff]
        %v3197 = vld [vmem:[#allocation13 + $0x178] sm:$0xff]
        %v3198 = vld [vmem:[#allocation13 + $0x180] sm:$0xff]
        %v3199 = vld [vmem:[#allocation13 + $0x188] sm:$0xff]
        %v3200 = vld [vmem:[#allocation13 + $0x190] sm:$0xff]
        %v3201 = vld [vmem:[#allocation13 + $0x198] sm:$0xff]
        %v3202 = vld [vmem:[#allocation13 + $0x1a0] sm:$0xff]
        %v3203 = vld [vmem:[#allocation13 + $0x1a8] sm:$0xff]
        %v3204 = vld [vmem:[#allocation13 + $0x1b0] sm:$0xff]
        %v3205 = vld [vmem:[#allocation13 + $0x1b8] sm:$0xff]
        %v3206 = vld [vmem:[#allocation13 + $0x1c0] sm:$0xff]
        %v3207 = vld [vmem:[#allocation13 + $0x1c8] sm:$0xff]
        %v3208 = vld [vmem:[#allocation13 + $0x1d0] sm:$0xff]
        %v3209 = vld [vmem:[#allocation13 + $0x1d8] sm:$0xff]
        %v3210 = vld [vmem:[#allocation13 + $0x1e0] sm:$0xff]
        %v3211 = vld [vmem:[#allocation13 + $0x1e8] sm:$0xff]
        %v3212 = vld [vmem:[#allocation13 + $0x1f0] sm:$0xff]
        %v3213 = vld [vmem:[#allocation13 + $0x1f8] sm:$0xff]
        %v3214 = vld [vmem:[%s12] sm:$0x1]
        %v3216 = vlaneseq
        %v3217 = vshrl.u32 %v3216, 7
        %v3218 = vsub.s32 0, %v3217
        %v3219 = vrot.slane %v3214, %v3218
        %3221 = vmatprep.subr.mxu0 0.0
        %3222 = vmatpush1.msra.mxu0 %v3165
        %3223 = vmatprep.subr.mxu0 0.0
        %3224 = vmatpush1.msra.mxu0 %v3164
        %3225 = vmatprep.subr.mxu0 0.0
        %3226 = vmatpush1.msra.mxu0 %v3163
        %3227 = vmatprep.subr.mxu0 0.0
        %3228 = vmatpush1.msra.mxu0 %v3162
        %3229 = vmatprep.subr.mxu0 0.0
        %3230 = vmatpush1.msra.mxu0 %v3161
        %3231 = vmatprep.subr.mxu0 0.0
        %3232 = vmatpush1.msra.mxu0 %v3160
        %3233 = vmatprep.subr.mxu0 0.0
        %3234 = vmatpush1.msra.mxu0 %v3159
        %3235 = vmatprep.subr.mxu0 0.0
        %3236 = vmatpush1.msra.mxu0 %v3158
        %3237 = vmatprep.subr.mxu0 0.0
        %3238 = vmatpush1.msra.mxu0 %v3157
        %3239 = vmatprep.subr.mxu0 0.0
        %3240 = vmatpush1.msra.mxu0 %v3156
        %3241 = vmatprep.subr.mxu0 0.0
        %3242 = vmatpush1.msra.mxu0 %v3155
        %3243 = vmatprep.subr.mxu0 0.0
        %3244 = vmatpush1.msra.mxu0 %v3154
        %3245 = vmatprep.subr.mxu0 0.0
        %3246 = vmatpush1.msra.mxu0 %v3153
        %3247 = vmatprep.subr.mxu0 0.0
        %3248 = vmatpush1.msra.mxu0 %v3152
        %3249 = vmatprep.subr.mxu0 0.0
        %3250 = vmatpush1.msra.mxu0 %v3151
        %3251 = vmatprep.subr.mxu0 0.0
        %3252 = vmatpush1.msra.mxu0 %v3150
        %3253 = vmatprep.subr.mxu0 0.0
        %3254 = vmatpush2.msra.mxu0 %v3181
        %3255 = vmatprep.subr.mxu0 0.0
        %3256 = vmatpush2.msra.mxu0 %v3180
        %3257 = vmatprep.subr.mxu0 0.0
        %3258 = vmatpush2.msra.mxu0 %v3179
        %3259 = vmatprep.subr.mxu0 0.0
        %3260 = vmatpush2.msra.mxu0 %v3178
        %3261 = vmatprep.subr.mxu0 0.0
        %3262 = vmatpush2.msra.mxu0 %v3177
        %3263 = vmatprep.subr.mxu0 0.0
        %3264 = vmatpush2.msra.mxu0 %v3176
        %3265 = vmatprep.subr.mxu0 0.0
        %3266 = vmatpush2.msra.mxu0 %v3175
        %3267 = vmatprep.subr.mxu0 0.0
        %3268 = vmatpush2.msra.mxu0 %v3174
        %3269 = vmatprep.subr.mxu0 0.0
        %3270 = vmatpush2.msra.mxu0 %v3173
        %3271 = vmatprep.subr.mxu0 0.0
        %3272 = vmatpush2.msra.mxu0 %v3172
        %3273 = vmatprep.subr.mxu0 0.0
        %3274 = vmatpush2.msra.mxu0 %v3171
        %3275 = vmatprep.subr.mxu0 0.0
        %3276 = vmatpush2.msra.mxu0 %v3170
        %3277 = vmatprep.subr.mxu0 0.0
        %3278 = vmatpush2.msra.mxu0 %v3169
        %3279 = vmatprep.subr.mxu0 0.0
        %3280 = vmatpush2.msra.mxu0 %v3168
        %3281 = vmatprep.subr.mxu0 0.0
        %3282 = vmatpush2.msra.mxu0 %v3167
        %3283 = vmatprep.subr.mxu0 0.0
        %3284 = vmatpush2.msra.mxu0 %v3166
        %3285 = vmatprep.mubr.f32.mxu0 %v3143
        %3286 = vmatmul.mubr.f32.gmra.mxu0 %v3142
        %v3287 = vpop.f32.mrf.mxu0
        %v3288 = vadd.f32 %v3219, %v3287
        %v3289 = vpop.f32.mrf.mxu0
        %3290 = vmatprep.mubr.f32.mxu0 %v3147
        %3291 = vmatmul.mubr.f32.gmra.mxu0 %v3146
        %v3292 = vpop.f32.mrf.mxu0
        %v3293 = vadd.f32 %v3219, %v3292
        %v3294 = vpop.f32.mrf.mxu0
        %3295 = vdwg.mxu0
        %3296 = vmatprep.subr.mxu0 0.0
        %3297 = vmatpush1.msra.mxu0 %v3197
        %3298 = vmatprep.subr.mxu0 0.0
        %3299 = vmatpush1.msra.mxu0 %v3196
        %3300 = vmatprep.subr.mxu0 0.0
        %3301 = vmatpush1.msra.mxu0 %v3195
        %3302 = vmatprep.subr.mxu0 0.0
        %3303 = vmatpush1.msra.mxu0 %v3194
        %3304 = vmatprep.subr.mxu0 0.0
        %3305 = vmatpush1.msra.mxu0 %v3193
        %3306 = vmatprep.subr.mxu0 0.0
        %3307 = vmatpush1.msra.mxu0 %v3192
        %3308 = vmatprep.subr.mxu0 0.0
        %3309 = vmatpush1.msra.mxu0 %v3191
        %3310 = vmatprep.subr.mxu0 0.0
        %3311 = vmatpush1.msra.mxu0 %v3190
        %3312 = vmatprep.subr.mxu0 0.0
        %3313 = vmatpush1.msra.mxu0 %v3189
        %3314 = vmatprep.subr.mxu0 0.0
        %3315 = vmatpush1.msra.mxu0 %v3188
        %3316 = vmatprep.subr.mxu0 0.0
        %3317 = vmatpush1.msra.mxu0 %v3187
        %3318 = vmatprep.subr.mxu0 0.0
        %3319 = vmatpush1.msra.mxu0 %v3186
        %3320 = vmatprep.subr.mxu0 0.0
        %3321 = vmatpush1.msra.mxu0 %v3185
        %3322 = vmatprep.subr.mxu0 0.0
        %3323 = vmatpush1.msra.mxu0 %v3184
        %3324 = vmatprep.subr.mxu0 0.0
        %3325 = vmatpush1.msra.mxu0 %v3183
        %3326 = vmatprep.subr.mxu0 0.0
        %3327 = vmatpush1.msra.mxu0 %v3182
        %3328 = vmatprep.subr.mxu0 0.0
        %3329 = vmatpush2.msra.mxu0 %v3213
        %3330 = vmatprep.subr.mxu0 0.0
        %3331 = vmatpush2.msra.mxu0 %v3212
        %3332 = vmatprep.subr.mxu0 0.0
        %3333 = vmatpush2.msra.mxu0 %v3211
        %3334 = vmatprep.subr.mxu0 0.0
        %3335 = vmatpush2.msra.mxu0 %v3210
        %3336 = vmatprep.subr.mxu0 0.0
        %3337 = vmatpush2.msra.mxu0 %v3209
        %3338 = vmatprep.subr.mxu0 0.0
        %3339 = vmatpush2.msra.mxu0 %v3208
        %3340 = vmatprep.subr.mxu0 0.0
        %3341 = vmatpush2.msra.mxu0 %v3207
        %3342 = vmatprep.subr.mxu0 0.0
        %3343 = vmatpush2.msra.mxu0 %v3206
        %3344 = vmatprep.subr.mxu0 0.0
        %3345 = vmatpush2.msra.mxu0 %v3205
        %3346 = vmatprep.subr.mxu0 0.0
        %3347 = vmatpush2.msra.mxu0 %v3204
        %3348 = vmatprep.subr.mxu0 0.0
        %3349 = vmatpush2.msra.mxu0 %v3203
        %3350 = vmatprep.subr.mxu0 0.0
        %3351 = vmatpush2.msra.mxu0 %v3202
        %3352 = vmatprep.subr.mxu0 0.0
        %3353 = vmatpush2.msra.mxu0 %v3201
        %3354 = vmatprep.subr.mxu0 0.0
        %3355 = vmatpush2.msra.mxu0 %v3200
        %3356 = vmatprep.subr.mxu0 0.0
        %3357 = vmatpush2.msra.mxu0 %v3199
        %3358 = vmatprep.subr.mxu0 0.0
        %3359 = vmatpush2.msra.mxu0 %v3198
        %3360 = vmatprep.mubr.f32.mxu0 %v3145
        %3361 = vmatmul.mubr.f32.gmra.mxu0 %v3144
        %v3362 = vpop.f32.mrf.mxu0
        %v3363 = vadd.f32 %v3288, %v3362
        %v3364 = vpop.f32.mrf.mxu0
        %3365 = vmatprep.mubr.f32.mxu0 %v3149
        %3366 = vmatmul.mubr.f32.gmra.mxu0 %v3148
        %v3367 = vpop.f32.mrf.mxu0
        %v3368 = vadd.f32 %v3293, %v3367
        %v3369 = vpop.f32.mrf.mxu0
        %3370 = vdwg.mxu0
        %v3371 = vadd.f32 %v2844, %v3363
        %v3372 = vadd.f32 %v2845, %v3368
        %3373 = vst [vmem:[%s541] sm:$0xff] %v3371
        %3374 = vst [vmem:[%s541 + $0x8] sm:$0xff] %v3372
        %s3375 = sand.u32 %s319, 1
        %s3376 = scalar_lea.sflag [#allocation4], %s3375
        %s3377 = sand.u32 %s319, 1
        %s3378 = smul.addr %s3377, 16
        %s3379 = scalar_lea.vmem [#allocation14], %s3378
        // Predicated region
        $region101: #{tpu_custom_call.1} parent=71 // pred_check
          %p3380 = pneg %p329
        $region102: #{tpu_custom_call.1} parent=71 // pred_check_branch
          %3382 = sbr.rel (%p3380) target = $region104
        $region103: #{tpu_custom_call.1} parent=71 // pred_region
          %s3384 = ssub.s32 256, 256
          %3385 = vsyncadd %s3376, %s3384
          %s3386 = smul.addr %s33, 2
          %s3387 = smul.addr %s3386, 128
          %s3388 = scalar_lea.hbm %s13, %s3387
          %s3389 = sshll.u32 %s3379, 4
          %s3390 = int_to_ptr.vmem [resolvable:$true] %s3389
          %3395 = dma.vmem_to_hbm [thread:$0]  %s3390, 256, %s3388, %s3376, 128, 128, 8
        $region104: #{tpu_custom_call.1} parent=71 // pred_fallthru
          _
      $region72: #{tpu_custom_call.1} parent=5 // pred_fallthru
        _
      %p3396 = scmp.le.s32.totalorder 2, %s28
      // Predicated region
      $region105: #{tpu_custom_call.1} parent=5 // pred_check
        %p3397 = pneg %p3396
      $region106: #{tpu_custom_call.1} parent=5 // pred_check_branch
        %3399 = sbr.rel (%p3397) target = $region108
      $region107: #{tpu_custom_call.1} parent=5 // pred_region
        %s3400 = ssub.s32 %s28, 2
        // Predicated region
        $region109: #{tpu_custom_call.1} parent=107 // pred_check
          %p3401 = pneg %p335
        $region110: #{tpu_custom_call.1} parent=107 // pred_check_branch
          %3403 = sbr.rel (%p3401) target = $region112
        $region111: #{tpu_custom_call.1} parent=107 // pred_region
          %s3404 = sand.u32 %s320, 1
          %s3405 = scalar_lea.sflag [#allocation4], %s3404
          %s3406 = sand.u32 %s320, 1
          %s3407 = smul.addr %s3406, 16
          %s3408 = scalar_lea.vmem [#allocation14], %s3407
          %3409 = dma.done %s3405, 256
        $region112: #{tpu_custom_call.1} parent=107 // pred_fallthru
          _
      $region108: #{tpu_custom_call.1} parent=5 // pred_fallthru
        _
    $region6: #{tpu_custom_call.1} parent=1 // loop_footer
      %s32 = sadd.s32 1, %s28
    $region7: #{tpu_custom_call.1} parent=1 // loop_footer_branch
      %27 = sbr.rel target = $region3
    $region8: #{tpu_custom_call.1} parent=1 // loop_exit
      _
    %3410 = vsyncpa [#allocation3], 1
    %s3411 = scalar_lea.sflag [#allocation3], 1
    %3412 = vsyncpa %s3411, 1
    %3413 = vsyncpa [#allocation6], 1
    %3414 = vsyncpa [#allocation9], 1
    %3415 = vsyncpa [#allocation12], 1
    %3416 = vsyncpa [#allocation4], 1
    %s3417 = scalar_lea.sflag [#allocation4], 1
    %3418 = vsyncpa %s3417, 1

</llo_original>
